<compile_context>
chip_gen: v7x
topology: tpu7x:2x2x1
jax: 0.10.0
libtpu: 0.0.40
codegen_flags: <defaults>
</compile_context>

<pallas_src>
import functools

import jax
import jax.numpy as jnp
from jax.experimental import pallas as pl
from jax.experimental.pallas import tpu as pltpu


def _round_up(x, m):
    return ((x + m - 1) // m) * m


def _cdiv(a, b):
    return (a + b - 1) // b


def _pick_tile(total, cap, multiple):
    """Largest divisor of `total` <= cap that is a multiple of `multiple`
    (falls back to any divisor <= cap, then to `total`)."""
    for m in (multiple, 1):
        for t in range(min(total, cap), 0, -1):
            if total % t == 0 and t % m == 0:
                return t
    return total


# ---------------------------------------------------------------------------
# Fused kernel: conv1 (pre-folded K*K taps -> one dot per row block) + bias +
# ReLU -> VMEM scratch -> conv2 (K*K tap slabs out of VMEM) + bias.
#
# "Wide" flattened-row trick (stride 1): for conv2 tap (kh, kw) the input of
# wide output row q is scratch row q + kh*rw + kw, so each tap is one
# contiguous slab; junk columns (ow >= real width) are masked to zero for
# conv1 (they land exactly on conv2's padding columns) and sliced off in the
# wrapper for conv2.
# ---------------------------------------------------------------------------
def _fused_conv_block_kernel(x_ref, w1_ref, b1_ref, w2_ref, b2_ref, o_ref,
                             y_ref, *, b_tile, ksize, oh1, ow1, wp, oh2, rw,
                             pad, mt1, mt2):
    f32 = jnp.float32
    c1 = w1_ref.shape[-1]
    c2 = w2_ref.shape[-1]
    m1 = oh1 * wp                      # conv1 "wide" rows per image
    m2 = oh2 * rw                      # conv2 "wide" rows per image
    scr = y_ref.shape[0]
    base = pad * rw + pad              # first scratch row conv1 writes

    # ---- scratch halo init (every step; see header for why not pid==0) ----
    if rw == wp:
        if base > 0:
            y_ref[pl.ds(0, base), :] = jnp.zeros((base, c1), y_ref.dtype)
        tail = scr - (base + m1)
        if tail > 0:
            y_ref[pl.ds(base + m1, tail), :] = jnp.zeros((tail, c1),
                                                         y_ref.dtype)
        # Junk-column mask for conv1's wide rows (block-invariant when
        # mt1 % wp == 0, which _pick_tile arranges -> hoisted out of loops).
        col = jax.lax.broadcasted_iota(jnp.int32, (mt1, 1), 0)
        keep_base = (col % wp) < ow1 if mt1 % wp == 0 else None
    else:
        # TODO(synk): over-padded case (2*pad > ksize-1) keeps the simple
        # full clear + per-row stores; not exercised by the benchmark config.
        y_ref[...] = jnp.zeros(y_ref.shape, y_ref.dtype)

    w1 = w1_ref[...]                   # (K*K*Cin, C1), grid-invariant
    b1 = b1_ref[...].astype(f32)       # (1, C1)
    b2 = b2_ref[...].astype(f32)       # (1, C2)

    for b in range(b_tile):            # static, unrolled batch tile
        # ---- conv1 + bias + ReLU: ONE MXU push per row block --------------
        for blk in range(m1 // mt1):
            r0 = blk * mt1
            acc = jnp.dot(x_ref[b, pl.ds(r0, mt1), :], w1,
                          preferred_element_type=f32) + b1
            acc = jnp.maximum(acc, 0.0)            # f32 epilogue (v5e-safe)
            if rw == wp:
                keep = (keep_base if keep_base is not None
                        else ((col + r0) % wp) < ow1)
                # Contiguous store; masked junk cols land exactly on the
                # left/right padding columns conv2 expects.
                y_ref[pl.ds(base + r0, mt1), :] = jnp.where(
                    keep, acc, 0.0).astype(y_ref.dtype)
            else:
                rows = mt1 // wp
                for r in range(rows):
                    i = blk * rows + r
                    y_ref[pl.ds((i + pad) * rw + pad, ow1), :] = (
                        acc[r * wp:r * wp + ow1, :].astype(y_ref.dtype))

        # ---- conv2: K*K tap slabs straight out of the VMEM scratch ---------
        for blk in range(m2 // mt2):
            r0 = blk * mt2
            acc = jnp.broadcast_to(b2, (mt2, c2))
            for kh in range(ksize):
                for kw in range(ksize):
                    a = y_ref[pl.ds(kh * rw + kw + r0, mt2), :]
                    acc = acc + jnp.dot(a, w2_ref[kh * ksize + kw],
                                        preferred_element_type=f32)
            o_ref[b, pl.ds(r0, mt2), :] = acc.astype(o_ref.dtype)


# ---------------------------------------------------------------------------
# Wrapper: NCHW in / NCHW out; layout plumbing only.
# ---------------------------------------------------------------------------
def basic_conv_block(x_nchw, params, stride, padding, *,
                     compute_dtype=jnp.bfloat16, batch_tile=None,
                     max_block_rows=256):
    if stride != 1:
        # TODO(synk): fused path only implements stride=1 (the configuration
        # exercised here); stride > 1 needs strided tap slabs.
        raise NotImplementedError("fused BasicConvBlock kernel assumes stride=1")
    w1, b1, w2, b2 = params                          # PyTorch OIHW weights
    N, Cin, H, W = x_nchw.shape
    Cout1, _, K, _ = w1.shape
    Cout2 = w2.shape[0]
    p = padding

    Hp, Wp = H + 2 * p, W + 2 * p
    OH1, OW1 = Hp - K + 1, Wp - K + 1
    OH2, OW2 = OH1 + 2 * p - K + 1, OW1 + 2 * p - K + 1
    RW = max(Wp, OW1 + 2 * p)                        # scratch row width
    M1 = OH1 * Wp                                    # conv1 wide rows / image
    M2 = OH2 * RW                                    # conv2 wide rows / image
    SCR = _round_up((OH1 + 2 * p) * RW + K, 8)       # scratch rows (+ slack)

    MT1 = _pick_tile(M1, max_block_rows, Wp)         # conv1 row-block size
    MT2 = _pick_tile(M2, max_block_rows, 8)          # conv2 row-block size
    if RW != Wp and MT1 % Wp != 0:
        raise NotImplementedError("over-padded conv with very wide rows")

    if batch_tile is None:
        batch_tile = max(1, _cdiv(N, 2))             # <=2 steps, v7x-friendly
    grid_n = _cdiv(N, batch_tile)
    Np = grid_n * batch_tile

    # input: NCHW -> NHWC, spatial zero-pad, flatten rows, fold the K*K taps
    # into the lane dim (conv1 patch layout, K*K*Cin lanes), cast to bf16.
    x = jnp.transpose(x_nchw, (0, 2, 3, 1))
    if Np > N:
        x = jnp.pad(x, ((0, Np - N), (0, 0), (0, 0), (0, 0)))
    x = jnp.pad(x, ((0, 0), (p, p), (p, p), (0, 0)))
    x = x.reshape(Np, Hp * Wp, Cin)
    x = jnp.pad(x, ((0, 0), (0, (K - 1) * (Wp + 1)), (0, 0)))    # shift slack
    offs = [kh * Wp + kw for kh in range(K) for kw in range(K)]
    x = jnp.concatenate([x[:, o:o + M1, :] for o in offs], axis=-1)
    x = x.astype(compute_dtype)                      # (Np, M1, K*K*Cin)

    # weights: OIHW -> (K*K*Cin, C1) / (K*K, C1, C2); no channel padding.
    w1p = jnp.transpose(w1, (2, 3, 1, 0)).reshape(K * K * Cin, Cout1)
    w1p = w1p.astype(compute_dtype)
    b1p = b1.reshape(1, Cout1).astype(jnp.float32)
    w2p = jnp.transpose(w2, (2, 3, 1, 0)).reshape(K * K, Cout1, Cout2)
    w2p = w2p.astype(compute_dtype)
    b2p = b2.reshape(1, Cout2).astype(jnp.float32)

    kernel = functools.partial(
        _fused_conv_block_kernel, b_tile=batch_tile, ksize=K, oh1=OH1,
        ow1=OW1, wp=Wp, oh2=OH2, rw=RW, pad=p, mt1=MT1, mt2=MT2)

    out_wide = pl.pallas_call(
        kernel,
        out_shape=jax.ShapeDtypeStruct((Np, M2, Cout2), jnp.float32),
        grid_spec=pltpu.PrefetchScalarGridSpec(
            num_scalar_prefetch=0,
            grid=(grid_n,),                          # batch tiles per step
            in_specs=[
                pl.BlockSpec((batch_tile, M1, K * K * Cin),
                             lambda n: (n, 0, 0)),
                pl.BlockSpec((K * K * Cin, Cout1), lambda n: (0, 0)),
                pl.BlockSpec((1, Cout1), lambda n: (0, 0)),
                pl.BlockSpec((K * K, Cout1, Cout2), lambda n: (0, 0, 0)),
                pl.BlockSpec((1, Cout2), lambda n: (0, 0)),
            ],
            out_specs=pl.BlockSpec((batch_tile, M2, Cout2),
                                   lambda n: (n, 0, 0)),
            scratch_shapes=[pltpu.VMEM((SCR, Cout1), compute_dtype)],
        ),
        compiler_params=pltpu.CompilerParams(
            dimension_semantics=("parallel",)),      # both v7x TCs get a step
    )(x, w1p, b1p, w2p, b2p)

    # wide rows -> (N, OH2, OW2, C2) (only the 12.5% junk cols dropped) -> NCHW
    out = out_wide[:N].reshape(N, OH2, RW, Cout2)[:, :, :OW2, :]
    return jnp.transpose(out, (0, 3, 1, 2))


# ---------------------------------------------------------------------------
# Deterministic parameter init (PyTorch-style uniform bounds, synthetic)
# ---------------------------------------------------------------------------
def init_params(key, in_channel, out_channel, kernel_size):
    k1, k2, k3, k4 = jax.random.split(key, 4)
    fan1 = in_channel * kernel_size * kernel_size
    bnd1 = 1.0 / (fan1 ** 0.5)
    w1 = jax.random.uniform(k1, (out_channel, in_channel, kernel_size, kernel_size),
                            jnp.float32, -bnd1, bnd1)
    b1 = jax.random.uniform(k2, (out_channel,), jnp.float32, -bnd1, bnd1)
    fan2 = out_channel * kernel_size * kernel_size
    bnd2 = 1.0 / (fan2 ** 0.5)
    w2 = jax.random.uniform(k3, (out_channel, out_channel, kernel_size, kernel_size),
                            jnp.float32, -bnd2, bnd2)
    b2 = jax.random.uniform(k4, (out_channel,), jnp.float32, -bnd2, bnd2)
    return w1, b1, w2, b2


# ---------------------------------------------------------------------------
# Pure-JAX reference (NCHW, matches PyTorch semantics)
# ---------------------------------------------------------------------------
def _conv_ref(x_nchw, w_oihw, b, stride, padding):
    y = jax.lax.conv_general_dilated(
        x_nchw, w_oihw, window_strides=(stride, stride),
        padding=[(padding, padding), (padding, padding)],
        dimension_numbers=("NCHW", "OIHW", "NCHW"))
    return y + b.reshape(1, -1, 1, 1)


def basic_conv_block_ref(x_nchw, params, stride, padding):
    w1, b1, w2, b2 = params
    y = jnp.maximum(_conv_ref(x_nchw, w1, b1, stride, padding), 0.0)
    return _conv_ref(y, w2, b2, 1, padding)


if __name__ == "__main__":
    in_channel, out_channel = 4, 8
    kernel_size, stride, padding = 3, 1, 1
    batch, spatial = 2, 16

    key = jax.random.PRNGKey(0)
    kx, kp = jax.random.split(key)
    x = jax.random.normal(kx, (batch, in_channel, spatial, spatial), jnp.float32)
    params = init_params(kp, in_channel, out_channel, kernel_size)

    ref = basic_conv_block_ref(x, params, stride, padding)

    # Exact-arithmetic path (f32 MXU inputs): verifies the folded-tap indexing.
    out_f32 = jax.block_until_ready(
        basic_conv_block(x, params, stride, padding, compute_dtype=jnp.float32))
    assert out_f32.shape == ref.shape == (batch, out_channel, spatial, spatial)
    assert jnp.allclose(out_f32, ref, atol=1e-4, rtol=1e-4), "f32 path mismatch"

    # Default fast path: bf16 MXU operands, f32 accumulation.
    out = jax.block_until_ready(basic_conv_block(x, params, stride, padding))
    assert out.shape == ref.shape
    assert jnp.allclose(out, ref, atol=5e-2, rtol=5e-2), "bf16 path mismatch"

    print("KERNEL_OK")
</pallas_src>

<mosaic_0001>
module attributes {stable_mosaic.version = 11 : i64} {
  func.func @_fused_conv_block_kernel(%arg0: i32, %arg1: memref<1x288x36xf32, #tpu.memory_space<vmem>>, %arg2: memref<36x8xf32, #tpu.memory_space<vmem>>, %arg3: memref<1x8xf32, #tpu.memory_space<vmem>>, %arg4: memref<9x8x8xf32, #tpu.memory_space<vmem>>, %arg5: memref<1x8xf32, #tpu.memory_space<vmem>>, %arg6: memref<1x288x8xf32, #tpu.memory_space<vmem>>, %arg7: memref<328x8xf32, #tpu.memory_space<vmem>>) attributes {dimension_semantics = [#tpu.dimension_semantics<parallel>], iteration_bounds = array<i64: 2>, scalar_prefetch = 0 : i64, scratch_operands = 1 : i64, tpu.core_type = #tpu.core_type<tc>, window_params = [{transform_indices = @transform_0, window_bounds = array<i64: 1, 288, 36>}, {pipeline_mode = #tpu.pipeline_mode<synchronous>, transform_indices = @transform_1, window_bounds = array<i64: 36, 8>}, {pipeline_mode = #tpu.pipeline_mode<synchronous>, transform_indices = @transform_2, window_bounds = array<i64: 1, 8>}, {pipeline_mode = #tpu.pipeline_mode<synchronous>, transform_indices = @transform_3, window_bounds = array<i64: 9, 8, 8>}, {pipeline_mode = #tpu.pipeline_mode<synchronous>, transform_indices = @transform_4, window_bounds = array<i64: 1, 8>}, {transform_indices = @transform_5, window_bounds = array<i64: 1, 288, 8>}]} {
    %cst = arith.constant 0.000000e+00 : f32
    %0 = vector.broadcast %cst : f32 to vector<19x8xf32>
    %c0 = arith.constant 0 : index
    %c0_0 = arith.constant 0 : index
    %1 = vector.load %arg7[%c0, %c0_0] : memref<328x8xf32, #tpu.memory_space<vmem>>, vector<19x8xf32>
    tpu.vector_store %arg7[%c0, %c0_0], %0 {strides = array<i32>} : memref<328x8xf32, #tpu.memory_space<vmem>>, vector<19x8xf32>,
    %cst_1 = arith.constant 0.000000e+00 : f32
    %2 = vector.broadcast %cst_1 : f32 to vector<21x8xf32>
    %c307 = arith.constant 307 : index
    %c0_2 = arith.constant 0 : index
    %3 = vector.load %arg7[%c307, %c0_2] : memref<328x8xf32, #tpu.memory_space<vmem>>, vector<21x8xf32>
    tpu.vector_store %arg7[%c307, %c0_2], %2 {strides = array<i32>} : memref<328x8xf32, #tpu.memory_space<vmem>>, vector<21x8xf32>,
    %4 = tpu.iota {dimensions = array<i32: 0>} : vector<144x1xi32>
    %c18_i32 = arith.constant 18 : i32
    %c0_i32 = arith.constant 0 : i32
    %5 = arith.cmpi eq, %c18_i32, %c0_i32 : i32
    %c1_i32 = arith.constant 1 : i32
    %6 = arith.select %5, %c1_i32, %c18_i32 : i32
    %7 = vector.broadcast %6 : i32 to vector<144x1xi32>
    %8 = arith.remsi %4, %7 : vector<144x1xi32>
    %c0_i32_3 = arith.constant 0 : i32
    %9 = vector.broadcast %c0_i32_3 : i32 to vector<144x1xi32>
    %10 = arith.cmpi ne, %8, %9 : vector<144x1xi32>
    %c0_i32_4 = arith.constant 0 : i32
    %11 = vector.broadcast %c0_i32_4 : i32 to vector<144x1xi32>
    %12 = arith.cmpi slt, %8, %11 : vector<144x1xi32>
    %c0_i32_5 = arith.constant 0 : i32
    %13 = arith.cmpi slt, %6, %c0_i32_5 : i32
    %14 = vector.broadcast %13 : i1 to vector<144x1xi1>
    %15 = vector.broadcast %14 : vector<144x1xi1> to vector<144x1xi1>
    %16 = arith.xori %12, %15 : vector<144x1xi1>
    %17 = arith.andi %16, %10 : vector<144x1xi1>
    %18 = vector.broadcast %6 : i32 to vector<144x1xi32>
    %19 = arith.addi %8, %18 : vector<144x1xi32>
    %20 = arith.select %17, %19, %8 : vector<144x1xi1>, vector<144x1xi32>
    %c16_i32 = arith.constant 16 : i32
    %21 = vector.broadcast %c16_i32 : i32 to vector<144x1xi32>
    %22 = arith.cmpi slt, %20, %21 : vector<144x1xi32>
    %c0_6 = arith.constant 0 : index
    %c0_7 = arith.constant 0 : index
    %23 = vector.load %arg2[%c0_6, %c0_7] : memref<36x8xf32, #tpu.memory_space<vmem>>, vector<36x8xf32>
    %c0_8 = arith.constant 0 : index
    %c0_9 = arith.constant 0 : index
    %24 = vector.load %arg3[%c0_8, %c0_9] : memref<1x8xf32, #tpu.memory_space<vmem>>, vector<1x8xf32>
    %c0_10 = arith.constant 0 : index
    %c0_11 = arith.constant 0 : index
    %25 = vector.load %arg5[%c0_10, %c0_11] : memref<1x8xf32, #tpu.memory_space<vmem>>, vector<1x8xf32>
    %c0_12 = arith.constant 0 : index
    %c0_13 = arith.constant 0 : index
    %c0_14 = arith.constant 0 : index
    %26 = vector.load %arg1[%c0_12, %c0_13, %c0_14] : memref<1x288x36xf32, #tpu.memory_space<vmem>>, vector<1x144x36xf32>
    %27 = vector.shape_cast %26 : vector<1x144x36xf32> to vector<144x36xf32>
    %cst_15 = arith.constant dense<0.000000e+00> : vector<144x8xf32>
    %28 = tpu.matmul %27, %23, %cst_15 {dimension_numbers = #tpu.dot_dimension_numbers<[1], [0], [0], [1], [0, 0, 1, 1], [], []>} : vector<144x36xf32>, vector<36x8xf32>, vector<144x8xf32> -> vector<144x8xf32>
    %29 = vector.broadcast %24 : vector<1x8xf32> to vector<144x8xf32>
    %30 = arith.addf %28, %29 : vector<144x8xf32>
    %cst_16 = arith.constant 0.000000e+00 : f32
    %31 = vector.broadcast %cst_16 : f32 to vector<144x8xf32>
    %32 = arith.maximumf %30, %31 : vector<144x8xf32>
    %cst_17 = arith.constant 0.000000e+00 : f32
    %33 = vector.shape_cast %22 : vector<144x1xi1> to vector<144x1xi1>
    %34 = vector.broadcast %33 : vector<144x1xi1> to vector<144x8xi1>
    %35 = vector.broadcast %cst_17 : f32 to vector<144x8xf32>
    %36 = arith.select %34, %32, %35 : vector<144x8xi1>, vector<144x8xf32>
    %c19 = arith.constant 19 : index
    %c0_18 = arith.constant 0 : index
    %37 = vector.load %arg7[%c19, %c0_18] : memref<328x8xf32, #tpu.memory_space<vmem>>, vector<144x8xf32>
    tpu.vector_store %arg7[%c19, %c0_18], %36 {strides = array<i32>} : memref<328x8xf32, #tpu.memory_space<vmem>>, vector<144x8xf32>,
    %c0_19 = arith.constant 0 : index
    %c144 = arith.constant 144 : index
    %c0_20 = arith.constant 0 : index
    %38 = vector.load %arg1[%c0_19, %c144, %c0_20] : memref<1x288x36xf32, #tpu.memory_space<vmem>>, vector<1x144x36xf32>
    %39 = vector.shape_cast %38 : vector<1x144x36xf32> to vector<144x36xf32>
    %cst_21 = arith.constant dense<0.000000e+00> : vector<144x8xf32>
    %40 = tpu.matmul %39, %23, %cst_21 {dimension_numbers = #tpu.dot_dimension_numbers<[1], [0], [0], [1], [0, 0, 1, 1], [], []>} : vector<144x36xf32>, vector<36x8xf32>, vector<144x8xf32> -> vector<144x8xf32>
    %41 = vector.broadcast %24 : vector<1x8xf32> to vector<144x8xf32>
    %42 = arith.addf %40, %41 : vector<144x8xf32>
    %cst_22 = arith.constant 0.000000e+00 : f32
    %43 = vector.broadcast %cst_22 : f32 to vector<144x8xf32>
    %44 = arith.maximumf %42, %43 : vector<144x8xf32>
    %cst_23 = arith.constant 0.000000e+00 : f32
    %45 = vector.shape_cast %22 : vector<144x1xi1> to vector<144x1xi1>
    %46 = vector.broadcast %45 : vector<144x1xi1> to vector<144x8xi1>
    %47 = vector.broadcast %cst_23 : f32 to vector<144x8xf32>
    %48 = arith.select %46, %44, %47 : vector<144x8xi1>, vector<144x8xf32>
    %c163 = arith.constant 163 : index
    %c0_24 = arith.constant 0 : index
    %49 = vector.load %arg7[%c163, %c0_24] : memref<328x8xf32, #tpu.memory_space<vmem>>, vector<144x8xf32>
    tpu.vector_store %arg7[%c163, %c0_24], %48 {strides = array<i32>} : memref<328x8xf32, #tpu.memory_space<vmem>>, vector<144x8xf32>,
    %50 = vector.shape_cast %25 : vector<1x8xf32> to vector<1x8xf32>
    %51 = vector.broadcast %50 : vector<1x8xf32> to vector<144x8xf32>
    %c0_25 = arith.constant 0 : index
    %c0_26 = arith.constant 0 : index
    %52 = vector.load %arg7[%c0_25, %c0_26] : memref<328x8xf32, #tpu.memory_space<vmem>>, vector<144x8xf32>
    %c0_27 = arith.constant 0 : index
    %c0_28 = arith.constant 0 : index
    %c0_29 = arith.constant 0 : index
    %53 = vector.load %arg4[%c0_27, %c0_28, %c0_29] : memref<9x8x8xf32, #tpu.memory_space<vmem>>, vector<1x8x8xf32>
    %54 = vector.shape_cast %53 : vector<1x8x8xf32> to vector<8x8xf32>
    %cst_30 = arith.constant dense<0.000000e+00> : vector<144x8xf32>
    %55 = tpu.matmul %52, %54, %cst_30 {dimension_numbers = #tpu.dot_dimension_numbers<[1], [0], [0], [1], [0, 0, 1, 1], [], []>} : vector<144x8xf32>, vector<8x8xf32>, vector<144x8xf32> -> vector<144x8xf32>
    %56 = arith.addf %51, %55 : vector<144x8xf32>
    %c1 = arith.constant 1 : index
    %c0_31 = arith.constant 0 : index
    %57 = vector.load %arg7[%c1, %c0_31] : memref<328x8xf32, #tpu.memory_space<vmem>>, vector<144x8xf32>
    %c1_32 = arith.constant 1 : index
    %c0_33 = arith.constant 0 : index
    %c0_34 = arith.constant 0 : index
    %58 = vector.load %arg4[%c1_32, %c0_33, %c0_34] : memref<9x8x8xf32, #tpu.memory_space<vmem>>, vector<1x8x8xf32>
    %59 = vector.shape_cast %58 : vector<1x8x8xf32> to vector<8x8xf32>
    %cst_35 = arith.constant dense<0.000000e+00> : vector<144x8xf32>
    %60 = tpu.matmul %57, %59, %cst_35 {dimension_numbers = #tpu.dot_dimension_numbers<[1], [0], [0], [1], [0, 0, 1, 1], [], []>} : vector<144x8xf32>, vector<8x8xf32>, vector<144x8xf32> -> vector<144x8xf32>
    %61 = arith.addf %56, %60 : vector<144x8xf32>
    %c2 = arith.constant 2 : index
    %c0_36 = arith.constant 0 : index
    %62 = vector.load %arg7[%c2, %c0_36] : memref<328x8xf32, #tpu.memory_space<vmem>>, vector<144x8xf32>
    %c2_37 = arith.constant 2 : index
    %c0_38 = arith.constant 0 : index
    %c0_39 = arith.constant 0 : index
    %63 = vector.load %arg4[%c2_37, %c0_38, %c0_39] : memref<9x8x8xf32, #tpu.memory_space<vmem>>, vector<1x8x8xf32>
    %64 = vector.shape_cast %63 : vector<1x8x8xf32> to vector<8x8xf32>
    %cst_40 = arith.constant dense<0.000000e+00> : vector<144x8xf32>
    %65 = tpu.matmul %62, %64, %cst_40 {dimension_numbers = #tpu.dot_dimension_numbers<[1], [0], [0], [1], [0, 0, 1, 1], [], []>} : vector<144x8xf32>, vector<8x8xf32>, vector<144x8xf32> -> vector<144x8xf32>
    %66 = arith.addf %61, %65 : vector<144x8xf32>
    %c18 = arith.constant 18 : index
    %c0_41 = arith.constant 0 : index
    %67 = vector.load %arg7[%c18, %c0_41] : memref<328x8xf32, #tpu.memory_space<vmem>>, vector<144x8xf32>
    %c3 = arith.constant 3 : index
    %c0_42 = arith.constant 0 : index
    %c0_43 = arith.constant 0 : index
    %68 = vector.load %arg4[%c3, %c0_42, %c0_43] : memref<9x8x8xf32, #tpu.memory_space<vmem>>, vector<1x8x8xf32>
    %69 = vector.shape_cast %68 : vector<1x8x8xf32> to vector<8x8xf32>
    %cst_44 = arith.constant dense<0.000000e+00> : vector<144x8xf32>
    %70 = tpu.matmul %67, %69, %cst_44 {dimension_numbers = #tpu.dot_dimension_numbers<[1], [0], [0], [1], [0, 0, 1, 1], [], []>} : vector<144x8xf32>, vector<8x8xf32>, vector<144x8xf32> -> vector<144x8xf32>
    %71 = arith.addf %66, %70 : vector<144x8xf32>
    %c19_45 = arith.constant 19 : index
    %c0_46 = arith.constant 0 : index
    %72 = vector.load %arg7[%c19_45, %c0_46] : memref<328x8xf32, #tpu.memory_space<vmem>>, vector<144x8xf32>
    %c4 = arith.constant 4 : index
    %c0_47 = arith.constant 0 : index
    %c0_48 = arith.constant 0 : index
    %73 = vector.load %arg4[%c4, %c0_47, %c0_48] : memref<9x8x8xf32, #tpu.memory_space<vmem>>, vector<1x8x8xf32>
    %74 = vector.shape_cast %73 : vector<1x8x8xf32> to vector<8x8xf32>
    %cst_49 = arith.constant dense<0.000000e+00> : vector<144x8xf32>
    %75 = tpu.matmul %72, %74, %cst_49 {dimension_numbers = #tpu.dot_dimension_numbers<[1], [0], [0], [1], [0, 0, 1, 1], [], []>} : vector<144x8xf32>, vector<8x8xf32>, vector<144x8xf32> -> vector<144x8xf32>
    %76 = arith.addf %71, %75 : vector<144x8xf32>
    %c20 = arith.constant 20 : index
    %c0_50 = arith.constant 0 : index
    %77 = vector.load %arg7[%c20, %c0_50] : memref<328x8xf32, #tpu.memory_space<vmem>>, vector<144x8xf32>
    %c5 = arith.constant 5 : index
    %c0_51 = arith.constant 0 : index
    %c0_52 = arith.constant 0 : index
    %78 = vector.load %arg4[%c5, %c0_51, %c0_52] : memref<9x8x8xf32, #tpu.memory_space<vmem>>, vector<1x8x8xf32>
    %79 = vector.shape_cast %78 : vector<1x8x8xf32> to vector<8x8xf32>
    %cst_53 = arith.constant dense<0.000000e+00> : vector<144x8xf32>
    %80 = tpu.matmul %77, %79, %cst_53 {dimension_numbers = #tpu.dot_dimension_numbers<[1], [0], [0], [1], [0, 0, 1, 1], [], []>} : vector<144x8xf32>, vector<8x8xf32>, vector<144x8xf32> -> vector<144x8xf32>
    %81 = arith.addf %76, %80 : vector<144x8xf32>
    %c36 = arith.constant 36 : index
    %c0_54 = arith.constant 0 : index
    %82 = vector.load %arg7[%c36, %c0_54] : memref<328x8xf32, #tpu.memory_space<vmem>>, vector<144x8xf32>
    %c6 = arith.constant 6 : index
    %c0_55 = arith.constant 0 : index
    %c0_56 = arith.constant 0 : index
    %83 = vector.load %arg4[%c6, %c0_55, %c0_56] : memref<9x8x8xf32, #tpu.memory_space<vmem>>, vector<1x8x8xf32>
    %84 = vector.shape_cast %83 : vector<1x8x8xf32> to vector<8x8xf32>
    %cst_57 = arith.constant dense<0.000000e+00> : vector<144x8xf32>
    %85 = tpu.matmul %82, %84, %cst_57 {dimension_numbers = #tpu.dot_dimension_numbers<[1], [0], [0], [1], [0, 0, 1, 1], [], []>} : vector<144x8xf32>, vector<8x8xf32>, vector<144x8xf32> -> vector<144x8xf32>
    %86 = arith.addf %81, %85 : vector<144x8xf32>
    %c37 = arith.constant 37 : index
    %c0_58 = arith.constant 0 : index
    %87 = vector.load %arg7[%c37, %c0_58] : memref<328x8xf32, #tpu.memory_space<vmem>>, vector<144x8xf32>
    %c7 = arith.constant 7 : index
    %c0_59 = arith.constant 0 : index
    %c0_60 = arith.constant 0 : index
    %88 = vector.load %arg4[%c7, %c0_59, %c0_60] : memref<9x8x8xf32, #tpu.memory_space<vmem>>, vector<1x8x8xf32>
    %89 = vector.shape_cast %88 : vector<1x8x8xf32> to vector<8x8xf32>
    %cst_61 = arith.constant dense<0.000000e+00> : vector<144x8xf32>
    %90 = tpu.matmul %87, %89, %cst_61 {dimension_numbers = #tpu.dot_dimension_numbers<[1], [0], [0], [1], [0, 0, 1, 1], [], []>} : vector<144x8xf32>, vector<8x8xf32>, vector<144x8xf32> -> vector<144x8xf32>
    %91 = arith.addf %86, %90 : vector<144x8xf32>
    %c38 = arith.constant 38 : index
    %c0_62 = arith.constant 0 : index
    %92 = vector.load %arg7[%c38, %c0_62] : memref<328x8xf32, #tpu.memory_space<vmem>>, vector<144x8xf32>
    %c8 = arith.constant 8 : index
    %c0_63 = arith.constant 0 : index
    %c0_64 = arith.constant 0 : index
    %93 = vector.load %arg4[%c8, %c0_63, %c0_64] : memref<9x8x8xf32, #tpu.memory_space<vmem>>, vector<1x8x8xf32>
    %94 = vector.shape_cast %93 : vector<1x8x8xf32> to vector<8x8xf32>
    %cst_65 = arith.constant dense<0.000000e+00> : vector<144x8xf32>
    %95 = tpu.matmul %92, %94, %cst_65 {dimension_numbers = #tpu.dot_dimension_numbers<[1], [0], [0], [1], [0, 0, 1, 1], [], []>} : vector<144x8xf32>, vector<8x8xf32>, vector<144x8xf32> -> vector<144x8xf32>
    %96 = arith.addf %91, %95 : vector<144x8xf32>
    %c0_66 = arith.constant 0 : index
    %c0_67 = arith.constant 0 : index
    %c0_68 = arith.constant 0 : index
    %97 = vector.load %arg6[%c0_66, %c0_67, %c0_68] : memref<1x288x8xf32, #tpu.memory_space<vmem>>, vector<1x144x8xf32>
    %98 = vector.shape_cast %97 : vector<1x144x8xf32> to vector<144x8xf32>
    %99 = vector.shape_cast %96 : vector<144x8xf32> to vector<1x144x8xf32>
    tpu.vector_store %arg6[%c0_66, %c0_67, %c0_68], %99 {strides = array<i32>} : memref<1x288x8xf32, #tpu.memory_space<vmem>>, vector<1x144x8xf32>,
    %100 = vector.shape_cast %25 : vector<1x8xf32> to vector<1x8xf32>
    %101 = vector.broadcast %100 : vector<1x8xf32> to vector<144x8xf32>
    %c144_69 = arith.constant 144 : index
    %c0_70 = arith.constant 0 : index
    %102 = vector.load %arg7[%c144_69, %c0_70] : memref<328x8xf32, #tpu.memory_space<vmem>>, vector<144x8xf32>
    %c0_71 = arith.constant 0 : index
    %c0_72 = arith.constant 0 : index
    %c0_73 = arith.constant 0 : index
    %103 = vector.load %arg4[%c0_71, %c0_72, %c0_73] : memref<9x8x8xf32, #tpu.memory_space<vmem>>, vector<1x8x8xf32>
    %104 = vector.shape_cast %103 : vector<1x8x8xf32> to vector<8x8xf32>
    %cst_74 = arith.constant dense<0.000000e+00> : vector<144x8xf32>
    %105 = tpu.matmul %102, %104, %cst_74 {dimension_numbers = #tpu.dot_dimension_numbers<[1], [0], [0], [1], [0, 0, 1, 1], [], []>} : vector<144x8xf32>, vector<8x8xf32>, vector<144x8xf32> -> vector<144x8xf32>
    %106 = arith.addf %101, %105 : vector<144x8xf32>
    %c145 = arith.constant 145 : index
    %c0_75 = arith.constant 0 : index
    %107 = vector.load %arg7[%c145, %c0_75] : memref<328x8xf32, #tpu.memory_space<vmem>>, vector<144x8xf32>
    %c1_76 = arith.constant 1 : index
    %c0_77 = arith.constant 0 : index
    %c0_78 = arith.constant 0 : index
    %108 = vector.load %arg4[%c1_76, %c0_77, %c0_78] : memref<9x8x8xf32, #tpu.memory_space<vmem>>, vector<1x8x8xf32>
    %109 = vector.shape_cast %108 : vector<1x8x8xf32> to vector<8x8xf32>
    %cst_79 = arith.constant dense<0.000000e+00> : vector<144x8xf32>
    %110 = tpu.matmul %107, %109, %cst_79 {dimension_numbers = #tpu.dot_dimension_numbers<[1], [0], [0], [1], [0, 0, 1, 1], [], []>} : vector<144x8xf32>, vector<8x8xf32>, vector<144x8xf32> -> vector<144x8xf32>
    %111 = arith.addf %106, %110 : vector<144x8xf32>
    %c146 = arith.constant 146 : index
    %c0_80 = arith.constant 0 : index
    %112 = vector.load %arg7[%c146, %c0_80] : memref<328x8xf32, #tpu.memory_space<vmem>>, vector<144x8xf32>
    %c2_81 = arith.constant 2 : index
    %c0_82 = arith.constant 0 : index
    %c0_83 = arith.constant 0 : index
    %113 = vector.load %arg4[%c2_81, %c0_82, %c0_83] : memref<9x8x8xf32, #tpu.memory_space<vmem>>, vector<1x8x8xf32>
    %114 = vector.shape_cast %113 : vector<1x8x8xf32> to vector<8x8xf32>
    %cst_84 = arith.constant dense<0.000000e+00> : vector<144x8xf32>
    %115 = tpu.matmul %112, %114, %cst_84 {dimension_numbers = #tpu.dot_dimension_numbers<[1], [0], [0], [1], [0, 0, 1, 1], [], []>} : vector<144x8xf32>, vector<8x8xf32>, vector<144x8xf32> -> vector<144x8xf32>
    %116 = arith.addf %111, %115 : vector<144x8xf32>
    %c162 = arith.constant 162 : index
    %c0_85 = arith.constant 0 : index
    %117 = vector.load %arg7[%c162, %c0_85] : memref<328x8xf32, #tpu.memory_space<vmem>>, vector<144x8xf32>
    %c3_86 = arith.constant 3 : index
    %c0_87 = arith.constant 0 : index
    %c0_88 = arith.constant 0 : index
    %118 = vector.load %arg4[%c3_86, %c0_87, %c0_88] : memref<9x8x8xf32, #tpu.memory_space<vmem>>, vector<1x8x8xf32>
    %119 = vector.shape_cast %118 : vector<1x8x8xf32> to vector<8x8xf32>
    %cst_89 = arith.constant dense<0.000000e+00> : vector<144x8xf32>
    %120 = tpu.matmul %117, %119, %cst_89 {dimension_numbers = #tpu.dot_dimension_numbers<[1], [0], [0], [1], [0, 0, 1, 1], [], []>} : vector<144x8xf32>, vector<8x8xf32>, vector<144x8xf32> -> vector<144x8xf32>
    %121 = arith.addf %116, %120 : vector<144x8xf32>
    %c163_90 = arith.constant 163 : index
    %c0_91 = arith.constant 0 : index
    %122 = vector.load %arg7[%c163_90, %c0_91] : memref<328x8xf32, #tpu.memory_space<vmem>>, vector<144x8xf32>
    %c4_92 = arith.constant 4 : index
    %c0_93 = arith.constant 0 : index
    %c0_94 = arith.constant 0 : index
    %123 = vector.load %arg4[%c4_92, %c0_93, %c0_94] : memref<9x8x8xf32, #tpu.memory_space<vmem>>, vector<1x8x8xf32>
    %124 = vector.shape_cast %123 : vector<1x8x8xf32> to vector<8x8xf32>
    %cst_95 = arith.constant dense<0.000000e+00> : vector<144x8xf32>
    %125 = tpu.matmul %122, %124, %cst_95 {dimension_numbers = #tpu.dot_dimension_numbers<[1], [0], [0], [1], [0, 0, 1, 1], [], []>} : vector<144x8xf32>, vector<8x8xf32>, vector<144x8xf32> -> vector<144x8xf32>
    %126 = arith.addf %121, %125 : vector<144x8xf32>
    %c164 = arith.constant 164 : index
    %c0_96 = arith.constant 0 : index
    %127 = vector.load %arg7[%c164, %c0_96] : memref<328x8xf32, #tpu.memory_space<vmem>>, vector<144x8xf32>
    %c5_97 = arith.constant 5 : index
    %c0_98 = arith.constant 0 : index
    %c0_99 = arith.constant 0 : index
    %128 = vector.load %arg4[%c5_97, %c0_98, %c0_99] : memref<9x8x8xf32, #tpu.memory_space<vmem>>, vector<1x8x8xf32>
    %129 = vector.shape_cast %128 : vector<1x8x8xf32> to vector<8x8xf32>
    %cst_100 = arith.constant dense<0.000000e+00> : vector<144x8xf32>
    %130 = tpu.matmul %127, %129, %cst_100 {dimension_numbers = #tpu.dot_dimension_numbers<[1], [0], [0], [1], [0, 0, 1, 1], [], []>} : vector<144x8xf32>, vector<8x8xf32>, vector<144x8xf32> -> vector<144x8xf32>
    %131 = arith.addf %126, %130 : vector<144x8xf32>
    %c180 = arith.constant 180 : index
    %c0_101 = arith.constant 0 : index
    %132 = vector.load %arg7[%c180, %c0_101] : memref<328x8xf32, #tpu.memory_space<vmem>>, vector<144x8xf32>
    %c6_102 = arith.constant 6 : index
    %c0_103 = arith.constant 0 : index
    %c0_104 = arith.constant 0 : index
    %133 = vector.load %arg4[%c6_102, %c0_103, %c0_104] : memref<9x8x8xf32, #tpu.memory_space<vmem>>, vector<1x8x8xf32>
    %134 = vector.shape_cast %133 : vector<1x8x8xf32> to vector<8x8xf32>
    %cst_105 = arith.constant dense<0.000000e+00> : vector<144x8xf32>
    %135 = tpu.matmul %132, %134, %cst_105 {dimension_numbers = #tpu.dot_dimension_numbers<[1], [0], [0], [1], [0, 0, 1, 1], [], []>} : vector<144x8xf32>, vector<8x8xf32>, vector<144x8xf32> -> vector<144x8xf32>
    %136 = arith.addf %131, %135 : vector<144x8xf32>
    %c181 = arith.constant 181 : index
    %c0_106 = arith.constant 0 : index
    %137 = vector.load %arg7[%c181, %c0_106] : memref<328x8xf32, #tpu.memory_space<vmem>>, vector<144x8xf32>
    %c7_107 = arith.constant 7 : index
    %c0_108 = arith.constant 0 : index
    %c0_109 = arith.constant 0 : index
    %138 = vector.load %arg4[%c7_107, %c0_108, %c0_109] : memref<9x8x8xf32, #tpu.memory_space<vmem>>, vector<1x8x8xf32>
    %139 = vector.shape_cast %138 : vector<1x8x8xf32> to vector<8x8xf32>
    %cst_110 = arith.constant dense<0.000000e+00> : vector<144x8xf32>
    %140 = tpu.matmul %137, %139, %cst_110 {dimension_numbers = #tpu.dot_dimension_numbers<[1], [0], [0], [1], [0, 0, 1, 1], [], []>} : vector<144x8xf32>, vector<8x8xf32>, vector<144x8xf32> -> vector<144x8xf32>
    %141 = arith.addf %136, %140 : vector<144x8xf32>
    %c182 = arith.constant 182 : index
    %c0_111 = arith.constant 0 : index
    %142 = vector.load %arg7[%c182, %c0_111] : memref<328x8xf32, #tpu.memory_space<vmem>>, vector<144x8xf32>
    %c8_112 = arith.constant 8 : index
    %c0_113 = arith.constant 0 : index
    %c0_114 = arith.constant 0 : index
    %143 = vector.load %arg4[%c8_112, %c0_113, %c0_114] : memref<9x8x8xf32, #tpu.memory_space<vmem>>, vector<1x8x8xf32>
    %144 = vector.shape_cast %143 : vector<1x8x8xf32> to vector<8x8xf32>
    %cst_115 = arith.constant dense<0.000000e+00> : vector<144x8xf32>
    %145 = tpu.matmul %142, %144, %cst_115 {dimension_numbers = #tpu.dot_dimension_numbers<[1], [0], [0], [1], [0, 0, 1, 1], [], []>} : vector<144x8xf32>, vector<8x8xf32>, vector<144x8xf32> -> vector<144x8xf32>
    %146 = arith.addf %141, %145 : vector<144x8xf32>
    %c0_116 = arith.constant 0 : index
    %c144_117 = arith.constant 144 : index
    %c0_118 = arith.constant 0 : index
    %147 = vector.load %arg6[%c0_116, %c144_117, %c0_118] : memref<1x288x8xf32, #tpu.memory_space<vmem>>, vector<1x144x8xf32>
    %148 = vector.shape_cast %147 : vector<1x144x8xf32> to vector<144x8xf32>
    %149 = vector.shape_cast %146 : vector<144x8xf32> to vector<1x144x8xf32>
    tpu.vector_store %arg6[%c0_116, %c144_117, %c0_118], %149 {strides = array<i32>} : memref<1x288x8xf32, #tpu.memory_space<vmem>>, vector<1x144x8xf32>,
    return
  }
  func.func @transform_0(%arg0: i32) -> (i32, i32, i32) {
    %c0_i32 = arith.constant 0 : i32
    %c0_i32_0 = arith.constant 0 : i32
    %c0_i32_1 = arith.constant 0 : i32
    return %arg0, %c0_i32, %c0_i32_0 : i32, i32, i32
  }
  func.func @transform_1(%arg0: i32) -> (i32, i32) {
    %c0_i32 = arith.constant 0 : i32
    %c0_i32_0 = arith.constant 0 : i32
    %c0_i32_1 = arith.constant 0 : i32
    return %c0_i32, %c0_i32_0 : i32, i32
  }
  func.func @transform_2(%arg0: i32) -> (i32, i32) {
    %c0_i32 = arith.constant 0 : i32
    %c0_i32_0 = arith.constant 0 : i32
    %c0_i32_1 = arith.constant 0 : i32
    return %c0_i32, %c0_i32_0 : i32, i32
  }
  func.func @transform_3(%arg0: i32) -> (i32, i32, i32) {
    %c0_i32 = arith.constant 0 : i32
    %c0_i32_0 = arith.constant 0 : i32
    %c0_i32_1 = arith.constant 0 : i32
    %c0_i32_2 = arith.constant 0 : i32
    return %c0_i32, %c0_i32_0, %c0_i32_1 : i32, i32, i32
  }
  func.func @transform_4(%arg0: i32) -> (i32, i32) {
    %c0_i32 = arith.constant 0 : i32
    %c0_i32_0 = arith.constant 0 : i32
    %c0_i32_1 = arith.constant 0 : i32
    return %c0_i32, %c0_i32_0 : i32, i32
  }
  func.func @transform_5(%arg0: i32) -> (i32, i32, i32) {
    %c0_i32 = arith.constant 0 : i32
    %c0_i32_0 = arith.constant 0 : i32
    %c0_i32_1 = arith.constant 0 : i32
    return %arg0, %c0_i32, %c0_i32_0 : i32, i32, i32
  }
}

</mosaic_0001>

<llo_original>
// kernel: tpu_custom_call.1
$region0: #{tpu_custom_call.1}
  #allocation0 [shape = 'u32[]', space=smem, size = 0x4, offset = 0x4, fixed_abs, tag = 'smem constant byte address 0x4 - core index']
  #allocation1 [shape = 'u32[144,128]{1,0:T(1,128)}', space=vmem, size = 0x12000, scoped, tag = 'internal scratch']
  #allocation2 [shape = 'f32[328,8]{1,0:T(8,128)}', space=vmem, size = 0x29000, scoped, tag = 'scratch operand']
  %s0 = inlined_call_operand.vmem [shape: f32[2,288,36], index: 0, kind: input, shape index: {}]
  %s1 = inlined_call_operand.vmem [shape: f32[36,8], index: 1, kind: input, shape index: {}]
  %s2 = inlined_call_operand.vmem [shape: f32[1,8], index: 2, kind: input, shape index: {}]
  %s3 = inlined_call_operand.vmem [shape: f32[9,8,8], index: 3, kind: input, shape index: {}]
  %s4 = inlined_call_operand.vmem [shape: f32[1,8], index: 4, kind: input, shape index: {}]
  %s5 = inlined_call_operand.vmem [shape: f32[2,288,8], index: 5, kind: output, shape index: {}]
  %s6 = sld [smem:[#allocation0]]
  $region53: #{tpu_custom_call.1} parent=0
    _
  %s8 = ssub.s32 1, %s6
  %s9 = scalar_select 0, %s8, %s6
  loop: start=0, step=1, limit=4
  $region2: #{tpu_custom_call.1} parent=0 // loop_pre_header
    _
  $region3: #{tpu_custom_call.1} parent=0 // loop_header
    %s11 = sphi 0, %s15
    %p12 = scmp.ge.s32.totalorder %s11, 4
    %s21 = sphi 0, %s23
    %s24 = sphi 0, %s21
    %s25 = sphi 0, %s24
    %s41 = sphi 0, %s25
    %s45 = sphi 0, %s45
    %s47 = sphi 0, %s45
    %s48 = sphi 0, %s47
    %s62 = sphi 0, %s48
    %s66 = sphi 0, %s66
    %s68 = sphi 0, %s66
    %s69 = sphi 0, %s68
    %s83 = sphi 0, %s69
    %s87 = sphi 0, %s87
    %s89 = sphi 0, %s87
    %s90 = sphi 0, %s89
    %s104 = sphi 0, %s90
    %s108 = sphi 0, %s108
    %s110 = sphi 0, %s108
    %s111 = sphi 0, %s110
    %s125 = sphi 0, %s111
    %s131 = sphi 0, %s133
    %s134 = sphi 0, %s131
    %s135 = sphi 0, %s134
    %s151 = sphi 0, %s135
  $region4: #{tpu_custom_call.1} parent=0 // loop_header_branch
    %14 = sbr.rel (%p12) target = $region8
  $region5: #{tpu_custom_call.1} parent=0 // loop_body
    %s16 = ssub.s32 %s11, 1
    %s17 = ssub.s32 %s11, 2
    %s18 = sadd.s32 %s11, 1
    %s19 = ssub.s32 %s11, %s18
    %p20 = scmp.eq.s32.totalorder %s19, 0
    %s22 = sadd.s32 %s21, 1
    %s23 = scalar_select %p20, %s21, %s22
    %p26 = pneg %p20
    %p27 = scmp.eq.s32.totalorder %s11, 1
    %p28 = por %p26, %p27
    %p29 = scmp.ne.s32.totalorder %s21, %s24
    %p30 = scmp.eq.s32.totalorder %s11, 0
    %p31 = por %p29, %p30
    %p32 = scmp.ne.s32.totalorder %s21, %s24
    %p33 = scmp.eq.s32.totalorder %s16, 1
    %p34 = por %p32, %p33
    %p35 = scmp.ne.s32.totalorder %s24, %s25
    %p36 = scmp.eq.s32.totalorder %s16, 0
    %p37 = por %p35, %p36
    %p38 = scmp.ne.s32.totalorder %s24, %s25
    %p39 = scmp.eq.s32.totalorder %s17, 1
    %p40 = por %p38, %p39
    %p42 = scmp.ne.s32.totalorder %s25, %s41
    %p43 = scmp.eq.s32.totalorder %s17, 0
    %p44 = por %p42, %p43
    %s46 = sadd.s32 %s45, 1
    %p49 = scmp.eq.s32.totalorder %s11, 1
    %p50 = scmp.ne.s32.totalorder %s45, %s47
    %p51 = scmp.eq.s32.totalorder %s11, 0
    %p52 = por %p50, %p51
    %p53 = scmp.ne.s32.totalorder %s45, %s47
    %p54 = scmp.eq.s32.totalorder %s16, 1
    %p55 = por %p53, %p54
    %p56 = scmp.ne.s32.totalorder %s47, %s48
    %p57 = scmp.eq.s32.totalorder %s16, 0
    %p58 = por %p56, %p57
    %p59 = scmp.ne.s32.totalorder %s47, %s48
    %p60 = scmp.eq.s32.totalorder %s17, 1
    %p61 = por %p59, %p60
    %p63 = scmp.ne.s32.totalorder %s48, %s62
    %p64 = scmp.eq.s32.totalorder %s17, 0
    %p65 = por %p63, %p64
    %s67 = sadd.s32 %s66, 1
    %p70 = scmp.eq.s32.totalorder %s11, 1
    %p71 = scmp.ne.s32.totalorder %s66, %s68
    %p72 = scmp.eq.s32.totalorder %s11, 0
    %p73 = por %p71, %p72
    %p74 = scmp.ne.s32.totalorder %s66, %s68
    %p75 = scmp.eq.s32.totalorder %s16, 1
    %p76 = por %p74, %p75
    %p77 = scmp.ne.s32.totalorder %s68, %s69
    %p78 = scmp.eq.s32.totalorder %s16, 0
    %p79 = por %p77, %p78
    %p80 = scmp.ne.s32.totalorder %s68, %s69
    %p81 = scmp.eq.s32.totalorder %s17, 1
    %p82 = por %p80, %p81
    %p84 = scmp.ne.s32.totalorder %s69, %s83
    %p85 = scmp.eq.s32.totalorder %s17, 0
    %p86 = por %p84, %p85
    %s88 = sadd.s32 %s87, 1
    %p91 = scmp.eq.s32.totalorder %s11, 1
    %p92 = scmp.ne.s32.totalorder %s87, %s89
    %p93 = scmp.eq.s32.totalorder %s11, 0
    %p94 = por %p92, %p93
    %p95 = scmp.ne.s32.totalorder %s87, %s89
    %p96 = scmp.eq.s32.totalorder %s16, 1
    %p97 = por %p95, %p96
    %p98 = scmp.ne.s32.totalorder %s89, %s90
    %p99 = scmp.eq.s32.totalorder %s16, 0
    %p100 = por %p98, %p99
    %p101 = scmp.ne.s32.totalorder %s89, %s90
    %p102 = scmp.eq.s32.totalorder %s17, 1
    %p103 = por %p101, %p102
    %p105 = scmp.ne.s32.totalorder %s90, %s104
    %p106 = scmp.eq.s32.totalorder %s17, 0
    %p107 = por %p105, %p106
    %s109 = sadd.s32 %s108, 1
    %p112 = scmp.eq.s32.totalorder %s11, 1
    %p113 = scmp.ne.s32.totalorder %s108, %s110
    %p114 = scmp.eq.s32.totalorder %s11, 0
    %p115 = por %p113, %p114
    %p116 = scmp.ne.s32.totalorder %s108, %s110
    %p117 = scmp.eq.s32.totalorder %s16, 1
    %p118 = por %p116, %p117
    %p119 = scmp.ne.s32.totalorder %s110, %s111
    %p120 = scmp.eq.s32.totalorder %s16, 0
    %p121 = por %p119, %p120
    %p122 = scmp.ne.s32.totalorder %s110, %s111
    %p123 = scmp.eq.s32.totalorder %s17, 1
    %p124 = por %p122, %p123
    %p126 = scmp.ne.s32.totalorder %s111, %s125
    %p127 = scmp.eq.s32.totalorder %s17, 0
    %p128 = por %p126, %p127
    %s129 = ssub.s32 %s11, %s18
    %p130 = scmp.eq.s32.totalorder %s129, 0
    %s132 = sadd.s32 %s131, 1
    %s133 = scalar_select %p130, %s131, %s132
    %p136 = pneg %p130
    %p137 = scmp.eq.s32.totalorder %s11, 1
    %p138 = por %p136, %p137
    %p139 = scmp.ne.s32.totalorder %s131, %s134
    %p140 = scmp.eq.s32.totalorder %s11, 0
    %p141 = por %p139, %p140
    %p142 = scmp.ne.s32.totalorder %s131, %s134
    %p143 = scmp.eq.s32.totalorder %s16, 1
    %p144 = por %p142, %p143
    %p145 = scmp.ne.s32.totalorder %s134, %s135
    %p146 = scmp.eq.s32.totalorder %s16, 0
    %p147 = por %p145, %p146
    %p148 = scmp.ne.s32.totalorder %s134, %s135
    %p149 = scmp.eq.s32.totalorder %s17, 1
    %p150 = por %p148, %p149
    %p152 = scmp.ne.s32.totalorder %s135, %s151
    %p153 = scmp.eq.s32.totalorder %s17, 0
    %p154 = por %p152, %p153
    %p155 = scmp.le.s32.totalorder 1, %s11
    %p156 = scmp.lt.s32.totalorder %s11, 3
    %p157 = pnand %p155, %p156
    %p158 = pneg %p157
    // Predicated region
    $region9: #{tpu_custom_call.1} parent=5 // pred_check
      _
    $region10: #{tpu_custom_call.1} parent=5 // pred_check_branch
      %160 = sbr.rel (%p157) target = $region12
    $region11: #{tpu_custom_call.1} parent=5 // pred_region
      %s161 = ssub.s32 %s11, 1
      // Predicated region
      $region13: #{tpu_custom_call.1} parent=11 // pred_check
        %p162 = pneg %p58
      $region14: #{tpu_custom_call.1} parent=11 // pred_check_branch
        %164 = sbr.rel (%p162) target = $region16
      $region15: #{tpu_custom_call.1} parent=11 // pred_region
        _
      $region16: #{tpu_custom_call.1} parent=11 // pred_fallthru
        _
      // Predicated region
      $region17: #{tpu_custom_call.1} parent=11 // pred_check
        %p165 = pneg %p79
      $region18: #{tpu_custom_call.1} parent=11 // pred_check_branch
        %167 = sbr.rel (%p165) target = $region20
      $region19: #{tpu_custom_call.1} parent=11 // pred_region
        _
      $region20: #{tpu_custom_call.1} parent=11 // pred_fallthru
        _
      // Predicated region
      $region21: #{tpu_custom_call.1} parent=11 // pred_check
        %p168 = pneg %p100
      $region22: #{tpu_custom_call.1} parent=11 // pred_check_branch
        %170 = sbr.rel (%p168) target = $region24
      $region23: #{tpu_custom_call.1} parent=11 // pred_region
        _
      $region24: #{tpu_custom_call.1} parent=11 // pred_fallthru
        _
      // Predicated region
      $region25: #{tpu_custom_call.1} parent=11 // pred_check
        %p171 = pneg %p121
      $region26: #{tpu_custom_call.1} parent=11 // pred_check_branch
        %173 = sbr.rel (%p171) target = $region28
      $region27: #{tpu_custom_call.1} parent=11 // pred_region
        _
      $region28: #{tpu_custom_call.1} parent=11 // pred_fallthru
        _
    $region12: #{tpu_custom_call.1} parent=5 // pred_fallthru
      _
    %p174 = scmp.lt.s32.totalorder %s11, 2
    // Predicated region
    $region29: #{tpu_custom_call.1} parent=5 // pred_check
      %p175 = pneg %p174
    $region30: #{tpu_custom_call.1} parent=5 // pred_check_branch
      %177 = sbr.rel (%p175) target = $region32
    $region31: #{tpu_custom_call.1} parent=5 // pred_region
      // Predicated region
      $region33: #{tpu_custom_call.1} parent=31 // pred_check
        %p178 = pneg %p31
      $region34: #{tpu_custom_call.1} parent=31 // pred_check_branch
        %180 = sbr.rel (%p178) target = $region36
      $region35: #{tpu_custom_call.1} parent=31 // pred_region
        %p181 = scmp.lt.s32.totalorder %s11, 1
        %s182 = scalar_select %p181, %s11, 1
        %s183 = smul.addr %s182, 36
        %s184 = smul.addr %s183, 8
        %s185 = scalar_lea.vmem %s0, %s184
      $region36: #{tpu_custom_call.1} parent=31 // pred_fallthru
        _
    $region32: #{tpu_custom_call.1} parent=5 // pred_fallthru
      _
    %p186 = scmp.le.s32.totalorder 1, %s11
    %p187 = scmp.lt.s32.totalorder %s11, 3
    %p188 = pnand %p186, %p187
    %p189 = pneg %p188
    // Predicated region
    $region37: #{tpu_custom_call.1} parent=5 // pred_check
      _
    $region38: #{tpu_custom_call.1} parent=5 // pred_check_branch
      %191 = sbr.rel (%p188) target = $region40
    $region39: #{tpu_custom_call.1} parent=5 // pred_region
      %s192 = ssub.s32 %s11, 1
      %p193 = scmp.lt.s32.totalorder %s16, 1
      %s194 = scalar_select %p193, %s16, 1
      %s195 = smul.addr %s194, 36
      %s196 = smul.addr %s195, 8
      %s197 = scalar_lea.vmem %s0, %s196
      %p198 = pneg %p37
      %p199 = pneg %p34
      %p200 = pneg %p58
      %p201 = pneg %p55
      %p202 = pneg %p79
      %p203 = pneg %p76
      %p204 = pneg %p100
      %p205 = pneg %p97
      %p206 = pneg %p121
      %p207 = pneg %p118
      %p208 = pneg %p147
      %p209 = pneg %p144
      %p210 = scmp.lt.s32.totalorder %s16, 1
      %s211 = scalar_select %p210, %s16, 1
      %s212 = smul.addr %s211, 36
      %s213 = smul.addr %s212, 8
      %s214 = scalar_lea.vmem %s5, %s213
      %p215 = scmp.lt.s32.totalorder %s16, 1
      %s216 = scalar_select %p215, %s16, 1
      %s217 = smul.addr %s216, 36
      %s218 = smul.addr %s217, 8
      %s219 = scalar_lea.vmem %s0, %s218
      %p220 = scmp.lt.s32.totalorder %s16, 1
      %s221 = scalar_select %p220, %s16, 1
      %s222 = smul.addr %s221, 36
      %s223 = smul.addr %s222, 8
      %s224 = scalar_lea.vmem %s5, %s223
      %vm225 = vcmask 64512
      %226 = vst.msk [vmem:[#allocation2] sm:$0xff] %vm225, 0.0
      %227 = vst.msk [vmem:[#allocation2 + $0x8] sm:$0xff] %vm225, 0.0
      %vm228 = vcmask 59392
      %229 = vst.msk [vmem:[#allocation2 + $0x10] sm:$0x7] %vm228, 0.0
      %230 = vst.msk [vmem:[#allocation2 + $0x133] sm:$0xff] %vm225, 0.0
      %231 = vst.msk [vmem:[#allocation2 + $0x13b] sm:$0xff] %vm225, 0.0
      %vm232 = vcmask 61440
      %233 = vst.msk [vmem:[#allocation2 + $0x143] sm:$0x1f] %vm232, 0.0
      %v234 = vlaneseq
      %v235 = vshrl.u32 %v234, 7
      %v236 = vadd.s32 %v235, 8
      %v237 = vadd.s32 %v235, 16
      %v238 = vadd.s32 %v235, 24
      %v239 = vadd.s32 %v235, 32
      %v240 = vadd.s32 %v235, 40
      %v241 = vadd.s32 %v235, 48
      %v242 = vadd.s32 %v235, 56
      %v243 = vadd.s32 %v235, 64
      %v244 = vadd.s32 %v235, 72
      %v245 = vadd.s32 %v235, 80
      %v246 = vadd.s32 %v235, 88
      %v247 = vadd.s32 %v235, 96
      %v248 = vadd.s32 %v235, 104
      %v249 = vadd.s32 %v235, 112
      %v250 = vadd.s32 %v235, 120
      %v251 = vadd.s32 %v235, 128
      %v252 = vadd.s32 %v235, 136
      %vm253 = vcmp.lt.s32.totalorder %v235, 0
      %v254 = vsub.s32 0, %v235
      %v255 = vsel %vm253, %v254, %v235
      %v256 = vmul.u32.u64.compose %v255, 3817748708
      %v257 = vextract.low.u32 %v256
      %v258 = vextract.high.u32 %v256
      %v259 = vshrl.u32 %v258, 4
      %v260 = vmul.u32 %v259, 18
      %v261 = vsub.s32 %v255, %v260
      %v262 = vsub.s32 0, %v261
      %v263 = vsel %vm253, %v262, %v261
      %vm264 = vcmp.lt.s32.totalorder %v236, 0
      %v265 = vsub.s32 0, %v236
      %v266 = vsel %vm264, %v265, %v236
      %v267 = vmul.u32.u64.compose %v266, 3817748708
      %v268 = vextract.low.u32 %v267
      %v269 = vextract.high.u32 %v267
      %v270 = vshrl.u32 %v269, 4
      %v271 = vmul.u32 %v270, 18
      %v272 = vsub.s32 %v266, %v271
      %v273 = vsub.s32 0, %v272
      %v274 = vsel %vm264, %v273, %v272
      %vm275 = vcmp.lt.s32.totalorder %v237, 0
      %v276 = vsub.s32 0, %v237
      %v277 = vsel %vm275, %v276, %v237
      %v278 = vmul.u32.u64.compose %v277, 3817748708
      %v279 = vextract.low.u32 %v278
      %v280 = vextract.high.u32 %v278
      %v281 = vshrl.u32 %v280, 4
      %v282 = vmul.u32 %v281, 18
      %v283 = vsub.s32 %v277, %v282
      %v284 = vsub.s32 0, %v283
      %v285 = vsel %vm275, %v284, %v283
      %vm286 = vcmp.lt.s32.totalorder %v238, 0
      %v287 = vsub.s32 0, %v238
      %v288 = vsel %vm286, %v287, %v238
      %v289 = vmul.u32.u64.compose %v288, 3817748708
      %v290 = vextract.low.u32 %v289
      %v291 = vextract.high.u32 %v289
      %v292 = vshrl.u32 %v291, 4
      %v293 = vmul.u32 %v292, 18
      %v294 = vsub.s32 %v288, %v293
      %v295 = vsub.s32 0, %v294
      %v296 = vsel %vm286, %v295, %v294
      %vm297 = vcmp.lt.s32.totalorder %v239, 0
      %v298 = vsub.s32 0, %v239
      %v299 = vsel %vm297, %v298, %v239
      %v300 = vmul.u32.u64.compose %v299, 3817748708
      %v301 = vextract.low.u32 %v300
      %v302 = vextract.high.u32 %v300
      %v303 = vshrl.u32 %v302, 4
      %v304 = vmul.u32 %v303, 18
      %v305 = vsub.s32 %v299, %v304
      %v306 = vsub.s32 0, %v305
      %v307 = vsel %vm297, %v306, %v305
      %vm308 = vcmp.lt.s32.totalorder %v240, 0
      %v309 = vsub.s32 0, %v240
      %v310 = vsel %vm308, %v309, %v240
      %v311 = vmul.u32.u64.compose %v310, 3817748708
      %v312 = vextract.low.u32 %v311
      %v313 = vextract.high.u32 %v311
      %v314 = vshrl.u32 %v313, 4
      %v315 = vmul.u32 %v314, 18
      %v316 = vsub.s32 %v310, %v315
      %v317 = vsub.s32 0, %v316
      %v318 = vsel %vm308, %v317, %v316
      %vm319 = vcmp.lt.s32.totalorder %v241, 0
      %v320 = vsub.s32 0, %v241
      %v321 = vsel %vm319, %v320, %v241
      %v322 = vmul.u32.u64.compose %v321, 3817748708
      %v323 = vextract.low.u32 %v322
      %v324 = vextract.high.u32 %v322
      %v325 = vshrl.u32 %v324, 4
      %v326 = vmul.u32 %v325, 18
      %v327 = vsub.s32 %v321, %v326
      %v328 = vsub.s32 0, %v327
      %v329 = vsel %vm319, %v328, %v327
      %vm330 = vcmp.lt.s32.totalorder %v242, 0
      %v331 = vsub.s32 0, %v242
      %v332 = vsel %vm330, %v331, %v242
      %v333 = vmul.u32.u64.compose %v332, 3817748708
      %v334 = vextract.low.u32 %v333
      %v335 = vextract.high.u32 %v333
      %v336 = vshrl.u32 %v335, 4
      %v337 = vmul.u32 %v336, 18
      %v338 = vsub.s32 %v332, %v337
      %v339 = vsub.s32 0, %v338
      %v340 = vsel %vm330, %v339, %v338
      %vm341 = vcmp.lt.s32.totalorder %v243, 0
      %v342 = vsub.s32 0, %v243
      %v343 = vsel %vm341, %v342, %v243
      %v344 = vmul.u32.u64.compose %v343, 3817748708
      %v345 = vextract.low.u32 %v344
      %v346 = vextract.high.u32 %v344
      %v347 = vshrl.u32 %v346, 4
      %v348 = vmul.u32 %v347, 18
      %v349 = vsub.s32 %v343, %v348
      %v350 = vsub.s32 0, %v349
      %v351 = vsel %vm341, %v350, %v349
      %vm352 = vcmp.lt.s32.totalorder %v244, 0
      %v353 = vsub.s32 0, %v244
      %v354 = vsel %vm352, %v353, %v244
      %v355 = vmul.u32.u64.compose %v354, 3817748708
      %v356 = vextract.low.u32 %v355
      %v357 = vextract.high.u32 %v355
      %v358 = vshrl.u32 %v357, 4
      %v359 = vmul.u32 %v358, 18
      %v360 = vsub.s32 %v354, %v359
      %v361 = vsub.s32 0, %v360
      %v362 = vsel %vm352, %v361, %v360
      %vm363 = vcmp.lt.s32.totalorder %v245, 0
      %v364 = vsub.s32 0, %v245
      %v365 = vsel %vm363, %v364, %v245
      %v366 = vmul.u32.u64.compose %v365, 3817748708
      %v367 = vextract.low.u32 %v366
      %v368 = vextract.high.u32 %v366
      %v369 = vshrl.u32 %v368, 4
      %v370 = vmul.u32 %v369, 18
      %v371 = vsub.s32 %v365, %v370
      %v372 = vsub.s32 0, %v371
      %v373 = vsel %vm363, %v372, %v371
      %vm374 = vcmp.lt.s32.totalorder %v246, 0
      %v375 = vsub.s32 0, %v246
      %v376 = vsel %vm374, %v375, %v246
      %v377 = vmul.u32.u64.compose %v376, 3817748708
      %v378 = vextract.low.u32 %v377
      %v379 = vextract.high.u32 %v377
      %v380 = vshrl.u32 %v379, 4
      %v381 = vmul.u32 %v380, 18
      %v382 = vsub.s32 %v376, %v381
      %v383 = vsub.s32 0, %v382
      %v384 = vsel %vm374, %v383, %v382
      %vm385 = vcmp.lt.s32.totalorder %v247, 0
      %v386 = vsub.s32 0, %v247
      %v387 = vsel %vm385, %v386, %v247
      %v388 = vmul.u32.u64.compose %v387, 3817748708
      %v389 = vextract.low.u32 %v388
      %v390 = vextract.high.u32 %v388
      %v391 = vshrl.u32 %v390, 4
      %v392 = vmul.u32 %v391, 18
      %v393 = vsub.s32 %v387, %v392
      %v394 = vsub.s32 0, %v393
      %v395 = vsel %vm385, %v394, %v393
      %vm396 = vcmp.lt.s32.totalorder %v248, 0
      %v397 = vsub.s32 0, %v248
      %v398 = vsel %vm396, %v397, %v248
      %v399 = vmul.u32.u64.compose %v398, 3817748708
      %v400 = vextract.low.u32 %v399
      %v401 = vextract.high.u32 %v399
      %v402 = vshrl.u32 %v401, 4
      %v403 = vmul.u32 %v402, 18
      %v404 = vsub.s32 %v398, %v403
      %v405 = vsub.s32 0, %v404
      %v406 = vsel %vm396, %v405, %v404
      %vm407 = vcmp.lt.s32.totalorder %v249, 0
      %v408 = vsub.s32 0, %v249
      %v409 = vsel %vm407, %v408, %v249
      %v410 = vmul.u32.u64.compose %v409, 3817748708
      %v411 = vextract.low.u32 %v410
      %v412 = vextract.high.u32 %v410
      %v413 = vshrl.u32 %v412, 4
      %v414 = vmul.u32 %v413, 18
      %v415 = vsub.s32 %v409, %v414
      %v416 = vsub.s32 0, %v415
      %v417 = vsel %vm407, %v416, %v415
      %vm418 = vcmp.lt.s32.totalorder %v250, 0
      %v419 = vsub.s32 0, %v250
      %v420 = vsel %vm418, %v419, %v250
      %v421 = vmul.u32.u64.compose %v420, 3817748708
      %v422 = vextract.low.u32 %v421
      %v423 = vextract.high.u32 %v421
      %v424 = vshrl.u32 %v423, 4
      %v425 = vmul.u32 %v424, 18
      %v426 = vsub.s32 %v420, %v425
      %v427 = vsub.s32 0, %v426
      %v428 = vsel %vm418, %v427, %v426
      %vm429 = vcmp.lt.s32.totalorder %v251, 0
      %v430 = vsub.s32 0, %v251
      %v431 = vsel %vm429, %v430, %v251
      %v432 = vmul.u32.u64.compose %v431, 3817748708
      %v433 = vextract.low.u32 %v432
      %v434 = vextract.high.u32 %v432
      %v435 = vshrl.u32 %v434, 4
      %v436 = vmul.u32 %v435, 18
      %v437 = vsub.s32 %v431, %v436
      %v438 = vsub.s32 0, %v437
      %v439 = vsel %vm429, %v438, %v437
      %vm440 = vcmp.lt.s32.totalorder %v252, 0
      %v441 = vsub.s32 0, %v252
      %v442 = vsel %vm440, %v441, %v252
      %v443 = vmul.u32.u64.compose %v442, 3817748708
      %v444 = vextract.low.u32 %v443
      %v445 = vextract.high.u32 %v443
      %v446 = vshrl.u32 %v445, 4
      %v447 = vmul.u32 %v446, 18
      %v448 = vsub.s32 %v442, %v447
      %v449 = vsub.s32 0, %v448
      %v450 = vsel %vm440, %v449, %v448
      %vm451 = vcmp.ne.s32.totalorder %v263, 0
      %vm452 = vcmp.ne.s32.totalorder %v274, 0
      %vm453 = vcmp.ne.s32.totalorder %v285, 0
      %vm454 = vcmp.ne.s32.totalorder %v296, 0
      %vm455 = vcmp.ne.s32.totalorder %v307, 0
      %vm456 = vcmp.ne.s32.totalorder %v318, 0
      %vm457 = vcmp.ne.s32.totalorder %v329, 0
      %vm458 = vcmp.ne.s32.totalorder %v340, 0
      %vm459 = vcmp.ne.s32.totalorder %v351, 0
      %vm460 = vcmp.ne.s32.totalorder %v362, 0
      %vm461 = vcmp.ne.s32.totalorder %v373, 0
      %vm462 = vcmp.ne.s32.totalorder %v384, 0
      %vm463 = vcmp.ne.s32.totalorder %v395, 0
      %vm464 = vcmp.ne.s32.totalorder %v406, 0
      %vm465 = vcmp.ne.s32.totalorder %v417, 0
      %vm466 = vcmp.ne.s32.totalorder %v428, 0
      %vm467 = vcmp.ne.s32.totalorder %v439, 0
      %vm468 = vcmp.ne.s32.totalorder %v450, 0
      %vm469 = vcmp.lt.s32.totalorder %v263, 0
      %vm470 = vcmp.lt.s32.totalorder %v274, 0
      %vm471 = vcmp.lt.s32.totalorder %v285, 0
      %vm472 = vcmp.lt.s32.totalorder %v296, 0
      %vm473 = vcmp.lt.s32.totalorder %v307, 0
      %vm474 = vcmp.lt.s32.totalorder %v318, 0
      %vm475 = vcmp.lt.s32.totalorder %v329, 0
      %vm476 = vcmp.lt.s32.totalorder %v340, 0
      %vm477 = vcmp.lt.s32.totalorder %v351, 0
      %vm478 = vcmp.lt.s32.totalorder %v362, 0
      %vm479 = vcmp.lt.s32.totalorder %v373, 0
      %vm480 = vcmp.lt.s32.totalorder %v384, 0
      %vm481 = vcmp.lt.s32.totalorder %v395, 0
      %vm482 = vcmp.lt.s32.totalorder %v406, 0
      %vm483 = vcmp.lt.s32.totalorder %v417, 0
      %vm484 = vcmp.lt.s32.totalorder %v428, 0
      %vm485 = vcmp.lt.s32.totalorder %v439, 0
      %vm486 = vcmp.lt.s32.totalorder %v450, 0
      %vm487 = vmand %vm469, %vm451
      %vm488 = vmand %vm470, %vm452
      %vm489 = vmand %vm471, %vm453
      %vm490 = vmand %vm472, %vm454
      %vm491 = vmand %vm473, %vm455
      %vm492 = vmand %vm474, %vm456
      %vm493 = vmand %vm475, %vm457
      %vm494 = vmand %vm476, %vm458
      %vm495 = vmand %vm477, %vm459
      %vm496 = vmand %vm478, %vm460
      %vm497 = vmand %vm479, %vm461
      %vm498 = vmand %vm480, %vm462
      %vm499 = vmand %vm481, %vm463
      %vm500 = vmand %vm482, %vm464
      %vm501 = vmand %vm483, %vm465
      %vm502 = vmand %vm484, %vm466
      %vm503 = vmand %vm485, %vm467
      %vm504 = vmand %vm486, %vm468
      %v505 = vadd.s32 %v263, 18
      %v506 = vadd.s32 %v274, 18
      %v507 = vadd.s32 %v285, 18
      %v508 = vadd.s32 %v296, 18
      %v509 = vadd.s32 %v307, 18
      %v510 = vadd.s32 %v318, 18
      %v511 = vadd.s32 %v329, 18
      %v512 = vadd.s32 %v340, 18
      %v513 = vadd.s32 %v351, 18
      %v514 = vadd.s32 %v362, 18
      %v515 = vadd.s32 %v373, 18
      %v516 = vadd.s32 %v384, 18
      %v517 = vadd.s32 %v395, 18
      %v518 = vadd.s32 %v406, 18
      %v519 = vadd.s32 %v417, 18
      %v520 = vadd.s32 %v428, 18
      %v521 = vadd.s32 %v439, 18
      %v522 = vadd.s32 %v450, 18
      %v523 = vsel %vm487, %v505, %v263
      %v524 = vsel %vm488, %v506, %v274
      %v525 = vsel %vm489, %v507, %v285
      %v526 = vsel %vm490, %v508, %v296
      %v527 = vsel %vm491, %v509, %v307
      %v528 = vsel %vm492, %v510, %v318
      %v529 = vsel %vm493, %v511, %v329
      %v530 = vsel %vm494, %v512, %v340
      %v531 = vsel %vm495, %v513, %v351
      %v532 = vsel %vm496, %v514, %v362
      %v533 = vsel %vm497, %v515, %v373
      %v534 = vsel %vm498, %v516, %v384
      %v535 = vsel %vm499, %v517, %v395
      %v536 = vsel %vm500, %v518, %v406
      %v537 = vsel %vm501, %v519, %v417
      %v538 = vsel %vm502, %v520, %v428
      %v539 = vsel %vm503, %v521, %v439
      %v540 = vsel %vm504, %v522, %v450
      %vm541 = vcmp.lt.s32.totalorder %v523, 16
      %vm542 = vcmp.lt.s32.totalorder %v524, 16
      %vm543 = vcmp.lt.s32.totalorder %v525, 16
      %vm544 = vcmp.lt.s32.totalorder %v526, 16
      %vm545 = vcmp.lt.s32.totalorder %v527, 16
      %vm546 = vcmp.lt.s32.totalorder %v528, 16
      %vm547 = vcmp.lt.s32.totalorder %v529, 16
      %vm548 = vcmp.lt.s32.totalorder %v530, 16
      %vm549 = vcmp.lt.s32.totalorder %v531, 16
      %vm550 = vcmp.lt.s32.totalorder %v532, 16
      %vm551 = vcmp.lt.s32.totalorder %v533, 16
      %vm552 = vcmp.lt.s32.totalorder %v534, 16
      %vm553 = vcmp.lt.s32.totalorder %v535, 16
      %vm554 = vcmp.lt.s32.totalorder %v536, 16
      %vm555 = vcmp.lt.s32.totalorder %v537, 16
      %vm556 = vcmp.lt.s32.totalorder %v538, 16
      %vm557 = vcmp.lt.s32.totalorder %v539, 16
      %vm558 = vcmp.lt.s32.totalorder %v540, 16
      %v559 = vld [vmem:[%s1] sm:$0xff]
      %v560 = vld [vmem:[%s1 + $0x8] sm:$0xff]
      %v561 = vld [vmem:[%s1 + $0x10] sm:$0xff]
      %v562 = vld [vmem:[%s1 + $0x18] sm:$0xff]
      %v563 = vld [vmem:[%s1 + $0x20] sm:$0xf]
      %v564 = vld [vmem:[%s2] sm:$0x1]
      %v565 = vld [vmem:[%s4] sm:$0x1]
      %v566 = vld [vmem:[%s219] sm:$0xff]
      %v567 = vld [vmem:[%s219 + $0x8] sm:$0xff]
      %v568 = vld [vmem:[%s219 + $0x10] sm:$0xff]
      %v569 = vld [vmem:[%s219 + $0x18] sm:$0xff]
      %v570 = vld [vmem:[%s219 + $0x20] sm:$0xff]
      %v571 = vld [vmem:[%s219 + $0x28] sm:$0xff]
      %v572 = vld [vmem:[%s219 + $0x30] sm:$0xff]
      %v573 = vld [vmem:[%s219 + $0x38] sm:$0xff]
      %v574 = vld [vmem:[%s219 + $0x40] sm:$0xff]
      %v575 = vld [vmem:[%s219 + $0x48] sm:$0xff]
      %v576 = vld [vmem:[%s219 + $0x50] sm:$0xff]
      %v577 = vld [vmem:[%s219 + $0x58] sm:$0xff]
      %v578 = vld [vmem:[%s219 + $0x60] sm:$0xff]
      %v579 = vld [vmem:[%s219 + $0x68] sm:$0xff]
      %v580 = vld [vmem:[%s219 + $0x70] sm:$0xff]
      %v581 = vld [vmem:[%s219 + $0x78] sm:$0xff]
      %v582 = vld [vmem:[%s219 + $0x80] sm:$0xff]
      %v583 = vld [vmem:[%s219 + $0x88] sm:$0xff]
      %v585 = vlaneseq
      %v586 = vshrl.u32 %v585, 7
      %v587 = vsub.s32 0, %v586
      %v588 = vrot.slane %v564, %v587
      %vm590 = vcmask 293888
      %v592 = vsel %vm590, %v566, 0
      %v595 = vsel %vm590, %v567, 0
      %v598 = vsel %vm590, %v568, 0
      %v601 = vsel %vm590, %v569, 0
      %v604 = vsel %vm590, %v570, 0
      %v607 = vsel %vm590, %v571, 0
      %v610 = vsel %vm590, %v572, 0
      %v613 = vsel %vm590, %v573, 0
      %v616 = vsel %vm590, %v574, 0
      %v619 = vsel %vm590, %v575, 0
      %v622 = vsel %vm590, %v576, 0
      %v625 = vsel %vm590, %v577, 0
      %v628 = vsel %vm590, %v578, 0
      %v631 = vsel %vm590, %v579, 0
      %v634 = vsel %vm590, %v580, 0
      %v637 = vsel %vm590, %v581, 0
      %v640 = vsel %vm590, %v582, 0
      %v643 = vsel %vm590, %v583, 0
      %vm645 = vcmask 1043456
      %v647 = vsel %vm645, %v563, 0
      %649 = vmatprep.subr.mxu0 0.0
      %650 = vmatpush1.msra.mxu0 %v559
      %651 = vmatprep.subr.mxu0 0.0
      %652 = vmatpush1.msra.mxu0 %v560
      %653 = vmatprep.subr.mxu0 0.0
      %654 = vmatpush1.msra.mxu0 %v561
      %655 = vmatprep.subr.mxu0 0.0
      %656 = vmatpush1.msra.mxu0 %v562
      %657 = vmatprep.subr.mxu0 0.0
      %658 = vmatpush1.msra.mxu0 %v647
      %659 = vmatprep.subr.mxu0 0.0
      %660 = vmatpush1.msra.mxu0 0.0
      %661 = vmatprep.subr.mxu0 0.0
      %662 = vmatpush1.msra.mxu0 0.0
      %663 = vmatprep.subr.mxu0 0.0
      %664 = vmatpush1.msra.mxu0 0.0
      %665 = vmatprep.subr.mxu0 0.0
      %666 = vmatpush1.msra.mxu0 0.0
      %667 = vmatprep.subr.mxu0 0.0
      %668 = vmatpush1.msra.mxu0 0.0
      %669 = vmatprep.subr.mxu0 0.0
      %670 = vmatpush1.msra.mxu0 0.0
      %671 = vmatprep.subr.mxu0 0.0
      %672 = vmatpush1.msra.mxu0 0.0
      %673 = vmatprep.subr.mxu0 0.0
      %674 = vmatpush1.msra.mxu0 0.0
      %675 = vmatprep.subr.mxu0 0.0
      %676 = vmatpush1.msra.mxu0 0.0
      %677 = vmatprep.subr.mxu0 0.0
      %678 = vmatpush1.msra.mxu0 0.0
      %679 = vmatprep.subr.mxu0 0.0
      %680 = vmatpush1.msra.mxu0 0.0
      %681 = vmatprep.subr.mxu0 0.0
      %682 = vmatpush1.msra.mxu0 0.0
      %683 = vmatprep.subr.mxu0 0.0
      %684 = vmatpush1.msra.mxu0 0.0
      %685 = vmatprep.subr.mxu0 0.0
      %686 = vmatpush1.msra.mxu0 0.0
      %687 = vmatprep.subr.mxu0 0.0
      %688 = vmatpush1.msra.mxu0 0.0
      %689 = vmatprep.subr.mxu0 0.0
      %690 = vmatpush1.msra.mxu0 0.0
      %691 = vmatprep.subr.mxu0 0.0
      %692 = vmatpush1.msra.mxu0 0.0
      %693 = vmatprep.subr.mxu0 0.0
      %694 = vmatpush1.msra.mxu0 0.0
      %695 = vmatprep.subr.mxu0 0.0
      %696 = vmatpush1.msra.mxu0 0.0
      %697 = vmatprep.subr.mxu0 0.0
      %698 = vmatpush1.msra.mxu0 0.0
      %699 = vmatprep.subr.mxu0 0.0
      %700 = vmatpush1.msra.mxu0 0.0
      %701 = vmatprep.subr.mxu0 0.0
      %702 = vmatpush1.msra.mxu0 0.0
      %703 = vmatprep.subr.mxu0 0.0
      %704 = vmatpush1.msra.mxu0 0.0
      %705 = vmatprep.subr.mxu0 0.0
      %706 = vmatpush1.msra.mxu0 0.0
      %707 = vmatprep.subr.mxu0 0.0
      %708 = vmatpush1.msra.mxu0 0.0
      %709 = vmatprep.subr.mxu0 0.0
      %710 = vmatpush1.msra.mxu0 0.0
      %711 = vmatprep.subr.mxu0 0.0
      %712 = vmatpush1.msra.mxu0 0.0
      %713 = vmatprep.mubr.f32.mxu0 0.0
      %714 = vmatmul.mubr.f32.gmra.mrb[0].mxu0 %v592
      %v715 = vpop.f32.mrb[0].mxu0
      %v716 = vadd.f32 %v588, %v715
      %v717 = vpop.f32.mrb[0].mxu0
      %718 = vmatprep.mubr.f32.mxu0 0.0
      %719 = vmatmul.mubr.f32.gmra.mrb[0].mxu0 %v595
      %v720 = vpop.f32.mrb[0].mxu0
      %v721 = vadd.f32 %v588, %v720
      %v722 = vpop.f32.mrb[0].mxu0
      %723 = vmatprep.mubr.f32.mxu0 0.0
      %724 = vmatmul.mubr.f32.gmra.mrb[0].mxu0 %v598
      %v725 = vpop.f32.mrb[0].mxu0
      %v726 = vadd.f32 %v588, %v725
      %v727 = vpop.f32.mrb[0].mxu0
      %728 = vmatprep.mubr.f32.mxu0 0.0
      %729 = vmatmul.mubr.f32.gmra.mrb[0].mxu0 %v601
      %v730 = vpop.f32.mrb[0].mxu0
      %v731 = vadd.f32 %v588, %v730
      %v732 = vpop.f32.mrb[0].mxu0
      %733 = vmatprep.mubr.f32.mxu0 0.0
      %734 = vmatmul.mubr.f32.gmra.mrb[0].mxu0 %v604
      %v735 = vpop.f32.mrb[0].mxu0
      %v736 = vadd.f32 %v588, %v735
      %v737 = vpop.f32.mrb[0].mxu0
      %738 = vmatprep.mubr.f32.mxu0 0.0
      %739 = vmatmul.mubr.f32.gmra.mrb[0].mxu0 %v607
      %v740 = vpop.f32.mrb[0].mxu0
      %v741 = vadd.f32 %v588, %v740
      %v742 = vpop.f32.mrb[0].mxu0
      %743 = vmatprep.mubr.f32.mxu0 0.0
      %744 = vmatmul.mubr.f32.gmra.mrb[0].mxu0 %v610
      %v745 = vpop.f32.mrb[0].mxu0
      %v746 = vadd.f32 %v588, %v745
      %v747 = vpop.f32.mrb[0].mxu0
      %748 = vmatprep.mubr.f32.mxu0 0.0
      %749 = vmatmul.mubr.f32.gmra.mrb[0].mxu0 %v613
      %v750 = vpop.f32.mrb[0].mxu0
      %v751 = vadd.f32 %v588, %v750
      %v752 = vpop.f32.mrb[0].mxu0
      %753 = vmatprep.mubr.f32.mxu0 0.0
      %754 = vmatmul.mubr.f32.gmra.mrb[0].mxu0 %v616
      %v755 = vpop.f32.mrb[0].mxu0
      %v756 = vadd.f32 %v588, %v755
      %v757 = vpop.f32.mrb[0].mxu0
      %758 = vmatprep.mubr.f32.mxu0 0.0
      %759 = vmatmul.mubr.f32.gmra.mrb[0].mxu0 %v619
      %v760 = vpop.f32.mrb[0].mxu0
      %v761 = vadd.f32 %v588, %v760
      %v762 = vpop.f32.mrb[0].mxu0
      %763 = vmatprep.mubr.f32.mxu0 0.0
      %764 = vmatmul.mubr.f32.gmra.mrb[0].mxu0 %v622
      %v765 = vpop.f32.mrb[0].mxu0
      %v766 = vadd.f32 %v588, %v765
      %v767 = vpop.f32.mrb[0].mxu0
      %768 = vmatprep.mubr.f32.mxu0 0.0
      %769 = vmatmul.mubr.f32.gmra.mrb[0].mxu0 %v625
      %v770 = vpop.f32.mrb[0].mxu0
      %v771 = vadd.f32 %v588, %v770
      %v772 = vpop.f32.mrb[0].mxu0
      %773 = vmatprep.mubr.f32.mxu0 0.0
      %774 = vmatmul.mubr.f32.gmra.mrb[0].mxu0 %v628
      %v775 = vpop.f32.mrb[0].mxu0
      %v776 = vadd.f32 %v588, %v775
      %v777 = vpop.f32.mrb[0].mxu0
      %778 = vmatprep.mubr.f32.mxu0 0.0
      %779 = vmatmul.mubr.f32.gmra.mrb[0].mxu0 %v631
      %v780 = vpop.f32.mrb[0].mxu0
      %v781 = vadd.f32 %v588, %v780
      %v782 = vpop.f32.mrb[0].mxu0
      %783 = vmatprep.mubr.f32.mxu0 0.0
      %784 = vmatmul.mubr.f32.gmra.mrb[0].mxu0 %v634
      %v785 = vpop.f32.mrb[0].mxu0
      %v786 = vadd.f32 %v588, %v785
      %v787 = vpop.f32.mrb[0].mxu0
      %788 = vmatprep.mubr.f32.mxu0 0.0
      %789 = vmatmul.mubr.f32.gmra.mrb[0].mxu0 %v637
      %v790 = vpop.f32.mrb[0].mxu0
      %v791 = vadd.f32 %v588, %v790
      %v792 = vpop.f32.mrb[0].mxu0
      %793 = vmatprep.mubr.f32.mxu0 0.0
      %794 = vmatmul.mubr.f32.gmra.mrb[0].mxu0 %v640
      %v795 = vpop.f32.mrb[0].mxu0
      %v796 = vadd.f32 %v588, %v795
      %v797 = vpop.f32.mrb[0].mxu0
      %798 = vmatprep.mubr.f32.mxu0 0.0
      %799 = vmatmul.mubr.f32.gmra.mrb[0].mxu0 %v643
      %v800 = vpop.f32.mrb[0].mxu0
      %v801 = vadd.f32 %v588, %v800
      %v802 = vpop.f32.mrb[0].mxu0
      %803 = vdwg.mxu0
      %v804 = vmax.f32 %v716, 0.0
      %v805 = vmax.f32 %v721, 0.0
      %v806 = vmax.f32 %v726, 0.0
      %v807 = vmax.f32 %v731, 0.0
      %v808 = vmax.f32 %v736, 0.0
      %v809 = vmax.f32 %v741, 0.0
      %v810 = vmax.f32 %v746, 0.0
      %v811 = vmax.f32 %v751, 0.0
      %v812 = vmax.f32 %v756, 0.0
      %v813 = vmax.f32 %v761, 0.0
      %v814 = vmax.f32 %v766, 0.0
      %v815 = vmax.f32 %v771, 0.0
      %v816 = vmax.f32 %v776, 0.0
      %v817 = vmax.f32 %v781, 0.0
      %v818 = vmax.f32 %v786, 0.0
      %v819 = vmax.f32 %v791, 0.0
      %v820 = vmax.f32 %v796, 0.0
      %v821 = vmax.f32 %v801, 0.0
      %v822 = vsel %vm541, 1, 0
      %v823 = vsel %vm542, 1, 0
      %v824 = vsel %vm543, 1, 0
      %v825 = vsel %vm544, 1, 0
      %v826 = vsel %vm545, 1, 0
      %v827 = vsel %vm546, 1, 0
      %v828 = vsel %vm547, 1, 0
      %v829 = vsel %vm548, 1, 0
      %v830 = vsel %vm549, 1, 0
      %v831 = vsel %vm550, 1, 0
      %v832 = vsel %vm551, 1, 0
      %v833 = vsel %vm552, 1, 0
      %v834 = vsel %vm553, 1, 0
      %v835 = vsel %vm554, 1, 0
      %v836 = vsel %vm555, 1, 0
      %v837 = vsel %vm556, 1, 0
      %v838 = vsel %vm557, 1, 0
      %v839 = vsel %vm558, 1, 0
      %vm840 = vcmp.eq.s32.totalorder %v822, 1
      %vm841 = vcmp.eq.s32.totalorder %v823, 1
      %vm842 = vcmp.eq.s32.totalorder %v824, 1
      %vm843 = vcmp.eq.s32.totalorder %v825, 1
      %vm844 = vcmp.eq.s32.totalorder %v826, 1
      %vm845 = vcmp.eq.s32.totalorder %v827, 1
      %vm846 = vcmp.eq.s32.totalorder %v828, 1
      %vm847 = vcmp.eq.s32.totalorder %v829, 1
      %vm848 = vcmp.eq.s32.totalorder %v830, 1
      %vm849 = vcmp.eq.s32.totalorder %v831, 1
      %vm850 = vcmp.eq.s32.totalorder %v832, 1
      %vm851 = vcmp.eq.s32.totalorder %v833, 1
      %vm852 = vcmp.eq.s32.totalorder %v834, 1
      %vm853 = vcmp.eq.s32.totalorder %v835, 1
      %vm854 = vcmp.eq.s32.totalorder %v836, 1
      %vm855 = vcmp.eq.s32.totalorder %v837, 1
      %vm856 = vcmp.eq.s32.totalorder %v838, 1
      %vm857 = vcmp.eq.s32.totalorder %v839, 1
      %v858 = vsel %vm840, %v804, 0.0
      %v859 = vsel %vm841, %v805, 0.0
      %v860 = vsel %vm842, %v806, 0.0
      %v861 = vsel %vm843, %v807, 0.0
      %v862 = vsel %vm844, %v808, 0.0
      %v863 = vsel %vm845, %v809, 0.0
      %v864 = vsel %vm846, %v810, 0.0
      %v865 = vsel %vm847, %v811, 0.0
      %v866 = vsel %vm848, %v812, 0.0
      %v867 = vsel %vm849, %v813, 0.0
      %v868 = vsel %vm850, %v814, 0.0
      %v869 = vsel %vm851, %v815, 0.0
      %v870 = vsel %vm852, %v816, 0.0
      %v871 = vsel %vm853, %v817, 0.0
      %v872 = vsel %vm854, %v818, 0.0
      %v873 = vsel %vm855, %v819, 0.0
      %v874 = vsel %vm856, %v820, 0.0
      %v875 = vsel %vm857, %v821, 0.0
      %876 = vst.msk [vmem:[#allocation2 + $0x13] sm:$0xff] %vm225, %v858
      %877 = vst.msk [vmem:[#allocation2 + $0x1b] sm:$0xff] %vm225, %v859
      %878 = vst.msk [vmem:[#allocation2 + $0x23] sm:$0xff] %vm225, %v860
      %879 = vst.msk [vmem:[#allocation2 + $0x2b] sm:$0xff] %vm225, %v861
      %880 = vst.msk [vmem:[#allocation2 + $0x33] sm:$0xff] %vm225, %v862
      %881 = vst.msk [vmem:[#allocation2 + $0x3b] sm:$0xff] %vm225, %v863
      %882 = vst.msk [vmem:[#allocation2 + $0x43] sm:$0xff] %vm225, %v864
      %883 = vst.msk [vmem:[#allocation2 + $0x4b] sm:$0xff] %vm225, %v865
      %884 = vst.msk [vmem:[#allocation2 + $0x53] sm:$0xff] %vm225, %v866
      %885 = vst.msk [vmem:[#allocation2 + $0x5b] sm:$0xff] %vm225, %v867
      %886 = vst.msk [vmem:[#allocation2 + $0x63] sm:$0xff] %vm225, %v868
      %887 = vst.msk [vmem:[#allocation2 + $0x6b] sm:$0xff] %vm225, %v869
      %888 = vst.msk [vmem:[#allocation2 + $0x73] sm:$0xff] %vm225, %v870
      %889 = vst.msk [vmem:[#allocation2 + $0x7b] sm:$0xff] %vm225, %v871
      %890 = vst.msk [vmem:[#allocation2 + $0x83] sm:$0xff] %vm225, %v872
      %891 = vst.msk [vmem:[#allocation2 + $0x8b] sm:$0xff] %vm225, %v873
      %892 = vst.msk [vmem:[#allocation2 + $0x93] sm:$0xff] %vm225, %v874
      %893 = vst.msk [vmem:[#allocation2 + $0x9b] sm:$0xff] %vm225, %v875
      %v894 = vld [vmem:[%s219 + $0x90] sm:$0xff]
      %v895 = vld [vmem:[%s219 + $0x98] sm:$0xff]
      %v896 = vld [vmem:[%s219 + $0xa0] sm:$0xff]
      %v897 = vld [vmem:[%s219 + $0xa8] sm:$0xff]
      %v898 = vld [vmem:[%s219 + $0xb0] sm:$0xff]
      %v899 = vld [vmem:[%s219 + $0xb8] sm:$0xff]
      %v900 = vld [vmem:[%s219 + $0xc0] sm:$0xff]
      %v901 = vld [vmem:[%s219 + $0xc8] sm:$0xff]
      %v902 = vld [vmem:[%s219 + $0xd0] sm:$0xff]
      %v903 = vld [vmem:[%s219 + $0xd8] sm:$0xff]
      %v904 = vld [vmem:[%s219 + $0xe0] sm:$0xff]
      %v905 = vld [vmem:[%s219 + $0xe8] sm:$0xff]
      %v906 = vld [vmem:[%s219 + $0xf0] sm:$0xff]
      %v907 = vld [vmem:[%s219 + $0xf8] sm:$0xff]
      %v908 = vld [vmem:[%s219 + $0x100] sm:$0xff]
      %v909 = vld [vmem:[%s219 + $0x108] sm:$0xff]
      %v910 = vld [vmem:[%s219 + $0x110] sm:$0xff]
      %v911 = vld [vmem:[%s219 + $0x118] sm:$0xff]
      %v913 = vsel %vm590, %v894, 0
      %v916 = vsel %vm590, %v895, 0
      %v919 = vsel %vm590, %v896, 0
      %v922 = vsel %vm590, %v897, 0
      %v925 = vsel %vm590, %v898, 0
      %v928 = vsel %vm590, %v899, 0
      %v931 = vsel %vm590, %v900, 0
      %v934 = vsel %vm590, %v901, 0
      %v937 = vsel %vm590, %v902, 0
      %v940 = vsel %vm590, %v903, 0
      %v943 = vsel %vm590, %v904, 0
      %v946 = vsel %vm590, %v905, 0
      %v949 = vsel %vm590, %v906, 0
      %v952 = vsel %vm590, %v907, 0
      %v955 = vsel %vm590, %v908, 0
      %v958 = vsel %vm590, %v909, 0
      %v961 = vsel %vm590, %v910, 0
      %v964 = vsel %vm590, %v911, 0
      %966 = vmatprep.subr.mxu0 0.0
      %967 = vmatpush1.msra.mxu0 %v559
      %968 = vmatprep.subr.mxu0 0.0
      %969 = vmatpush1.msra.mxu0 %v560
      %970 = vmatprep.subr.mxu0 0.0
      %971 = vmatpush1.msra.mxu0 %v561
      %972 = vmatprep.subr.mxu0 0.0
      %973 = vmatpush1.msra.mxu0 %v562
      %974 = vmatprep.subr.mxu0 0.0
      %975 = vmatpush1.msra.mxu0 %v647
      %976 = vmatprep.subr.mxu0 0.0
      %977 = vmatpush1.msra.mxu0 0.0
      %978 = vmatprep.subr.mxu0 0.0
      %979 = vmatpush1.msra.mxu0 0.0
      %980 = vmatprep.subr.mxu0 0.0
      %981 = vmatpush1.msra.mxu0 0.0
      %982 = vmatprep.subr.mxu0 0.0
      %983 = vmatpush1.msra.mxu0 0.0
      %984 = vmatprep.subr.mxu0 0.0
      %985 = vmatpush1.msra.mxu0 0.0
      %986 = vmatprep.subr.mxu0 0.0
      %987 = vmatpush1.msra.mxu0 0.0
      %988 = vmatprep.subr.mxu0 0.0
      %989 = vmatpush1.msra.mxu0 0.0
      %990 = vmatprep.subr.mxu0 0.0
      %991 = vmatpush1.msra.mxu0 0.0
      %992 = vmatprep.subr.mxu0 0.0
      %993 = vmatpush1.msra.mxu0 0.0
      %994 = vmatprep.subr.mxu0 0.0
      %995 = vmatpush1.msra.mxu0 0.0
      %996 = vmatprep.subr.mxu0 0.0
      %997 = vmatpush1.msra.mxu0 0.0
      %998 = vmatprep.subr.mxu0 0.0
      %999 = vmatpush1.msra.mxu0 0.0
      %1000 = vmatprep.subr.mxu0 0.0
      %1001 = vmatpush1.msra.mxu0 0.0
      %1002 = vmatprep.subr.mxu0 0.0
      %1003 = vmatpush1.msra.mxu0 0.0
      %1004 = vmatprep.subr.mxu0 0.0
      %1005 = vmatpush1.msra.mxu0 0.0
      %1006 = vmatprep.subr.mxu0 0.0
      %1007 = vmatpush1.msra.mxu0 0.0
      %1008 = vmatprep.subr.mxu0 0.0
      %1009 = vmatpush1.msra.mxu0 0.0
      %1010 = vmatprep.subr.mxu0 0.0
      %1011 = vmatpush1.msra.mxu0 0.0
      %1012 = vmatprep.subr.mxu0 0.0
      %1013 = vmatpush1.msra.mxu0 0.0
      %1014 = vmatprep.subr.mxu0 0.0
      %1015 = vmatpush1.msra.mxu0 0.0
      %1016 = vmatprep.subr.mxu0 0.0
      %1017 = vmatpush1.msra.mxu0 0.0
      %1018 = vmatprep.subr.mxu0 0.0
      %1019 = vmatpush1.msra.mxu0 0.0
      %1020 = vmatprep.subr.mxu0 0.0
      %1021 = vmatpush1.msra.mxu0 0.0
      %1022 = vmatprep.subr.mxu0 0.0
      %1023 = vmatpush1.msra.mxu0 0.0
      %1024 = vmatprep.subr.mxu0 0.0
      %1025 = vmatpush1.msra.mxu0 0.0
      %1026 = vmatprep.subr.mxu0 0.0
      %1027 = vmatpush1.msra.mxu0 0.0
      %1028 = vmatprep.subr.mxu0 0.0
      %1029 = vmatpush1.msra.mxu0 0.0
      %1030 = vmatprep.mubr.f32.mxu0 0.0
      %1031 = vmatmul.mubr.f32.gmra.mrb[0].mxu0 %v913
      %v1032 = vpop.f32.mrb[0].mxu0
      %v1033 = vadd.f32 %v588, %v1032
      %v1034 = vpop.f32.mrb[0].mxu0
      %1035 = vmatprep.mubr.f32.mxu0 0.0
      %1036 = vmatmul.mubr.f32.gmra.mrb[0].mxu0 %v916
      %v1037 = vpop.f32.mrb[0].mxu0
      %v1038 = vadd.f32 %v588, %v1037
      %v1039 = vpop.f32.mrb[0].mxu0
      %1040 = vmatprep.mubr.f32.mxu0 0.0
      %1041 = vmatmul.mubr.f32.gmra.mrb[0].mxu0 %v919
      %v1042 = vpop.f32.mrb[0].mxu0
      %v1043 = vadd.f32 %v588, %v1042
      %v1044 = vpop.f32.mrb[0].mxu0
      %1045 = vmatprep.mubr.f32.mxu0 0.0
      %1046 = vmatmul.mubr.f32.gmra.mrb[0].mxu0 %v922
      %v1047 = vpop.f32.mrb[0].mxu0
      %v1048 = vadd.f32 %v588, %v1047
      %v1049 = vpop.f32.mrb[0].mxu0
      %1050 = vmatprep.mubr.f32.mxu0 0.0
      %1051 = vmatmul.mubr.f32.gmra.mrb[0].mxu0 %v925
      %v1052 = vpop.f32.mrb[0].mxu0
      %v1053 = vadd.f32 %v588, %v1052
      %v1054 = vpop.f32.mrb[0].mxu0
      %1055 = vmatprep.mubr.f32.mxu0 0.0
      %1056 = vmatmul.mubr.f32.gmra.mrb[0].mxu0 %v928
      %v1057 = vpop.f32.mrb[0].mxu0
      %v1058 = vadd.f32 %v588, %v1057
      %v1059 = vpop.f32.mrb[0].mxu0
      %1060 = vmatprep.mubr.f32.mxu0 0.0
      %1061 = vmatmul.mubr.f32.gmra.mrb[0].mxu0 %v931
      %v1062 = vpop.f32.mrb[0].mxu0
      %v1063 = vadd.f32 %v588, %v1062
      %v1064 = vpop.f32.mrb[0].mxu0
      %1065 = vmatprep.mubr.f32.mxu0 0.0
      %1066 = vmatmul.mubr.f32.gmra.mrb[0].mxu0 %v934
      %v1067 = vpop.f32.mrb[0].mxu0
      %v1068 = vadd.f32 %v588, %v1067
      %v1069 = vpop.f32.mrb[0].mxu0
      %1070 = vmatprep.mubr.f32.mxu0 0.0
      %1071 = vmatmul.mubr.f32.gmra.mrb[0].mxu0 %v937
      %v1072 = vpop.f32.mrb[0].mxu0
      %v1073 = vadd.f32 %v588, %v1072
      %v1074 = vpop.f32.mrb[0].mxu0
      %1075 = vmatprep.mubr.f32.mxu0 0.0
      %1076 = vmatmul.mubr.f32.gmra.mrb[0].mxu0 %v940
      %v1077 = vpop.f32.mrb[0].mxu0
      %v1078 = vadd.f32 %v588, %v1077
      %v1079 = vpop.f32.mrb[0].mxu0
      %1080 = vmatprep.mubr.f32.mxu0 0.0
      %1081 = vmatmul.mubr.f32.gmra.mrb[0].mxu0 %v943
      %v1082 = vpop.f32.mrb[0].mxu0
      %v1083 = vadd.f32 %v588, %v1082
      %v1084 = vpop.f32.mrb[0].mxu0
      %1085 = vmatprep.mubr.f32.mxu0 0.0
      %1086 = vmatmul.mubr.f32.gmra.mrb[0].mxu0 %v946
      %v1087 = vpop.f32.mrb[0].mxu0
      %v1088 = vadd.f32 %v588, %v1087
      %v1089 = vpop.f32.mrb[0].mxu0
      %1090 = vmatprep.mubr.f32.mxu0 0.0
      %1091 = vmatmul.mubr.f32.gmra.mrb[0].mxu0 %v949
      %v1092 = vpop.f32.mrb[0].mxu0
      %v1093 = vadd.f32 %v588, %v1092
      %v1094 = vpop.f32.mrb[0].mxu0
      %1095 = vmatprep.mubr.f32.mxu0 0.0
      %1096 = vmatmul.mubr.f32.gmra.mrb[0].mxu0 %v952
      %v1097 = vpop.f32.mrb[0].mxu0
      %v1098 = vadd.f32 %v588, %v1097
      %v1099 = vpop.f32.mrb[0].mxu0
      %1100 = vmatprep.mubr.f32.mxu0 0.0
      %1101 = vmatmul.mubr.f32.gmra.mrb[0].mxu0 %v955
      %v1102 = vpop.f32.mrb[0].mxu0
      %v1103 = vadd.f32 %v588, %v1102
      %v1104 = vpop.f32.mrb[0].mxu0
      %1105 = vmatprep.mubr.f32.mxu0 0.0
      %1106 = vmatmul.mubr.f32.gmra.mrb[0].mxu0 %v958
      %v1107 = vpop.f32.mrb[0].mxu0
      %v1108 = vadd.f32 %v588, %v1107
      %v1109 = vpop.f32.mrb[0].mxu0
      %1110 = vmatprep.mubr.f32.mxu0 0.0
      %1111 = vmatmul.mubr.f32.gmra.mrb[0].mxu0 %v961
      %v1112 = vpop.f32.mrb[0].mxu0
      %v1113 = vadd.f32 %v588, %v1112
      %v1114 = vpop.f32.mrb[0].mxu0
      %1115 = vmatprep.mubr.f32.mxu0 0.0
      %1116 = vmatmul.mubr.f32.gmra.mrb[0].mxu0 %v964
      %v1117 = vpop.f32.mrb[0].mxu0
      %v1118 = vadd.f32 %v588, %v1117
      %v1119 = vpop.f32.mrb[0].mxu0
      %1120 = vdwg.mxu0
      %v1121 = vmax.f32 %v1033, 0.0
      %v1122 = vmax.f32 %v1038, 0.0
      %v1123 = vmax.f32 %v1043, 0.0
      %v1124 = vmax.f32 %v1048, 0.0
      %v1125 = vmax.f32 %v1053, 0.0
      %v1126 = vmax.f32 %v1058, 0.0
      %v1127 = vmax.f32 %v1063, 0.0
      %v1128 = vmax.f32 %v1068, 0.0
      %v1129 = vmax.f32 %v1073, 0.0
      %v1130 = vmax.f32 %v1078, 0.0
      %v1131 = vmax.f32 %v1083, 0.0
      %v1132 = vmax.f32 %v1088, 0.0
      %v1133 = vmax.f32 %v1093, 0.0
      %v1134 = vmax.f32 %v1098, 0.0
      %v1135 = vmax.f32 %v1103, 0.0
      %v1136 = vmax.f32 %v1108, 0.0
      %v1137 = vmax.f32 %v1113, 0.0
      %v1138 = vmax.f32 %v1118, 0.0
      %v1139 = vsel %vm840, %v1121, 0.0
      %v1140 = vsel %vm841, %v1122, 0.0
      %v1141 = vsel %vm842, %v1123, 0.0
      %v1142 = vsel %vm843, %v1124, 0.0
      %v1143 = vsel %vm844, %v1125, 0.0
      %v1144 = vsel %vm845, %v1126, 0.0
      %v1145 = vsel %vm846, %v1127, 0.0
      %v1146 = vsel %vm847, %v1128, 0.0
      %v1147 = vsel %vm848, %v1129, 0.0
      %v1148 = vsel %vm849, %v1130, 0.0
      %v1149 = vsel %vm850, %v1131, 0.0
      %v1150 = vsel %vm851, %v1132, 0.0
      %v1151 = vsel %vm852, %v1133, 0.0
      %v1152 = vsel %vm853, %v1134, 0.0
      %v1153 = vsel %vm854, %v1135, 0.0
      %v1154 = vsel %vm855, %v1136, 0.0
      %v1155 = vsel %vm856, %v1137, 0.0
      %v1156 = vsel %vm857, %v1138, 0.0
      %1157 = vst.msk [vmem:[#allocation2 + $0xa3] sm:$0xff] %vm225, %v1139
      %1158 = vst.msk [vmem:[#allocation2 + $0xab] sm:$0xff] %vm225, %v1140
      %1159 = vst.msk [vmem:[#allocation2 + $0xb3] sm:$0xff] %vm225, %v1141
      %1160 = vst.msk [vmem:[#allocation2 + $0xbb] sm:$0xff] %vm225, %v1142
      %1161 = vst.msk [vmem:[#allocation2 + $0xc3] sm:$0xff] %vm225, %v1143
      %1162 = vst.msk [vmem:[#allocation2 + $0xcb] sm:$0xff] %vm225, %v1144
      %1163 = vst.msk [vmem:[#allocation2 + $0xd3] sm:$0xff] %vm225, %v1145
      %1164 = vst.msk [vmem:[#allocation2 + $0xdb] sm:$0xff] %vm225, %v1146
      %1165 = vst.msk [vmem:[#allocation2 + $0xe3] sm:$0xff] %vm225, %v1147
      %1166 = vst.msk [vmem:[#allocation2 + $0xeb] sm:$0xff] %vm225, %v1148
      %1167 = vst.msk [vmem:[#allocation2 + $0xf3] sm:$0xff] %vm225, %v1149
      %1168 = vst.msk [vmem:[#allocation2 + $0xfb] sm:$0xff] %vm225, %v1150
      %1169 = vst.msk [vmem:[#allocation2 + $0x103] sm:$0xff] %vm225, %v1151
      %1170 = vst.msk [vmem:[#allocation2 + $0x10b] sm:$0xff] %vm225, %v1152
      %1171 = vst.msk [vmem:[#allocation2 + $0x113] sm:$0xff] %vm225, %v1153
      %1172 = vst.msk [vmem:[#allocation2 + $0x11b] sm:$0xff] %vm225, %v1154
      %1173 = vst.msk [vmem:[#allocation2 + $0x123] sm:$0xff] %vm225, %v1155
      %1174 = vst.msk [vmem:[#allocation2 + $0x12b] sm:$0xff] %vm225, %v1156
      %v1176 = vlaneseq
      %v1177 = vshrl.u32 %v1176, 7
      %v1178 = vsub.s32 0, %v1177
      %v1179 = vrot.slane %v565, %v1178
      %v1181 = vld [vmem:[#allocation2] sm:$0xff]
      %v1182 = vld [vmem:[#allocation2 + $0x8] sm:$0xff]
      %v1183 = vld [vmem:[#allocation2 + $0x10] sm:$0xff]
      %v1184 = vld [vmem:[#allocation2 + $0x18] sm:$0xff]
      %v1185 = vld [vmem:[#allocation2 + $0x20] sm:$0xff]
      %v1186 = vld [vmem:[#allocation2 + $0x28] sm:$0xff]
      %v1187 = vld [vmem:[#allocation2 + $0x30] sm:$0xff]
      %v1188 = vld [vmem:[#allocation2 + $0x38] sm:$0xff]
      %v1189 = vld [vmem:[#allocation2 + $0x40] sm:$0xff]
      %v1190 = vld [vmem:[#allocation2 + $0x48] sm:$0xff]
      %v1191 = vld [vmem:[#allocation2 + $0x50] sm:$0xff]
      %v1192 = vld [vmem:[#allocation2 + $0x58] sm:$0xff]
      %v1193 = vld [vmem:[#allocation2 + $0x60] sm:$0xff]
      %v1194 = vld [vmem:[#allocation2 + $0x68] sm:$0xff]
      %v1195 = vld [vmem:[#allocation2 + $0x70] sm:$0xff]
      %v1196 = vld [vmem:[#allocation2 + $0x78] sm:$0xff]
      %v1197 = vld [vmem:[#allocation2 + $0x80] sm:$0xff]
      %v1198 = vld [vmem:[#allocation2 + $0x88] sm:$0xff]
      %v1199 = vld [vmem:[%s3] sm:$0xff]
      %v1201 = vsel %vm225, %v1181, 0
      %v1204 = vsel %vm225, %v1182, 0
      %v1207 = vsel %vm225, %v1183, 0
      %v1210 = vsel %vm225, %v1184, 0
      %v1213 = vsel %vm225, %v1185, 0
      %v1216 = vsel %vm225, %v1186, 0
      %v1219 = vsel %vm225, %v1187, 0
      %v1222 = vsel %vm225, %v1188, 0
      %v1225 = vsel %vm225, %v1189, 0
      %v1228 = vsel %vm225, %v1190, 0
      %v1231 = vsel %vm225, %v1191, 0
      %v1234 = vsel %vm225, %v1192, 0
      %v1237 = vsel %vm225, %v1193, 0
      %v1240 = vsel %vm225, %v1194, 0
      %v1243 = vsel %vm225, %v1195, 0
      %v1246 = vsel %vm225, %v1196, 0
      %v1249 = vsel %vm225, %v1197, 0
      %v1252 = vsel %vm225, %v1198, 0
      %1254 = vmatprep.subr.mxu0 0.0
      %1255 = vmatpush1.msra.mxu0 %v1199
      %1256 = vmatprep.subr.mxu0 0.0
      %1257 = vmatpush1.msra.mxu0 0.0
      %1258 = vmatprep.subr.mxu0 0.0
      %1259 = vmatpush1.msra.mxu0 0.0
      %1260 = vmatprep.subr.mxu0 0.0
      %1261 = vmatpush1.msra.mxu0 0.0
      %1262 = vmatprep.subr.mxu0 0.0
      %1263 = vmatpush1.msra.mxu0 0.0
      %1264 = vmatprep.subr.mxu0 0.0
      %1265 = vmatpush1.msra.mxu0 0.0
      %1266 = vmatprep.subr.mxu0 0.0
      %1267 = vmatpush1.msra.mxu0 0.0
      %1268 = vmatprep.subr.mxu0 0.0
      %1269 = vmatpush1.msra.mxu0 0.0
      %1270 = vmatprep.subr.mxu0 0.0
      %1271 = vmatpush1.msra.mxu0 0.0
      %1272 = vmatprep.subr.mxu0 0.0
      %1273 = vmatpush1.msra.mxu0 0.0
      %1274 = vmatprep.subr.mxu0 0.0
      %1275 = vmatpush1.msra.mxu0 0.0
      %1276 = vmatprep.subr.mxu0 0.0
      %1277 = vmatpush1.msra.mxu0 0.0
      %1278 = vmatprep.subr.mxu0 0.0
      %1279 = vmatpush1.msra.mxu0 0.0
      %1280 = vmatprep.subr.mxu0 0.0
      %1281 = vmatpush1.msra.mxu0 0.0
      %1282 = vmatprep.subr.mxu0 0.0
      %1283 = vmatpush1.msra.mxu0 0.0
      %1284 = vmatprep.subr.mxu0 0.0
      %1285 = vmatpush1.msra.mxu0 0.0
      %1286 = vmatprep.subr.mxu0 0.0
      %1287 = vmatpush1.msra.mxu0 0.0
      %1288 = vmatprep.subr.mxu0 0.0
      %1289 = vmatpush1.msra.mxu0 0.0
      %1290 = vmatprep.subr.mxu0 0.0
      %1291 = vmatpush1.msra.mxu0 0.0
      %1292 = vmatprep.subr.mxu0 0.0
      %1293 = vmatpush1.msra.mxu0 0.0
      %1294 = vmatprep.subr.mxu0 0.0
      %1295 = vmatpush1.msra.mxu0 0.0
      %1296 = vmatprep.subr.mxu0 0.0
      %1297 = vmatpush1.msra.mxu0 0.0
      %1298 = vmatprep.subr.mxu0 0.0
      %1299 = vmatpush1.msra.mxu0 0.0
      %1300 = vmatprep.subr.mxu0 0.0
      %1301 = vmatpush1.msra.mxu0 0.0
      %1302 = vmatprep.subr.mxu0 0.0
      %1303 = vmatpush1.msra.mxu0 0.0
      %1304 = vmatprep.subr.mxu0 0.0
      %1305 = vmatpush1.msra.mxu0 0.0
      %1306 = vmatprep.subr.mxu0 0.0
      %1307 = vmatpush1.msra.mxu0 0.0
      %1308 = vmatprep.subr.mxu0 0.0
      %1309 = vmatpush1.msra.mxu0 0.0
      %1310 = vmatprep.subr.mxu0 0.0
      %1311 = vmatpush1.msra.mxu0 0.0
      %1312 = vmatprep.subr.mxu0 0.0
      %1313 = vmatpush1.msra.mxu0 0.0
      %1314 = vmatprep.subr.mxu0 0.0
      %1315 = vmatpush1.msra.mxu0 0.0
      %1316 = vmatprep.subr.mxu0 0.0
      %1317 = vmatpush1.msra.mxu0 0.0
      %1318 = vmatprep.mubr.f32.mxu0 0.0
      %1319 = vmatmul.mubr.f32.gmra.mrb[0].mxu0 %v1201
      %v1320 = vpop.f32.mrb[0].mxu0
      %v1321 = vadd.f32 0.0, %v1320
      %v1322 = vpop.f32.mrb[0].mxu0
      %1323 = vmatprep.mubr.f32.mxu0 0.0
      %1324 = vmatmul.mubr.f32.gmra.mrb[0].mxu0 %v1204
      %v1325 = vpop.f32.mrb[0].mxu0
      %v1326 = vadd.f32 0.0, %v1325
      %v1327 = vpop.f32.mrb[0].mxu0
      %1328 = vmatprep.mubr.f32.mxu0 0.0
      %1329 = vmatmul.mubr.f32.gmra.mrb[0].mxu0 %v1207
      %v1330 = vpop.f32.mrb[0].mxu0
      %v1331 = vadd.f32 0.0, %v1330
      %v1332 = vpop.f32.mrb[0].mxu0
      %1333 = vmatprep.mubr.f32.mxu0 0.0
      %1334 = vmatmul.mubr.f32.gmra.mrb[0].mxu0 %v1210
      %v1335 = vpop.f32.mrb[0].mxu0
      %v1336 = vadd.f32 0.0, %v1335
      %v1337 = vpop.f32.mrb[0].mxu0
      %1338 = vmatprep.mubr.f32.mxu0 0.0
      %1339 = vmatmul.mubr.f32.gmra.mrb[0].mxu0 %v1213
      %v1340 = vpop.f32.mrb[0].mxu0
      %v1341 = vadd.f32 0.0, %v1340
      %v1342 = vpop.f32.mrb[0].mxu0
      %1343 = vmatprep.mubr.f32.mxu0 0.0
      %1344 = vmatmul.mubr.f32.gmra.mrb[0].mxu0 %v1216
      %v1345 = vpop.f32.mrb[0].mxu0
      %v1346 = vadd.f32 0.0, %v1345
      %v1347 = vpop.f32.mrb[0].mxu0
      %1348 = vmatprep.mubr.f32.mxu0 0.0
      %1349 = vmatmul.mubr.f32.gmra.mrb[0].mxu0 %v1219
      %v1350 = vpop.f32.mrb[0].mxu0
      %v1351 = vadd.f32 0.0, %v1350
      %v1352 = vpop.f32.mrb[0].mxu0
      %1353 = vmatprep.mubr.f32.mxu0 0.0
      %1354 = vmatmul.mubr.f32.gmra.mrb[0].mxu0 %v1222
      %v1355 = vpop.f32.mrb[0].mxu0
      %v1356 = vadd.f32 0.0, %v1355
      %v1357 = vpop.f32.mrb[0].mxu0
      %1358 = vmatprep.mubr.f32.mxu0 0.0
      %1359 = vmatmul.mubr.f32.gmra.mrb[0].mxu0 %v1225
      %v1360 = vpop.f32.mrb[0].mxu0
      %v1361 = vadd.f32 0.0, %v1360
      %v1362 = vpop.f32.mrb[0].mxu0
      %1363 = vmatprep.mubr.f32.mxu0 0.0
      %1364 = vmatmul.mubr.f32.gmra.mrb[0].mxu0 %v1228
      %v1365 = vpop.f32.mrb[0].mxu0
      %v1366 = vadd.f32 0.0, %v1365
      %v1367 = vpop.f32.mrb[0].mxu0
      %1368 = vmatprep.mubr.f32.mxu0 0.0
      %1369 = vmatmul.mubr.f32.gmra.mrb[0].mxu0 %v1231
      %v1370 = vpop.f32.mrb[0].mxu0
      %v1371 = vadd.f32 0.0, %v1370
      %v1372 = vpop.f32.mrb[0].mxu0
      %1373 = vmatprep.mubr.f32.mxu0 0.0
      %1374 = vmatmul.mubr.f32.gmra.mrb[0].mxu0 %v1234
      %v1375 = vpop.f32.mrb[0].mxu0
      %v1376 = vadd.f32 0.0, %v1375
      %v1377 = vpop.f32.mrb[0].mxu0
      %1378 = vmatprep.mubr.f32.mxu0 0.0
      %1379 = vmatmul.mubr.f32.gmra.mrb[0].mxu0 %v1237
      %v1380 = vpop.f32.mrb[0].mxu0
      %v1381 = vadd.f32 0.0, %v1380
      %v1382 = vpop.f32.mrb[0].mxu0
      %1383 = vmatprep.mubr.f32.mxu0 0.0
      %1384 = vmatmul.mubr.f32.gmra.mrb[0].mxu0 %v1240
      %v1385 = vpop.f32.mrb[0].mxu0
      %v1386 = vadd.f32 0.0, %v1385
      %v1387 = vpop.f32.mrb[0].mxu0
      %1388 = vmatprep.mubr.f32.mxu0 0.0
      %1389 = vmatmul.mubr.f32.gmra.mrb[0].mxu0 %v1243
      %v1390 = vpop.f32.mrb[0].mxu0
      %v1391 = vadd.f32 0.0, %v1390
      %v1392 = vpop.f32.mrb[0].mxu0
      %1393 = vmatprep.mubr.f32.mxu0 0.0
      %1394 = vmatmul.mubr.f32.gmra.mrb[0].mxu0 %v1246
      %v1395 = vpop.f32.mrb[0].mxu0
      %v1396 = vadd.f32 0.0, %v1395
      %v1397 = vpop.f32.mrb[0].mxu0
      %1398 = vmatprep.mubr.f32.mxu0 0.0
      %1399 = vmatmul.mubr.f32.gmra.mrb[0].mxu0 %v1249
      %v1400 = vpop.f32.mrb[0].mxu0
      %v1401 = vadd.f32 0.0, %v1400
      %v1402 = vpop.f32.mrb[0].mxu0
      %1403 = vmatprep.mubr.f32.mxu0 0.0
      %1404 = vmatmul.mubr.f32.gmra.mrb[0].mxu0 %v1252
      %v1405 = vpop.f32.mrb[0].mxu0
      %v1406 = vadd.f32 0.0, %v1405
      %v1407 = vpop.f32.mrb[0].mxu0
      %1408 = vdwg.mxu0
      %v1409 = vadd.f32 %v1179, %v1321
      %v1410 = vadd.f32 %v1179, %v1326
      %v1411 = vadd.f32 %v1179, %v1331
      %v1412 = vadd.f32 %v1179, %v1336
      %v1413 = vadd.f32 %v1179, %v1341
      %v1414 = vadd.f32 %v1179, %v1346
      %v1415 = vadd.f32 %v1179, %v1351
      %v1416 = vadd.f32 %v1179, %v1356
      %v1417 = vadd.f32 %v1179, %v1361
      %v1418 = vadd.f32 %v1179, %v1366
      %v1419 = vadd.f32 %v1179, %v1371
      %v1420 = vadd.f32 %v1179, %v1376
      %v1421 = vadd.f32 %v1179, %v1381
      %v1422 = vadd.f32 %v1179, %v1386
      %v1423 = vadd.f32 %v1179, %v1391
      %v1424 = vadd.f32 %v1179, %v1396
      %v1425 = vadd.f32 %v1179, %v1401
      %v1426 = vadd.f32 %v1179, %v1406
      %v1427 = vld [vmem:[#allocation2 + $0x1] sm:$0xff]
      %v1428 = vld [vmem:[#allocation2 + $0x9] sm:$0xff]
      %v1429 = vld [vmem:[#allocation2 + $0x11] sm:$0xff]
      %v1430 = vld [vmem:[#allocation2 + $0x19] sm:$0xff]
      %v1431 = vld [vmem:[#allocation2 + $0x21] sm:$0xff]
      %v1432 = vld [vmem:[#allocation2 + $0x29] sm:$0xff]
      %v1433 = vld [vmem:[#allocation2 + $0x31] sm:$0xff]
      %v1434 = vld [vmem:[#allocation2 + $0x39] sm:$0xff]
      %v1435 = vld [vmem:[#allocation2 + $0x41] sm:$0xff]
      %v1436 = vld [vmem:[#allocation2 + $0x49] sm:$0xff]
      %v1437 = vld [vmem:[#allocation2 + $0x51] sm:$0xff]
      %v1438 = vld [vmem:[#allocation2 + $0x59] sm:$0xff]
      %v1439 = vld [vmem:[#allocation2 + $0x61] sm:$0xff]
      %v1440 = vld [vmem:[#allocation2 + $0x69] sm:$0xff]
      %v1441 = vld [vmem:[#allocation2 + $0x71] sm:$0xff]
      %v1442 = vld [vmem:[#allocation2 + $0x79] sm:$0xff]
      %v1443 = vld [vmem:[#allocation2 + $0x81] sm:$0xff]
      %v1444 = vld [vmem:[#allocation2 + $0x89] sm:$0xff]
      %s1445 = scalar_lea.vmem %s3, 8
      %v1446 = vld [vmem:[%s1445] sm:$0xff]
      %v1448 = vsel %vm225, %v1427, 0
      %v1451 = vsel %vm225, %v1428, 0
      %v1454 = vsel %vm225, %v1429, 0
      %v1457 = vsel %vm225, %v1430, 0
      %v1460 = vsel %vm225, %v1431, 0
      %v1463 = vsel %vm225, %v1432, 0
      %v1466 = vsel %vm225, %v1433, 0
      %v1469 = vsel %vm225, %v1434, 0
      %v1472 = vsel %vm225, %v1435, 0
      %v1475 = vsel %vm225, %v1436, 0
      %v1478 = vsel %vm225, %v1437, 0
      %v1481 = vsel %vm225, %v1438, 0
      %v1484 = vsel %vm225, %v1439, 0
      %v1487 = vsel %vm225, %v1440, 0
      %v1490 = vsel %vm225, %v1441, 0
      %v1493 = vsel %vm225, %v1442, 0
      %v1496 = vsel %vm225, %v1443, 0
      %v1499 = vsel %vm225, %v1444, 0
      %1501 = vmatprep.subr.mxu0 0.0
      %1502 = vmatpush1.msra.mxu0 %v1446
      %1503 = vmatprep.subr.mxu0 0.0
      %1504 = vmatpush1.msra.mxu0 0.0
      %1505 = vmatprep.subr.mxu0 0.0
      %1506 = vmatpush1.msra.mxu0 0.0
      %1507 = vmatprep.subr.mxu0 0.0
      %1508 = vmatpush1.msra.mxu0 0.0
      %1509 = vmatprep.subr.mxu0 0.0
      %1510 = vmatpush1.msra.mxu0 0.0
      %1511 = vmatprep.subr.mxu0 0.0
      %1512 = vmatpush1.msra.mxu0 0.0
      %1513 = vmatprep.subr.mxu0 0.0
      %1514 = vmatpush1.msra.mxu0 0.0
      %1515 = vmatprep.subr.mxu0 0.0
      %1516 = vmatpush1.msra.mxu0 0.0
      %1517 = vmatprep.subr.mxu0 0.0
      %1518 = vmatpush1.msra.mxu0 0.0
      %1519 = vmatprep.subr.mxu0 0.0
      %1520 = vmatpush1.msra.mxu0 0.0
      %1521 = vmatprep.subr.mxu0 0.0
      %1522 = vmatpush1.msra.mxu0 0.0
      %1523 = vmatprep.subr.mxu0 0.0
      %1524 = vmatpush1.msra.mxu0 0.0
      %1525 = vmatprep.subr.mxu0 0.0
      %1526 = vmatpush1.msra.mxu0 0.0
      %1527 = vmatprep.subr.mxu0 0.0
      %1528 = vmatpush1.msra.mxu0 0.0
      %1529 = vmatprep.subr.mxu0 0.0
      %1530 = vmatpush1.msra.mxu0 0.0
      %1531 = vmatprep.subr.mxu0 0.0
      %1532 = vmatpush1.msra.mxu0 0.0
      %1533 = vmatprep.subr.mxu0 0.0
      %1534 = vmatpush1.msra.mxu0 0.0
      %1535 = vmatprep.subr.mxu0 0.0
      %1536 = vmatpush1.msra.mxu0 0.0
      %1537 = vmatprep.subr.mxu0 0.0
      %1538 = vmatpush1.msra.mxu0 0.0
      %1539 = vmatprep.subr.mxu0 0.0
      %1540 = vmatpush1.msra.mxu0 0.0
      %1541 = vmatprep.subr.mxu0 0.0
      %1542 = vmatpush1.msra.mxu0 0.0
      %1543 = vmatprep.subr.mxu0 0.0
      %1544 = vmatpush1.msra.mxu0 0.0
      %1545 = vmatprep.subr.mxu0 0.0
      %1546 = vmatpush1.msra.mxu0 0.0
      %1547 = vmatprep.subr.mxu0 0.0
      %1548 = vmatpush1.msra.mxu0 0.0
      %1549 = vmatprep.subr.mxu0 0.0
      %1550 = vmatpush1.msra.mxu0 0.0
      %1551 = vmatprep.subr.mxu0 0.0
      %1552 = vmatpush1.msra.mxu0 0.0
      %1553 = vmatprep.subr.mxu0 0.0
      %1554 = vmatpush1.msra.mxu0 0.0
      %1555 = vmatprep.subr.mxu0 0.0
      %1556 = vmatpush1.msra.mxu0 0.0
      %1557 = vmatprep.subr.mxu0 0.0
      %1558 = vmatpush1.msra.mxu0 0.0
      %1559 = vmatprep.subr.mxu0 0.0
      %1560 = vmatpush1.msra.mxu0 0.0
      %1561 = vmatprep.subr.mxu0 0.0
      %1562 = vmatpush1.msra.mxu0 0.0
      %1563 = vmatprep.subr.mxu0 0.0
      %1564 = vmatpush1.msra.mxu0 0.0
      %1565 = vmatprep.mubr.f32.mxu0 0.0
      %1566 = vmatmul.mubr.f32.gmra.mrb[0].mxu0 %v1448
      %v1567 = vpop.f32.mrb[0].mxu0
      %v1568 = vadd.f32 0.0, %v1567
      %v1569 = vpop.f32.mrb[0].mxu0
      %1570 = vmatprep.mubr.f32.mxu0 0.0
      %1571 = vmatmul.mubr.f32.gmra.mrb[0].mxu0 %v1451
      %v1572 = vpop.f32.mrb[0].mxu0
      %v1573 = vadd.f32 0.0, %v1572
      %v1574 = vpop.f32.mrb[0].mxu0
      %1575 = vmatprep.mubr.f32.mxu0 0.0
      %1576 = vmatmul.mubr.f32.gmra.mrb[0].mxu0 %v1454
      %v1577 = vpop.f32.mrb[0].mxu0
      %v1578 = vadd.f32 0.0, %v1577
      %v1579 = vpop.f32.mrb[0].mxu0
      %1580 = vmatprep.mubr.f32.mxu0 0.0
      %1581 = vmatmul.mubr.f32.gmra.mrb[0].mxu0 %v1457
      %v1582 = vpop.f32.mrb[0].mxu0
      %v1583 = vadd.f32 0.0, %v1582
      %v1584 = vpop.f32.mrb[0].mxu0
      %1585 = vmatprep.mubr.f32.mxu0 0.0
      %1586 = vmatmul.mubr.f32.gmra.mrb[0].mxu0 %v1460
      %v1587 = vpop.f32.mrb[0].mxu0
      %v1588 = vadd.f32 0.0, %v1587
      %v1589 = vpop.f32.mrb[0].mxu0
      %1590 = vmatprep.mubr.f32.mxu0 0.0
      %1591 = vmatmul.mubr.f32.gmra.mrb[0].mxu0 %v1463
      %v1592 = vpop.f32.mrb[0].mxu0
      %v1593 = vadd.f32 0.0, %v1592
      %v1594 = vpop.f32.mrb[0].mxu0
      %1595 = vmatprep.mubr.f32.mxu0 0.0
      %1596 = vmatmul.mubr.f32.gmra.mrb[0].mxu0 %v1466
      %v1597 = vpop.f32.mrb[0].mxu0
      %v1598 = vadd.f32 0.0, %v1597
      %v1599 = vpop.f32.mrb[0].mxu0
      %1600 = vmatprep.mubr.f32.mxu0 0.0
      %1601 = vmatmul.mubr.f32.gmra.mrb[0].mxu0 %v1469
      %v1602 = vpop.f32.mrb[0].mxu0
      %v1603 = vadd.f32 0.0, %v1602
      %v1604 = vpop.f32.mrb[0].mxu0
      %1605 = vmatprep.mubr.f32.mxu0 0.0
      %1606 = vmatmul.mubr.f32.gmra.mrb[0].mxu0 %v1472
      %v1607 = vpop.f32.mrb[0].mxu0
      %v1608 = vadd.f32 0.0, %v1607
      %v1609 = vpop.f32.mrb[0].mxu0
      %1610 = vmatprep.mubr.f32.mxu0 0.0
      %1611 = vmatmul.mubr.f32.gmra.mrb[0].mxu0 %v1475
      %v1612 = vpop.f32.mrb[0].mxu0
      %v1613 = vadd.f32 0.0, %v1612
      %v1614 = vpop.f32.mrb[0].mxu0
      %1615 = vmatprep.mubr.f32.mxu0 0.0
      %1616 = vmatmul.mubr.f32.gmra.mrb[0].mxu0 %v1478
      %v1617 = vpop.f32.mrb[0].mxu0
      %v1618 = vadd.f32 0.0, %v1617
      %v1619 = vpop.f32.mrb[0].mxu0
      %1620 = vmatprep.mubr.f32.mxu0 0.0
      %1621 = vmatmul.mubr.f32.gmra.mrb[0].mxu0 %v1481
      %v1622 = vpop.f32.mrb[0].mxu0
      %v1623 = vadd.f32 0.0, %v1622
      %v1624 = vpop.f32.mrb[0].mxu0
      %1625 = vmatprep.mubr.f32.mxu0 0.0
      %1626 = vmatmul.mubr.f32.gmra.mrb[0].mxu0 %v1484
      %v1627 = vpop.f32.mrb[0].mxu0
      %v1628 = vadd.f32 0.0, %v1627
      %v1629 = vpop.f32.mrb[0].mxu0
      %1630 = vmatprep.mubr.f32.mxu0 0.0
      %1631 = vmatmul.mubr.f32.gmra.mrb[0].mxu0 %v1487
      %v1632 = vpop.f32.mrb[0].mxu0
      %v1633 = vadd.f32 0.0, %v1632
      %v1634 = vpop.f32.mrb[0].mxu0
      %1635 = vmatprep.mubr.f32.mxu0 0.0
      %1636 = vmatmul.mubr.f32.gmra.mrb[0].mxu0 %v1490
      %v1637 = vpop.f32.mrb[0].mxu0
      %v1638 = vadd.f32 0.0, %v1637
      %v1639 = vpop.f32.mrb[0].mxu0
      %1640 = vmatprep.mubr.f32.mxu0 0.0
      %1641 = vmatmul.mubr.f32.gmra.mrb[0].mxu0 %v1493
      %v1642 = vpop.f32.mrb[0].mxu0
      %v1643 = vadd.f32 0.0, %v1642
      %v1644 = vpop.f32.mrb[0].mxu0
      %1645 = vmatprep.mubr.f32.mxu0 0.0
      %1646 = vmatmul.mubr.f32.gmra.mrb[0].mxu0 %v1496
      %v1647 = vpop.f32.mrb[0].mxu0
      %v1648 = vadd.f32 0.0, %v1647
      %v1649 = vpop.f32.mrb[0].mxu0
      %1650 = vmatprep.mubr.f32.mxu0 0.0
      %1651 = vmatmul.mubr.f32.gmra.mrb[0].mxu0 %v1499
      %v1652 = vpop.f32.mrb[0].mxu0
      %v1653 = vadd.f32 0.0, %v1652
      %v1654 = vpop.f32.mrb[0].mxu0
      %1655 = vdwg.mxu0
      %v1656 = vadd.f32 %v1409, %v1568
      %v1657 = vadd.f32 %v1410, %v1573
      %v1658 = vadd.f32 %v1411, %v1578
      %v1659 = vadd.f32 %v1412, %v1583
      %v1660 = vadd.f32 %v1413, %v1588
      %v1661 = vadd.f32 %v1414, %v1593
      %v1662 = vadd.f32 %v1415, %v1598
      %v1663 = vadd.f32 %v1416, %v1603
      %v1664 = vadd.f32 %v1417, %v1608
      %v1665 = vadd.f32 %v1418, %v1613
      %v1666 = vadd.f32 %v1419, %v1618
      %v1667 = vadd.f32 %v1420, %v1623
      %v1668 = vadd.f32 %v1421, %v1628
      %v1669 = vadd.f32 %v1422, %v1633
      %v1670 = vadd.f32 %v1423, %v1638
      %v1671 = vadd.f32 %v1424, %v1643
      %v1672 = vadd.f32 %v1425, %v1648
      %v1673 = vadd.f32 %v1426, %v1653
      %v1674 = vld [vmem:[#allocation2 + $0x2] sm:$0xff]
      %v1675 = vld [vmem:[#allocation2 + $0xa] sm:$0xff]
      %v1676 = vld [vmem:[#allocation2 + $0x12] sm:$0xff]
      %v1677 = vld [vmem:[#allocation2 + $0x1a] sm:$0xff]
      %v1678 = vld [vmem:[#allocation2 + $0x22] sm:$0xff]
      %v1679 = vld [vmem:[#allocation2 + $0x2a] sm:$0xff]
      %v1680 = vld [vmem:[#allocation2 + $0x32] sm:$0xff]
      %v1681 = vld [vmem:[#allocation2 + $0x3a] sm:$0xff]
      %v1682 = vld [vmem:[#allocation2 + $0x42] sm:$0xff]
      %v1683 = vld [vmem:[#allocation2 + $0x4a] sm:$0xff]
      %v1684 = vld [vmem:[#allocation2 + $0x52] sm:$0xff]
      %v1685 = vld [vmem:[#allocation2 + $0x5a] sm:$0xff]
      %v1686 = vld [vmem:[#allocation2 + $0x62] sm:$0xff]
      %v1687 = vld [vmem:[#allocation2 + $0x6a] sm:$0xff]
      %v1688 = vld [vmem:[#allocation2 + $0x72] sm:$0xff]
      %v1689 = vld [vmem:[#allocation2 + $0x7a] sm:$0xff]
      %v1690 = vld [vmem:[#allocation2 + $0x82] sm:$0xff]
      %v1691 = vld [vmem:[#allocation2 + $0x8a] sm:$0xff]
      %s1692 = scalar_lea.vmem %s3, 16
      %v1693 = vld [vmem:[%s1692] sm:$0xff]
      %v1695 = vsel %vm225, %v1674, 0
      %v1698 = vsel %vm225, %v1675, 0
      %v1701 = vsel %vm225, %v1676, 0
      %v1704 = vsel %vm225, %v1677, 0
      %v1707 = vsel %vm225, %v1678, 0
      %v1710 = vsel %vm225, %v1679, 0
      %v1713 = vsel %vm225, %v1680, 0
      %v1716 = vsel %vm225, %v1681, 0
      %v1719 = vsel %vm225, %v1682, 0
      %v1722 = vsel %vm225, %v1683, 0
      %v1725 = vsel %vm225, %v1684, 0
      %v1728 = vsel %vm225, %v1685, 0
      %v1731 = vsel %vm225, %v1686, 0
      %v1734 = vsel %vm225, %v1687, 0
      %v1737 = vsel %vm225, %v1688, 0
      %v1740 = vsel %vm225, %v1689, 0
      %v1743 = vsel %vm225, %v1690, 0
      %v1746 = vsel %vm225, %v1691, 0
      %1748 = vmatprep.subr.mxu0 0.0
      %1749 = vmatpush1.msra.mxu0 %v1693
      %1750 = vmatprep.subr.mxu0 0.0
      %1751 = vmatpush1.msra.mxu0 0.0
      %1752 = vmatprep.subr.mxu0 0.0
      %1753 = vmatpush1.msra.mxu0 0.0
      %1754 = vmatprep.subr.mxu0 0.0
      %1755 = vmatpush1.msra.mxu0 0.0
      %1756 = vmatprep.subr.mxu0 0.0
      %1757 = vmatpush1.msra.mxu0 0.0
      %1758 = vmatprep.subr.mxu0 0.0
      %1759 = vmatpush1.msra.mxu0 0.0
      %1760 = vmatprep.subr.mxu0 0.0
      %1761 = vmatpush1.msra.mxu0 0.0
      %1762 = vmatprep.subr.mxu0 0.0
      %1763 = vmatpush1.msra.mxu0 0.0
      %1764 = vmatprep.subr.mxu0 0.0
      %1765 = vmatpush1.msra.mxu0 0.0
      %1766 = vmatprep.subr.mxu0 0.0
      %1767 = vmatpush1.msra.mxu0 0.0
      %1768 = vmatprep.subr.mxu0 0.0
      %1769 = vmatpush1.msra.mxu0 0.0
      %1770 = vmatprep.subr.mxu0 0.0
      %1771 = vmatpush1.msra.mxu0 0.0
      %1772 = vmatprep.subr.mxu0 0.0
      %1773 = vmatpush1.msra.mxu0 0.0
      %1774 = vmatprep.subr.mxu0 0.0
      %1775 = vmatpush1.msra.mxu0 0.0
      %1776 = vmatprep.subr.mxu0 0.0
      %1777 = vmatpush1.msra.mxu0 0.0
      %1778 = vmatprep.subr.mxu0 0.0
      %1779 = vmatpush1.msra.mxu0 0.0
      %1780 = vmatprep.subr.mxu0 0.0
      %1781 = vmatpush1.msra.mxu0 0.0
      %1782 = vmatprep.subr.mxu0 0.0
      %1783 = vmatpush1.msra.mxu0 0.0
      %1784 = vmatprep.subr.mxu0 0.0
      %1785 = vmatpush1.msra.mxu0 0.0
      %1786 = vmatprep.subr.mxu0 0.0
      %1787 = vmatpush1.msra.mxu0 0.0
      %1788 = vmatprep.subr.mxu0 0.0
      %1789 = vmatpush1.msra.mxu0 0.0
      %1790 = vmatprep.subr.mxu0 0.0
      %1791 = vmatpush1.msra.mxu0 0.0
      %1792 = vmatprep.subr.mxu0 0.0
      %1793 = vmatpush1.msra.mxu0 0.0
      %1794 = vmatprep.subr.mxu0 0.0
      %1795 = vmatpush1.msra.mxu0 0.0
      %1796 = vmatprep.subr.mxu0 0.0
      %1797 = vmatpush1.msra.mxu0 0.0
      %1798 = vmatprep.subr.mxu0 0.0
      %1799 = vmatpush1.msra.mxu0 0.0
      %1800 = vmatprep.subr.mxu0 0.0
      %1801 = vmatpush1.msra.mxu0 0.0
      %1802 = vmatprep.subr.mxu0 0.0
      %1803 = vmatpush1.msra.mxu0 0.0
      %1804 = vmatprep.subr.mxu0 0.0
      %1805 = vmatpush1.msra.mxu0 0.0
      %1806 = vmatprep.subr.mxu0 0.0
      %1807 = vmatpush1.msra.mxu0 0.0
      %1808 = vmatprep.subr.mxu0 0.0
      %1809 = vmatpush1.msra.mxu0 0.0
      %1810 = vmatprep.subr.mxu0 0.0
      %1811 = vmatpush1.msra.mxu0 0.0
      %1812 = vmatprep.mubr.f32.mxu0 0.0
      %1813 = vmatmul.mubr.f32.gmra.mrb[0].mxu0 %v1695
      %v1814 = vpop.f32.mrb[0].mxu0
      %v1815 = vadd.f32 0.0, %v1814
      %v1816 = vpop.f32.mrb[0].mxu0
      %1817 = vmatprep.mubr.f32.mxu0 0.0
      %1818 = vmatmul.mubr.f32.gmra.mrb[0].mxu0 %v1698
      %v1819 = vpop.f32.mrb[0].mxu0
      %v1820 = vadd.f32 0.0, %v1819
      %v1821 = vpop.f32.mrb[0].mxu0
      %1822 = vmatprep.mubr.f32.mxu0 0.0
      %1823 = vmatmul.mubr.f32.gmra.mrb[0].mxu0 %v1701
      %v1824 = vpop.f32.mrb[0].mxu0
      %v1825 = vadd.f32 0.0, %v1824
      %v1826 = vpop.f32.mrb[0].mxu0
      %1827 = vmatprep.mubr.f32.mxu0 0.0
      %1828 = vmatmul.mubr.f32.gmra.mrb[0].mxu0 %v1704
      %v1829 = vpop.f32.mrb[0].mxu0
      %v1830 = vadd.f32 0.0, %v1829
      %v1831 = vpop.f32.mrb[0].mxu0
      %1832 = vmatprep.mubr.f32.mxu0 0.0
      %1833 = vmatmul.mubr.f32.gmra.mrb[0].mxu0 %v1707
      %v1834 = vpop.f32.mrb[0].mxu0
      %v1835 = vadd.f32 0.0, %v1834
      %v1836 = vpop.f32.mrb[0].mxu0
      %1837 = vmatprep.mubr.f32.mxu0 0.0
      %1838 = vmatmul.mubr.f32.gmra.mrb[0].mxu0 %v1710
      %v1839 = vpop.f32.mrb[0].mxu0
      %v1840 = vadd.f32 0.0, %v1839
      %v1841 = vpop.f32.mrb[0].mxu0
      %1842 = vmatprep.mubr.f32.mxu0 0.0
      %1843 = vmatmul.mubr.f32.gmra.mrb[0].mxu0 %v1713
      %v1844 = vpop.f32.mrb[0].mxu0
      %v1845 = vadd.f32 0.0, %v1844
      %v1846 = vpop.f32.mrb[0].mxu0
      %1847 = vmatprep.mubr.f32.mxu0 0.0
      %1848 = vmatmul.mubr.f32.gmra.mrb[0].mxu0 %v1716
      %v1849 = vpop.f32.mrb[0].mxu0
      %v1850 = vadd.f32 0.0, %v1849
      %v1851 = vpop.f32.mrb[0].mxu0
      %1852 = vmatprep.mubr.f32.mxu0 0.0
      %1853 = vmatmul.mubr.f32.gmra.mrb[0].mxu0 %v1719
      %v1854 = vpop.f32.mrb[0].mxu0
      %v1855 = vadd.f32 0.0, %v1854
      %v1856 = vpop.f32.mrb[0].mxu0
      %1857 = vmatprep.mubr.f32.mxu0 0.0
      %1858 = vmatmul.mubr.f32.gmra.mrb[0].mxu0 %v1722
      %v1859 = vpop.f32.mrb[0].mxu0
      %v1860 = vadd.f32 0.0, %v1859
      %v1861 = vpop.f32.mrb[0].mxu0
      %1862 = vmatprep.mubr.f32.mxu0 0.0
      %1863 = vmatmul.mubr.f32.gmra.mrb[0].mxu0 %v1725
      %v1864 = vpop.f32.mrb[0].mxu0
      %v1865 = vadd.f32 0.0, %v1864
      %v1866 = vpop.f32.mrb[0].mxu0
      %1867 = vmatprep.mubr.f32.mxu0 0.0
      %1868 = vmatmul.mubr.f32.gmra.mrb[0].mxu0 %v1728
      %v1869 = vpop.f32.mrb[0].mxu0
      %v1870 = vadd.f32 0.0, %v1869
      %v1871 = vpop.f32.mrb[0].mxu0
      %1872 = vmatprep.mubr.f32.mxu0 0.0
      %1873 = vmatmul.mubr.f32.gmra.mrb[0].mxu0 %v1731
      %v1874 = vpop.f32.mrb[0].mxu0
      %v1875 = vadd.f32 0.0, %v1874
      %v1876 = vpop.f32.mrb[0].mxu0
      %1877 = vmatprep.mubr.f32.mxu0 0.0
      %1878 = vmatmul.mubr.f32.gmra.mrb[0].mxu0 %v1734
      %v1879 = vpop.f32.mrb[0].mxu0
      %v1880 = vadd.f32 0.0, %v1879
      %v1881 = vpop.f32.mrb[0].mxu0
      %1882 = vmatprep.mubr.f32.mxu0 0.0
      %1883 = vmatmul.mubr.f32.gmra.mrb[0].mxu0 %v1737
      %v1884 = vpop.f32.mrb[0].mxu0
      %v1885 = vadd.f32 0.0, %v1884
      %v1886 = vpop.f32.mrb[0].mxu0
      %1887 = vmatprep.mubr.f32.mxu0 0.0
      %1888 = vmatmul.mubr.f32.gmra.mrb[0].mxu0 %v1740
      %v1889 = vpop.f32.mrb[0].mxu0
      %v1890 = vadd.f32 0.0, %v1889
      %v1891 = vpop.f32.mrb[0].mxu0
      %1892 = vmatprep.mubr.f32.mxu0 0.0
      %1893 = vmatmul.mubr.f32.gmra.mrb[0].mxu0 %v1743
      %v1894 = vpop.f32.mrb[0].mxu0
      %v1895 = vadd.f32 0.0, %v1894
      %v1896 = vpop.f32.mrb[0].mxu0
      %1897 = vmatprep.mubr.f32.mxu0 0.0
      %1898 = vmatmul.mubr.f32.gmra.mrb[0].mxu0 %v1746
      %v1899 = vpop.f32.mrb[0].mxu0
      %v1900 = vadd.f32 0.0, %v1899
      %v1901 = vpop.f32.mrb[0].mxu0
      %1902 = vdwg.mxu0
      %v1903 = vadd.f32 %v1656, %v1815
      %v1904 = vadd.f32 %v1657, %v1820
      %v1905 = vadd.f32 %v1658, %v1825
      %v1906 = vadd.f32 %v1659, %v1830
      %v1907 = vadd.f32 %v1660, %v1835
      %v1908 = vadd.f32 %v1661, %v1840
      %v1909 = vadd.f32 %v1662, %v1845
      %v1910 = vadd.f32 %v1663, %v1850
      %v1911 = vadd.f32 %v1664, %v1855
      %v1912 = vadd.f32 %v1665, %v1860
      %v1913 = vadd.f32 %v1666, %v1865
      %v1914 = vadd.f32 %v1667, %v1870
      %v1915 = vadd.f32 %v1668, %v1875
      %v1916 = vadd.f32 %v1669, %v1880
      %v1917 = vadd.f32 %v1670, %v1885
      %v1918 = vadd.f32 %v1671, %v1890
      %v1919 = vadd.f32 %v1672, %v1895
      %v1920 = vadd.f32 %v1673, %v1900
      %v1921 = vld [vmem:[#allocation2 + $0x12] sm:$0xff]
      %v1922 = vld [vmem:[#allocation2 + $0x1a] sm:$0xff]
      %v1923 = vld [vmem:[#allocation2 + $0x22] sm:$0xff]
      %v1924 = vld [vmem:[#allocation2 + $0x2a] sm:$0xff]
      %v1925 = vld [vmem:[#allocation2 + $0x32] sm:$0xff]
      %v1926 = vld [vmem:[#allocation2 + $0x3a] sm:$0xff]
      %v1927 = vld [vmem:[#allocation2 + $0x42] sm:$0xff]
      %v1928 = vld [vmem:[#allocation2 + $0x4a] sm:$0xff]
      %v1929 = vld [vmem:[#allocation2 + $0x52] sm:$0xff]
      %v1930 = vld [vmem:[#allocation2 + $0x5a] sm:$0xff]
      %v1931 = vld [vmem:[#allocation2 + $0x62] sm:$0xff]
      %v1932 = vld [vmem:[#allocation2 + $0x6a] sm:$0xff]
      %v1933 = vld [vmem:[#allocation2 + $0x72] sm:$0xff]
      %v1934 = vld [vmem:[#allocation2 + $0x7a] sm:$0xff]
      %v1935 = vld [vmem:[#allocation2 + $0x82] sm:$0xff]
      %v1936 = vld [vmem:[#allocation2 + $0x8a] sm:$0xff]
      %v1937 = vld [vmem:[#allocation2 + $0x92] sm:$0xff]
      %v1938 = vld [vmem:[#allocation2 + $0x9a] sm:$0xff]
      %s1939 = scalar_lea.vmem %s3, 24
      %v1940 = vld [vmem:[%s1939] sm:$0xff]
      %v1942 = vsel %vm225, %v1921, 0
      %v1945 = vsel %vm225, %v1922, 0
      %v1948 = vsel %vm225, %v1923, 0
      %v1951 = vsel %vm225, %v1924, 0
      %v1954 = vsel %vm225, %v1925, 0
      %v1957 = vsel %vm225, %v1926, 0
      %v1960 = vsel %vm225, %v1927, 0
      %v1963 = vsel %vm225, %v1928, 0
      %v1966 = vsel %vm225, %v1929, 0
      %v1969 = vsel %vm225, %v1930, 0
      %v1972 = vsel %vm225, %v1931, 0
      %v1975 = vsel %vm225, %v1932, 0
      %v1978 = vsel %vm225, %v1933, 0
      %v1981 = vsel %vm225, %v1934, 0
      %v1984 = vsel %vm225, %v1935, 0
      %v1987 = vsel %vm225, %v1936, 0
      %v1990 = vsel %vm225, %v1937, 0
      %v1993 = vsel %vm225, %v1938, 0
      %1995 = vmatprep.subr.mxu0 0.0
      %1996 = vmatpush1.msra.mxu0 %v1940
      %1997 = vmatprep.subr.mxu0 0.0
      %1998 = vmatpush1.msra.mxu0 0.0
      %1999 = vmatprep.subr.mxu0 0.0
      %2000 = vmatpush1.msra.mxu0 0.0
      %2001 = vmatprep.subr.mxu0 0.0
      %2002 = vmatpush1.msra.mxu0 0.0
      %2003 = vmatprep.subr.mxu0 0.0
      %2004 = vmatpush1.msra.mxu0 0.0
      %2005 = vmatprep.subr.mxu0 0.0
      %2006 = vmatpush1.msra.mxu0 0.0
      %2007 = vmatprep.subr.mxu0 0.0
      %2008 = vmatpush1.msra.mxu0 0.0
      %2009 = vmatprep.subr.mxu0 0.0
      %2010 = vmatpush1.msra.mxu0 0.0
      %2011 = vmatprep.subr.mxu0 0.0
      %2012 = vmatpush1.msra.mxu0 0.0
      %2013 = vmatprep.subr.mxu0 0.0
      %2014 = vmatpush1.msra.mxu0 0.0
      %2015 = vmatprep.subr.mxu0 0.0
      %2016 = vmatpush1.msra.mxu0 0.0
      %2017 = vmatprep.subr.mxu0 0.0
      %2018 = vmatpush1.msra.mxu0 0.0
      %2019 = vmatprep.subr.mxu0 0.0
      %2020 = vmatpush1.msra.mxu0 0.0
      %2021 = vmatprep.subr.mxu0 0.0
      %2022 = vmatpush1.msra.mxu0 0.0
      %2023 = vmatprep.subr.mxu0 0.0
      %2024 = vmatpush1.msra.mxu0 0.0
      %2025 = vmatprep.subr.mxu0 0.0
      %2026 = vmatpush1.msra.mxu0 0.0
      %2027 = vmatprep.subr.mxu0 0.0
      %2028 = vmatpush1.msra.mxu0 0.0
      %2029 = vmatprep.subr.mxu0 0.0
      %2030 = vmatpush1.msra.mxu0 0.0
      %2031 = vmatprep.subr.mxu0 0.0
      %2032 = vmatpush1.msra.mxu0 0.0
      %2033 = vmatprep.subr.mxu0 0.0
      %2034 = vmatpush1.msra.mxu0 0.0
      %2035 = vmatprep.subr.mxu0 0.0
      %2036 = vmatpush1.msra.mxu0 0.0
      %2037 = vmatprep.subr.mxu0 0.0
      %2038 = vmatpush1.msra.mxu0 0.0
      %2039 = vmatprep.subr.mxu0 0.0
      %2040 = vmatpush1.msra.mxu0 0.0
      %2041 = vmatprep.subr.mxu0 0.0
      %2042 = vmatpush1.msra.mxu0 0.0
      %2043 = vmatprep.subr.mxu0 0.0
      %2044 = vmatpush1.msra.mxu0 0.0
      %2045 = vmatprep.subr.mxu0 0.0
      %2046 = vmatpush1.msra.mxu0 0.0
      %2047 = vmatprep.subr.mxu0 0.0
      %2048 = vmatpush1.msra.mxu0 0.0
      %2049 = vmatprep.subr.mxu0 0.0
      %2050 = vmatpush1.msra.mxu0 0.0
      %2051 = vmatprep.subr.mxu0 0.0
      %2052 = vmatpush1.msra.mxu0 0.0
      %2053 = vmatprep.subr.mxu0 0.0
      %2054 = vmatpush1.msra.mxu0 0.0
      %2055 = vmatprep.subr.mxu0 0.0
      %2056 = vmatpush1.msra.mxu0 0.0
      %2057 = vmatprep.subr.mxu0 0.0
      %2058 = vmatpush1.msra.mxu0 0.0
      %2059 = vmatprep.mubr.f32.mxu0 0.0
      %2060 = vmatmul.mubr.f32.gmra.mrb[0].mxu0 %v1942
      %v2061 = vpop.f32.mrb[0].mxu0
      %v2062 = vadd.f32 0.0, %v2061
      %v2063 = vpop.f32.mrb[0].mxu0
      %2064 = vmatprep.mubr.f32.mxu0 0.0
      %2065 = vmatmul.mubr.f32.gmra.mrb[0].mxu0 %v1945
      %v2066 = vpop.f32.mrb[0].mxu0
      %v2067 = vadd.f32 0.0, %v2066
      %v2068 = vpop.f32.mrb[0].mxu0
      %2069 = vmatprep.mubr.f32.mxu0 0.0
      %2070 = vmatmul.mubr.f32.gmra.mrb[0].mxu0 %v1948
      %v2071 = vpop.f32.mrb[0].mxu0
      %v2072 = vadd.f32 0.0, %v2071
      %v2073 = vpop.f32.mrb[0].mxu0
      %2074 = vmatprep.mubr.f32.mxu0 0.0
      %2075 = vmatmul.mubr.f32.gmra.mrb[0].mxu0 %v1951
      %v2076 = vpop.f32.mrb[0].mxu0
      %v2077 = vadd.f32 0.0, %v2076
      %v2078 = vpop.f32.mrb[0].mxu0
      %2079 = vmatprep.mubr.f32.mxu0 0.0
      %2080 = vmatmul.mubr.f32.gmra.mrb[0].mxu0 %v1954
      %v2081 = vpop.f32.mrb[0].mxu0
      %v2082 = vadd.f32 0.0, %v2081
      %v2083 = vpop.f32.mrb[0].mxu0
      %2084 = vmatprep.mubr.f32.mxu0 0.0
      %2085 = vmatmul.mubr.f32.gmra.mrb[0].mxu0 %v1957
      %v2086 = vpop.f32.mrb[0].mxu0
      %v2087 = vadd.f32 0.0, %v2086
      %v2088 = vpop.f32.mrb[0].mxu0
      %2089 = vmatprep.mubr.f32.mxu0 0.0
      %2090 = vmatmul.mubr.f32.gmra.mrb[0].mxu0 %v1960
      %v2091 = vpop.f32.mrb[0].mxu0
      %v2092 = vadd.f32 0.0, %v2091
      %v2093 = vpop.f32.mrb[0].mxu0
      %2094 = vmatprep.mubr.f32.mxu0 0.0
      %2095 = vmatmul.mubr.f32.gmra.mrb[0].mxu0 %v1963
      %v2096 = vpop.f32.mrb[0].mxu0
      %v2097 = vadd.f32 0.0, %v2096
      %v2098 = vpop.f32.mrb[0].mxu0
      %2099 = vmatprep.mubr.f32.mxu0 0.0
      %2100 = vmatmul.mubr.f32.gmra.mrb[0].mxu0 %v1966
      %v2101 = vpop.f32.mrb[0].mxu0
      %v2102 = vadd.f32 0.0, %v2101
      %v2103 = vpop.f32.mrb[0].mxu0
      %2104 = vmatprep.mubr.f32.mxu0 0.0
      %2105 = vmatmul.mubr.f32.gmra.mrb[0].mxu0 %v1969
      %v2106 = vpop.f32.mrb[0].mxu0
      %v2107 = vadd.f32 0.0, %v2106
      %v2108 = vpop.f32.mrb[0].mxu0
      %2109 = vmatprep.mubr.f32.mxu0 0.0
      %2110 = vmatmul.mubr.f32.gmra.mrb[0].mxu0 %v1972
      %v2111 = vpop.f32.mrb[0].mxu0
      %v2112 = vadd.f32 0.0, %v2111
      %v2113 = vpop.f32.mrb[0].mxu0
      %2114 = vmatprep.mubr.f32.mxu0 0.0
      %2115 = vmatmul.mubr.f32.gmra.mrb[0].mxu0 %v1975
      %v2116 = vpop.f32.mrb[0].mxu0
      %v2117 = vadd.f32 0.0, %v2116
      %v2118 = vpop.f32.mrb[0].mxu0
      %2119 = vmatprep.mubr.f32.mxu0 0.0
      %2120 = vmatmul.mubr.f32.gmra.mrb[0].mxu0 %v1978
      %v2121 = vpop.f32.mrb[0].mxu0
      %v2122 = vadd.f32 0.0, %v2121
      %v2123 = vpop.f32.mrb[0].mxu0
      %2124 = vmatprep.mubr.f32.mxu0 0.0
      %2125 = vmatmul.mubr.f32.gmra.mrb[0].mxu0 %v1981
      %v2126 = vpop.f32.mrb[0].mxu0
      %v2127 = vadd.f32 0.0, %v2126
      %v2128 = vpop.f32.mrb[0].mxu0
      %2129 = vmatprep.mubr.f32.mxu0 0.0
      %2130 = vmatmul.mubr.f32.gmra.mrb[0].mxu0 %v1984
      %v2131 = vpop.f32.mrb[0].mxu0
      %v2132 = vadd.f32 0.0, %v2131
      %v2133 = vpop.f32.mrb[0].mxu0
      %2134 = vmatprep.mubr.f32.mxu0 0.0
      %2135 = vmatmul.mubr.f32.gmra.mrb[0].mxu0 %v1987
      %v2136 = vpop.f32.mrb[0].mxu0
      %v2137 = vadd.f32 0.0, %v2136
      %v2138 = vpop.f32.mrb[0].mxu0
      %2139 = vmatprep.mubr.f32.mxu0 0.0
      %2140 = vmatmul.mubr.f32.gmra.mrb[0].mxu0 %v1990
      %v2141 = vpop.f32.mrb[0].mxu0
      %v2142 = vadd.f32 0.0, %v2141
      %v2143 = vpop.f32.mrb[0].mxu0
      %2144 = vmatprep.mubr.f32.mxu0 0.0
      %2145 = vmatmul.mubr.f32.gmra.mrb[0].mxu0 %v1993
      %v2146 = vpop.f32.mrb[0].mxu0
      %v2147 = vadd.f32 0.0, %v2146
      %v2148 = vpop.f32.mrb[0].mxu0
      %2149 = vdwg.mxu0
      %v2150 = vadd.f32 %v1903, %v2062
      %v2151 = vadd.f32 %v1904, %v2067
      %v2152 = vadd.f32 %v1905, %v2072
      %v2153 = vadd.f32 %v1906, %v2077
      %v2154 = vadd.f32 %v1907, %v2082
      %v2155 = vadd.f32 %v1908, %v2087
      %v2156 = vadd.f32 %v1909, %v2092
      %v2157 = vadd.f32 %v1910, %v2097
      %v2158 = vadd.f32 %v1911, %v2102
      %v2159 = vadd.f32 %v1912, %v2107
      %v2160 = vadd.f32 %v1913, %v2112
      %v2161 = vadd.f32 %v1914, %v2117
      %v2162 = vadd.f32 %v1915, %v2122
      %v2163 = vadd.f32 %v1916, %v2127
      %v2164 = vadd.f32 %v1917, %v2132
      %v2165 = vadd.f32 %v1918, %v2137
      %v2166 = vadd.f32 %v1919, %v2142
      %v2167 = vadd.f32 %v1920, %v2147
      %v2168 = vld [vmem:[#allocation2 + $0x13] sm:$0xff]
      %v2169 = vld [vmem:[#allocation2 + $0x1b] sm:$0xff]
      %v2170 = vld [vmem:[#allocation2 + $0x23] sm:$0xff]
      %v2171 = vld [vmem:[#allocation2 + $0x2b] sm:$0xff]
      %v2172 = vld [vmem:[#allocation2 + $0x33] sm:$0xff]
      %v2173 = vld [vmem:[#allocation2 + $0x3b] sm:$0xff]
      %v2174 = vld [vmem:[#allocation2 + $0x43] sm:$0xff]
      %v2175 = vld [vmem:[#allocation2 + $0x4b] sm:$0xff]
      %v2176 = vld [vmem:[#allocation2 + $0x53] sm:$0xff]
      %v2177 = vld [vmem:[#allocation2 + $0x5b] sm:$0xff]
      %v2178 = vld [vmem:[#allocation2 + $0x63] sm:$0xff]
      %v2179 = vld [vmem:[#allocation2 + $0x6b] sm:$0xff]
      %v2180 = vld [vmem:[#allocation2 + $0x73] sm:$0xff]
      %v2181 = vld [vmem:[#allocation2 + $0x7b] sm:$0xff]
      %v2182 = vld [vmem:[#allocation2 + $0x83] sm:$0xff]
      %v2183 = vld [vmem:[#allocation2 + $0x8b] sm:$0xff]
      %v2184 = vld [vmem:[#allocation2 + $0x93] sm:$0xff]
      %v2185 = vld [vmem:[#allocation2 + $0x9b] sm:$0xff]
      %s2186 = scalar_lea.vmem %s3, 32
      %v2187 = vld [vmem:[%s2186] sm:$0xff]
      %v2189 = vsel %vm225, %v2168, 0
      %v2192 = vsel %vm225, %v2169, 0
      %v2195 = vsel %vm225, %v2170, 0
      %v2198 = vsel %vm225, %v2171, 0
      %v2201 = vsel %vm225, %v2172, 0
      %v2204 = vsel %vm225, %v2173, 0
      %v2207 = vsel %vm225, %v2174, 0
      %v2210 = vsel %vm225, %v2175, 0
      %v2213 = vsel %vm225, %v2176, 0
      %v2216 = vsel %vm225, %v2177, 0
      %v2219 = vsel %vm225, %v2178, 0
      %v2222 = vsel %vm225, %v2179, 0
      %v2225 = vsel %vm225, %v2180, 0
      %v2228 = vsel %vm225, %v2181, 0
      %v2231 = vsel %vm225, %v2182, 0
      %v2234 = vsel %vm225, %v2183, 0
      %v2237 = vsel %vm225, %v2184, 0
      %v2240 = vsel %vm225, %v2185, 0
      %2242 = vmatprep.subr.mxu0 0.0
      %2243 = vmatpush1.msra.mxu0 %v2187
      %2244 = vmatprep.subr.mxu0 0.0
      %2245 = vmatpush1.msra.mxu0 0.0
      %2246 = vmatprep.subr.mxu0 0.0
      %2247 = vmatpush1.msra.mxu0 0.0
      %2248 = vmatprep.subr.mxu0 0.0
      %2249 = vmatpush1.msra.mxu0 0.0
      %2250 = vmatprep.subr.mxu0 0.0
      %2251 = vmatpush1.msra.mxu0 0.0
      %2252 = vmatprep.subr.mxu0 0.0
      %2253 = vmatpush1.msra.mxu0 0.0
      %2254 = vmatprep.subr.mxu0 0.0
      %2255 = vmatpush1.msra.mxu0 0.0
      %2256 = vmatprep.subr.mxu0 0.0
      %2257 = vmatpush1.msra.mxu0 0.0
      %2258 = vmatprep.subr.mxu0 0.0
      %2259 = vmatpush1.msra.mxu0 0.0
      %2260 = vmatprep.subr.mxu0 0.0
      %2261 = vmatpush1.msra.mxu0 0.0
      %2262 = vmatprep.subr.mxu0 0.0
      %2263 = vmatpush1.msra.mxu0 0.0
      %2264 = vmatprep.subr.mxu0 0.0
      %2265 = vmatpush1.msra.mxu0 0.0
      %2266 = vmatprep.subr.mxu0 0.0
      %2267 = vmatpush1.msra.mxu0 0.0
      %2268 = vmatprep.subr.mxu0 0.0
      %2269 = vmatpush1.msra.mxu0 0.0
      %2270 = vmatprep.subr.mxu0 0.0
      %2271 = vmatpush1.msra.mxu0 0.0
      %2272 = vmatprep.subr.mxu0 0.0
      %2273 = vmatpush1.msra.mxu0 0.0
      %2274 = vmatprep.subr.mxu0 0.0
      %2275 = vmatpush1.msra.mxu0 0.0
      %2276 = vmatprep.subr.mxu0 0.0
      %2277 = vmatpush1.msra.mxu0 0.0
      %2278 = vmatprep.subr.mxu0 0.0
      %2279 = vmatpush1.msra.mxu0 0.0
      %2280 = vmatprep.subr.mxu0 0.0
      %2281 = vmatpush1.msra.mxu0 0.0
      %2282 = vmatprep.subr.mxu0 0.0
      %2283 = vmatpush1.msra.mxu0 0.0
      %2284 = vmatprep.subr.mxu0 0.0
      %2285 = vmatpush1.msra.mxu0 0.0
      %2286 = vmatprep.subr.mxu0 0.0
      %2287 = vmatpush1.msra.mxu0 0.0
      %2288 = vmatprep.subr.mxu0 0.0
      %2289 = vmatpush1.msra.mxu0 0.0
      %2290 = vmatprep.subr.mxu0 0.0
      %2291 = vmatpush1.msra.mxu0 0.0
      %2292 = vmatprep.subr.mxu0 0.0
      %2293 = vmatpush1.msra.mxu0 0.0
      %2294 = vmatprep.subr.mxu0 0.0
      %2295 = vmatpush1.msra.mxu0 0.0
      %2296 = vmatprep.subr.mxu0 0.0
      %2297 = vmatpush1.msra.mxu0 0.0
      %2298 = vmatprep.subr.mxu0 0.0
      %2299 = vmatpush1.msra.mxu0 0.0
      %2300 = vmatprep.subr.mxu0 0.0
      %2301 = vmatpush1.msra.mxu0 0.0
      %2302 = vmatprep.subr.mxu0 0.0
      %2303 = vmatpush1.msra.mxu0 0.0
      %2304 = vmatprep.subr.mxu0 0.0
      %2305 = vmatpush1.msra.mxu0 0.0
      %2306 = vmatprep.mubr.f32.mxu0 0.0
      %2307 = vmatmul.mubr.f32.gmra.mrb[0].mxu0 %v2189
      %v2308 = vpop.f32.mrb[0].mxu0
      %v2309 = vadd.f32 0.0, %v2308
      %v2310 = vpop.f32.mrb[0].mxu0
      %2311 = vmatprep.mubr.f32.mxu0 0.0
      %2312 = vmatmul.mubr.f32.gmra.mrb[0].mxu0 %v2192
      %v2313 = vpop.f32.mrb[0].mxu0
      %v2314 = vadd.f32 0.0, %v2313
      %v2315 = vpop.f32.mrb[0].mxu0
      %2316 = vmatprep.mubr.f32.mxu0 0.0
      %2317 = vmatmul.mubr.f32.gmra.mrb[0].mxu0 %v2195
      %v2318 = vpop.f32.mrb[0].mxu0
      %v2319 = vadd.f32 0.0, %v2318
      %v2320 = vpop.f32.mrb[0].mxu0
      %2321 = vmatprep.mubr.f32.mxu0 0.0
      %2322 = vmatmul.mubr.f32.gmra.mrb[0].mxu0 %v2198
      %v2323 = vpop.f32.mrb[0].mxu0
      %v2324 = vadd.f32 0.0, %v2323
      %v2325 = vpop.f32.mrb[0].mxu0
      %2326 = vmatprep.mubr.f32.mxu0 0.0
      %2327 = vmatmul.mubr.f32.gmra.mrb[0].mxu0 %v2201
      %v2328 = vpop.f32.mrb[0].mxu0
      %v2329 = vadd.f32 0.0, %v2328
      %v2330 = vpop.f32.mrb[0].mxu0
      %2331 = vmatprep.mubr.f32.mxu0 0.0
      %2332 = vmatmul.mubr.f32.gmra.mrb[0].mxu0 %v2204
      %v2333 = vpop.f32.mrb[0].mxu0
      %v2334 = vadd.f32 0.0, %v2333
      %v2335 = vpop.f32.mrb[0].mxu0
      %2336 = vmatprep.mubr.f32.mxu0 0.0
      %2337 = vmatmul.mubr.f32.gmra.mrb[0].mxu0 %v2207
      %v2338 = vpop.f32.mrb[0].mxu0
      %v2339 = vadd.f32 0.0, %v2338
      %v2340 = vpop.f32.mrb[0].mxu0
      %2341 = vmatprep.mubr.f32.mxu0 0.0
      %2342 = vmatmul.mubr.f32.gmra.mrb[0].mxu0 %v2210
      %v2343 = vpop.f32.mrb[0].mxu0
      %v2344 = vadd.f32 0.0, %v2343
      %v2345 = vpop.f32.mrb[0].mxu0
      %2346 = vmatprep.mubr.f32.mxu0 0.0
      %2347 = vmatmul.mubr.f32.gmra.mrb[0].mxu0 %v2213
      %v2348 = vpop.f32.mrb[0].mxu0
      %v2349 = vadd.f32 0.0, %v2348
      %v2350 = vpop.f32.mrb[0].mxu0
      %2351 = vmatprep.mubr.f32.mxu0 0.0
      %2352 = vmatmul.mubr.f32.gmra.mrb[0].mxu0 %v2216
      %v2353 = vpop.f32.mrb[0].mxu0
      %v2354 = vadd.f32 0.0, %v2353
      %v2355 = vpop.f32.mrb[0].mxu0
      %2356 = vmatprep.mubr.f32.mxu0 0.0
      %2357 = vmatmul.mubr.f32.gmra.mrb[0].mxu0 %v2219
      %v2358 = vpop.f32.mrb[0].mxu0
      %v2359 = vadd.f32 0.0, %v2358
      %v2360 = vpop.f32.mrb[0].mxu0
      %2361 = vmatprep.mubr.f32.mxu0 0.0
      %2362 = vmatmul.mubr.f32.gmra.mrb[0].mxu0 %v2222
      %v2363 = vpop.f32.mrb[0].mxu0
      %v2364 = vadd.f32 0.0, %v2363
      %v2365 = vpop.f32.mrb[0].mxu0
      %2366 = vmatprep.mubr.f32.mxu0 0.0
      %2367 = vmatmul.mubr.f32.gmra.mrb[0].mxu0 %v2225
      %v2368 = vpop.f32.mrb[0].mxu0
      %v2369 = vadd.f32 0.0, %v2368
      %v2370 = vpop.f32.mrb[0].mxu0
      %2371 = vmatprep.mubr.f32.mxu0 0.0
      %2372 = vmatmul.mubr.f32.gmra.mrb[0].mxu0 %v2228
      %v2373 = vpop.f32.mrb[0].mxu0
      %v2374 = vadd.f32 0.0, %v2373
      %v2375 = vpop.f32.mrb[0].mxu0
      %2376 = vmatprep.mubr.f32.mxu0 0.0
      %2377 = vmatmul.mubr.f32.gmra.mrb[0].mxu0 %v2231
      %v2378 = vpop.f32.mrb[0].mxu0
      %v2379 = vadd.f32 0.0, %v2378
      %v2380 = vpop.f32.mrb[0].mxu0
      %2381 = vmatprep.mubr.f32.mxu0 0.0
      %2382 = vmatmul.mubr.f32.gmra.mrb[0].mxu0 %v2234
      %v2383 = vpop.f32.mrb[0].mxu0
      %v2384 = vadd.f32 0.0, %v2383
      %v2385 = vpop.f32.mrb[0].mxu0
      %2386 = vmatprep.mubr.f32.mxu0 0.0
      %2387 = vmatmul.mubr.f32.gmra.mrb[0].mxu0 %v2237
      %v2388 = vpop.f32.mrb[0].mxu0
      %v2389 = vadd.f32 0.0, %v2388
      %v2390 = vpop.f32.mrb[0].mxu0
      %2391 = vmatprep.mubr.f32.mxu0 0.0
      %2392 = vmatmul.mubr.f32.gmra.mrb[0].mxu0 %v2240
      %v2393 = vpop.f32.mrb[0].mxu0
      %v2394 = vadd.f32 0.0, %v2393
      %v2395 = vpop.f32.mrb[0].mxu0
      %2396 = vdwg.mxu0
      %v2397 = vadd.f32 %v2150, %v2309
      %v2398 = vadd.f32 %v2151, %v2314
      %v2399 = vadd.f32 %v2152, %v2319
      %v2400 = vadd.f32 %v2153, %v2324
      %v2401 = vadd.f32 %v2154, %v2329
      %v2402 = vadd.f32 %v2155, %v2334
      %v2403 = vadd.f32 %v2156, %v2339
      %v2404 = vadd.f32 %v2157, %v2344
      %v2405 = vadd.f32 %v2158, %v2349
      %v2406 = vadd.f32 %v2159, %v2354
      %v2407 = vadd.f32 %v2160, %v2359
      %v2408 = vadd.f32 %v2161, %v2364
      %v2409 = vadd.f32 %v2162, %v2369
      %v2410 = vadd.f32 %v2163, %v2374
      %v2411 = vadd.f32 %v2164, %v2379
      %v2412 = vadd.f32 %v2165, %v2384
      %v2413 = vadd.f32 %v2166, %v2389
      %v2414 = vadd.f32 %v2167, %v2394
      %v2415 = vld [vmem:[#allocation2 + $0x14] sm:$0xff]
      %v2416 = vld [vmem:[#allocation2 + $0x1c] sm:$0xff]
      %v2417 = vld [vmem:[#allocation2 + $0x24] sm:$0xff]
      %v2418 = vld [vmem:[#allocation2 + $0x2c] sm:$0xff]
      %v2419 = vld [vmem:[#allocation2 + $0x34] sm:$0xff]
      %v2420 = vld [vmem:[#allocation2 + $0x3c] sm:$0xff]
      %v2421 = vld [vmem:[#allocation2 + $0x44] sm:$0xff]
      %v2422 = vld [vmem:[#allocation2 + $0x4c] sm:$0xff]
      %v2423 = vld [vmem:[#allocation2 + $0x54] sm:$0xff]
      %v2424 = vld [vmem:[#allocation2 + $0x5c] sm:$0xff]
      %v2425 = vld [vmem:[#allocation2 + $0x64] sm:$0xff]
      %v2426 = vld [vmem:[#allocation2 + $0x6c] sm:$0xff]
      %v2427 = vld [vmem:[#allocation2 + $0x74] sm:$0xff]
      %v2428 = vld [vmem:[#allocation2 + $0x7c] sm:$0xff]
      %v2429 = vld [vmem:[#allocation2 + $0x84] sm:$0xff]
      %v2430 = vld [vmem:[#allocation2 + $0x8c] sm:$0xff]
      %v2431 = vld [vmem:[#allocation2 + $0x94] sm:$0xff]
      %v2432 = vld [vmem:[#allocation2 + $0x9c] sm:$0xff]
      %s2433 = scalar_lea.vmem %s3, 40
      %v2434 = vld [vmem:[%s2433] sm:$0xff]
      %v2436 = vsel %vm225, %v2415, 0
      %v2439 = vsel %vm225, %v2416, 0
      %v2442 = vsel %vm225, %v2417, 0
      %v2445 = vsel %vm225, %v2418, 0
      %v2448 = vsel %vm225, %v2419, 0
      %v2451 = vsel %vm225, %v2420, 0
      %v2454 = vsel %vm225, %v2421, 0
      %v2457 = vsel %vm225, %v2422, 0
      %v2460 = vsel %vm225, %v2423, 0
      %v2463 = vsel %vm225, %v2424, 0
      %v2466 = vsel %vm225, %v2425, 0
      %v2469 = vsel %vm225, %v2426, 0
      %v2472 = vsel %vm225, %v2427, 0
      %v2475 = vsel %vm225, %v2428, 0
      %v2478 = vsel %vm225, %v2429, 0
      %v2481 = vsel %vm225, %v2430, 0
      %v2484 = vsel %vm225, %v2431, 0
      %v2487 = vsel %vm225, %v2432, 0
      %2489 = vmatprep.subr.mxu0 0.0
      %2490 = vmatpush1.msra.mxu0 %v2434
      %2491 = vmatprep.subr.mxu0 0.0
      %2492 = vmatpush1.msra.mxu0 0.0
      %2493 = vmatprep.subr.mxu0 0.0
      %2494 = vmatpush1.msra.mxu0 0.0
      %2495 = vmatprep.subr.mxu0 0.0
      %2496 = vmatpush1.msra.mxu0 0.0
      %2497 = vmatprep.subr.mxu0 0.0
      %2498 = vmatpush1.msra.mxu0 0.0
      %2499 = vmatprep.subr.mxu0 0.0
      %2500 = vmatpush1.msra.mxu0 0.0
      %2501 = vmatprep.subr.mxu0 0.0
      %2502 = vmatpush1.msra.mxu0 0.0
      %2503 = vmatprep.subr.mxu0 0.0
      %2504 = vmatpush1.msra.mxu0 0.0
      %2505 = vmatprep.subr.mxu0 0.0
      %2506 = vmatpush1.msra.mxu0 0.0
      %2507 = vmatprep.subr.mxu0 0.0
      %2508 = vmatpush1.msra.mxu0 0.0
      %2509 = vmatprep.subr.mxu0 0.0
      %2510 = vmatpush1.msra.mxu0 0.0
      %2511 = vmatprep.subr.mxu0 0.0
      %2512 = vmatpush1.msra.mxu0 0.0
      %2513 = vmatprep.subr.mxu0 0.0
      %2514 = vmatpush1.msra.mxu0 0.0
      %2515 = vmatprep.subr.mxu0 0.0
      %2516 = vmatpush1.msra.mxu0 0.0
      %2517 = vmatprep.subr.mxu0 0.0
      %2518 = vmatpush1.msra.mxu0 0.0
      %2519 = vmatprep.subr.mxu0 0.0
      %2520 = vmatpush1.msra.mxu0 0.0
      %2521 = vmatprep.subr.mxu0 0.0
      %2522 = vmatpush1.msra.mxu0 0.0
      %2523 = vmatprep.subr.mxu0 0.0
      %2524 = vmatpush1.msra.mxu0 0.0
      %2525 = vmatprep.subr.mxu0 0.0
      %2526 = vmatpush1.msra.mxu0 0.0
      %2527 = vmatprep.subr.mxu0 0.0
      %2528 = vmatpush1.msra.mxu0 0.0
      %2529 = vmatprep.subr.mxu0 0.0
      %2530 = vmatpush1.msra.mxu0 0.0
      %2531 = vmatprep.subr.mxu0 0.0
      %2532 = vmatpush1.msra.mxu0 0.0
      %2533 = vmatprep.subr.mxu0 0.0
      %2534 = vmatpush1.msra.mxu0 0.0
      %2535 = vmatprep.subr.mxu0 0.0
      %2536 = vmatpush1.msra.mxu0 0.0
      %2537 = vmatprep.subr.mxu0 0.0
      %2538 = vmatpush1.msra.mxu0 0.0
      %2539 = vmatprep.subr.mxu0 0.0
      %2540 = vmatpush1.msra.mxu0 0.0
      %2541 = vmatprep.subr.mxu0 0.0
      %2542 = vmatpush1.msra.mxu0 0.0
      %2543 = vmatprep.subr.mxu0 0.0
      %2544 = vmatpush1.msra.mxu0 0.0
      %2545 = vmatprep.subr.mxu0 0.0
      %2546 = vmatpush1.msra.mxu0 0.0
      %2547 = vmatprep.subr.mxu0 0.0
      %2548 = vmatpush1.msra.mxu0 0.0
      %2549 = vmatprep.subr.mxu0 0.0
      %2550 = vmatpush1.msra.mxu0 0.0
      %2551 = vmatprep.subr.mxu0 0.0
      %2552 = vmatpush1.msra.mxu0 0.0
      %2553 = vmatprep.mubr.f32.mxu0 0.0
      %2554 = vmatmul.mubr.f32.gmra.mrb[0].mxu0 %v2436
      %v2555 = vpop.f32.mrb[0].mxu0
      %v2556 = vadd.f32 0.0, %v2555
      %v2557 = vpop.f32.mrb[0].mxu0
      %2558 = vmatprep.mubr.f32.mxu0 0.0
      %2559 = vmatmul.mubr.f32.gmra.mrb[0].mxu0 %v2439
      %v2560 = vpop.f32.mrb[0].mxu0
      %v2561 = vadd.f32 0.0, %v2560
      %v2562 = vpop.f32.mrb[0].mxu0
      %2563 = vmatprep.mubr.f32.mxu0 0.0
      %2564 = vmatmul.mubr.f32.gmra.mrb[0].mxu0 %v2442
      %v2565 = vpop.f32.mrb[0].mxu0
      %v2566 = vadd.f32 0.0, %v2565
      %v2567 = vpop.f32.mrb[0].mxu0
      %2568 = vmatprep.mubr.f32.mxu0 0.0
      %2569 = vmatmul.mubr.f32.gmra.mrb[0].mxu0 %v2445
      %v2570 = vpop.f32.mrb[0].mxu0
      %v2571 = vadd.f32 0.0, %v2570
      %v2572 = vpop.f32.mrb[0].mxu0
      %2573 = vmatprep.mubr.f32.mxu0 0.0
      %2574 = vmatmul.mubr.f32.gmra.mrb[0].mxu0 %v2448
      %v2575 = vpop.f32.mrb[0].mxu0
      %v2576 = vadd.f32 0.0, %v2575
      %v2577 = vpop.f32.mrb[0].mxu0
      %2578 = vmatprep.mubr.f32.mxu0 0.0
      %2579 = vmatmul.mubr.f32.gmra.mrb[0].mxu0 %v2451
      %v2580 = vpop.f32.mrb[0].mxu0
      %v2581 = vadd.f32 0.0, %v2580
      %v2582 = vpop.f32.mrb[0].mxu0
      %2583 = vmatprep.mubr.f32.mxu0 0.0
      %2584 = vmatmul.mubr.f32.gmra.mrb[0].mxu0 %v2454
      %v2585 = vpop.f32.mrb[0].mxu0
      %v2586 = vadd.f32 0.0, %v2585
      %v2587 = vpop.f32.mrb[0].mxu0
      %2588 = vmatprep.mubr.f32.mxu0 0.0
      %2589 = vmatmul.mubr.f32.gmra.mrb[0].mxu0 %v2457
      %v2590 = vpop.f32.mrb[0].mxu0
      %v2591 = vadd.f32 0.0, %v2590
      %v2592 = vpop.f32.mrb[0].mxu0
      %2593 = vmatprep.mubr.f32.mxu0 0.0
      %2594 = vmatmul.mubr.f32.gmra.mrb[0].mxu0 %v2460
      %v2595 = vpop.f32.mrb[0].mxu0
      %v2596 = vadd.f32 0.0, %v2595
      %v2597 = vpop.f32.mrb[0].mxu0
      %2598 = vmatprep.mubr.f32.mxu0 0.0
      %2599 = vmatmul.mubr.f32.gmra.mrb[0].mxu0 %v2463
      %v2600 = vpop.f32.mrb[0].mxu0
      %v2601 = vadd.f32 0.0, %v2600
      %v2602 = vpop.f32.mrb[0].mxu0
      %2603 = vmatprep.mubr.f32.mxu0 0.0
      %2604 = vmatmul.mubr.f32.gmra.mrb[0].mxu0 %v2466
      %v2605 = vpop.f32.mrb[0].mxu0
      %v2606 = vadd.f32 0.0, %v2605
      %v2607 = vpop.f32.mrb[0].mxu0
      %2608 = vmatprep.mubr.f32.mxu0 0.0
      %2609 = vmatmul.mubr.f32.gmra.mrb[0].mxu0 %v2469
      %v2610 = vpop.f32.mrb[0].mxu0
      %v2611 = vadd.f32 0.0, %v2610
      %v2612 = vpop.f32.mrb[0].mxu0
      %2613 = vmatprep.mubr.f32.mxu0 0.0
      %2614 = vmatmul.mubr.f32.gmra.mrb[0].mxu0 %v2472
      %v2615 = vpop.f32.mrb[0].mxu0
      %v2616 = vadd.f32 0.0, %v2615
      %v2617 = vpop.f32.mrb[0].mxu0
      %2618 = vmatprep.mubr.f32.mxu0 0.0
      %2619 = vmatmul.mubr.f32.gmra.mrb[0].mxu0 %v2475
      %v2620 = vpop.f32.mrb[0].mxu0
      %v2621 = vadd.f32 0.0, %v2620
      %v2622 = vpop.f32.mrb[0].mxu0
      %2623 = vmatprep.mubr.f32.mxu0 0.0
      %2624 = vmatmul.mubr.f32.gmra.mrb[0].mxu0 %v2478
      %v2625 = vpop.f32.mrb[0].mxu0
      %v2626 = vadd.f32 0.0, %v2625
      %v2627 = vpop.f32.mrb[0].mxu0
      %2628 = vmatprep.mubr.f32.mxu0 0.0
      %2629 = vmatmul.mubr.f32.gmra.mrb[0].mxu0 %v2481
      %v2630 = vpop.f32.mrb[0].mxu0
      %v2631 = vadd.f32 0.0, %v2630
      %v2632 = vpop.f32.mrb[0].mxu0
      %2633 = vmatprep.mubr.f32.mxu0 0.0
      %2634 = vmatmul.mubr.f32.gmra.mrb[0].mxu0 %v2484
      %v2635 = vpop.f32.mrb[0].mxu0
      %v2636 = vadd.f32 0.0, %v2635
      %v2637 = vpop.f32.mrb[0].mxu0
      %2638 = vmatprep.mubr.f32.mxu0 0.0
      %2639 = vmatmul.mubr.f32.gmra.mrb[0].mxu0 %v2487
      %v2640 = vpop.f32.mrb[0].mxu0
      %v2641 = vadd.f32 0.0, %v2640
      %v2642 = vpop.f32.mrb[0].mxu0
      %2643 = vdwg.mxu0
      %v2644 = vadd.f32 %v2397, %v2556
      %v2645 = vadd.f32 %v2398, %v2561
      %v2646 = vadd.f32 %v2399, %v2566
      %v2647 = vadd.f32 %v2400, %v2571
      %v2648 = vadd.f32 %v2401, %v2576
      %v2649 = vadd.f32 %v2402, %v2581
      %v2650 = vadd.f32 %v2403, %v2586
      %v2651 = vadd.f32 %v2404, %v2591
      %v2652 = vadd.f32 %v2405, %v2596
      %v2653 = vadd.f32 %v2406, %v2601
      %v2654 = vadd.f32 %v2407, %v2606
      %v2655 = vadd.f32 %v2408, %v2611
      %v2656 = vadd.f32 %v2409, %v2616
      %v2657 = vadd.f32 %v2410, %v2621
      %v2658 = vadd.f32 %v2411, %v2626
      %v2659 = vadd.f32 %v2412, %v2631
      %v2660 = vadd.f32 %v2413, %v2636
      %v2661 = vadd.f32 %v2414, %v2641
      %v2662 = vld [vmem:[#allocation2 + $0x24] sm:$0xff]
      %v2663 = vld [vmem:[#allocation2 + $0x2c] sm:$0xff]
      %v2664 = vld [vmem:[#allocation2 + $0x34] sm:$0xff]
      %v2665 = vld [vmem:[#allocation2 + $0x3c] sm:$0xff]
      %v2666 = vld [vmem:[#allocation2 + $0x44] sm:$0xff]
      %v2667 = vld [vmem:[#allocation2 + $0x4c] sm:$0xff]
      %v2668 = vld [vmem:[#allocation2 + $0x54] sm:$0xff]
      %v2669 = vld [vmem:[#allocation2 + $0x5c] sm:$0xff]
      %v2670 = vld [vmem:[#allocation2 + $0x64] sm:$0xff]
      %v2671 = vld [vmem:[#allocation2 + $0x6c] sm:$0xff]
      %v2672 = vld [vmem:[#allocation2 + $0x74] sm:$0xff]
      %v2673 = vld [vmem:[#allocation2 + $0x7c] sm:$0xff]
      %v2674 = vld [vmem:[#allocation2 + $0x84] sm:$0xff]
      %v2675 = vld [vmem:[#allocation2 + $0x8c] sm:$0xff]
      %v2676 = vld [vmem:[#allocation2 + $0x94] sm:$0xff]
      %v2677 = vld [vmem:[#allocation2 + $0x9c] sm:$0xff]
      %v2678 = vld [vmem:[#allocation2 + $0xa4] sm:$0xff]
      %v2679 = vld [vmem:[#allocation2 + $0xac] sm:$0xff]
      %s2680 = scalar_lea.vmem %s3, 48
      %v2681 = vld [vmem:[%s2680] sm:$0xff]
      %v2683 = vsel %vm225, %v2662, 0
      %v2686 = vsel %vm225, %v2663, 0
      %v2689 = vsel %vm225, %v2664, 0
      %v2692 = vsel %vm225, %v2665, 0
      %v2695 = vsel %vm225, %v2666, 0
      %v2698 = vsel %vm225, %v2667, 0
      %v2701 = vsel %vm225, %v2668, 0
      %v2704 = vsel %vm225, %v2669, 0
      %v2707 = vsel %vm225, %v2670, 0
      %v2710 = vsel %vm225, %v2671, 0
      %v2713 = vsel %vm225, %v2672, 0
      %v2716 = vsel %vm225, %v2673, 0
      %v2719 = vsel %vm225, %v2674, 0
      %v2722 = vsel %vm225, %v2675, 0
      %v2725 = vsel %vm225, %v2676, 0
      %v2728 = vsel %vm225, %v2677, 0
      %v2731 = vsel %vm225, %v2678, 0
      %v2734 = vsel %vm225, %v2679, 0
      %2736 = vmatprep.subr.mxu0 0.0
      %2737 = vmatpush1.msra.mxu0 %v2681
      %2738 = vmatprep.subr.mxu0 0.0
      %2739 = vmatpush1.msra.mxu0 0.0
      %2740 = vmatprep.subr.mxu0 0.0
      %2741 = vmatpush1.msra.mxu0 0.0
      %2742 = vmatprep.subr.mxu0 0.0
      %2743 = vmatpush1.msra.mxu0 0.0
      %2744 = vmatprep.subr.mxu0 0.0
      %2745 = vmatpush1.msra.mxu0 0.0
      %2746 = vmatprep.subr.mxu0 0.0
      %2747 = vmatpush1.msra.mxu0 0.0
      %2748 = vmatprep.subr.mxu0 0.0
      %2749 = vmatpush1.msra.mxu0 0.0
      %2750 = vmatprep.subr.mxu0 0.0
      %2751 = vmatpush1.msra.mxu0 0.0
      %2752 = vmatprep.subr.mxu0 0.0
      %2753 = vmatpush1.msra.mxu0 0.0
      %2754 = vmatprep.subr.mxu0 0.0
      %2755 = vmatpush1.msra.mxu0 0.0
      %2756 = vmatprep.subr.mxu0 0.0
      %2757 = vmatpush1.msra.mxu0 0.0
      %2758 = vmatprep.subr.mxu0 0.0
      %2759 = vmatpush1.msra.mxu0 0.0
      %2760 = vmatprep.subr.mxu0 0.0
      %2761 = vmatpush1.msra.mxu0 0.0
      %2762 = vmatprep.subr.mxu0 0.0
      %2763 = vmatpush1.msra.mxu0 0.0
      %2764 = vmatprep.subr.mxu0 0.0
      %2765 = vmatpush1.msra.mxu0 0.0
      %2766 = vmatprep.subr.mxu0 0.0
      %2767 = vmatpush1.msra.mxu0 0.0
      %2768 = vmatprep.subr.mxu0 0.0
      %2769 = vmatpush1.msra.mxu0 0.0
      %2770 = vmatprep.subr.mxu0 0.0
      %2771 = vmatpush1.msra.mxu0 0.0
      %2772 = vmatprep.subr.mxu0 0.0
      %2773 = vmatpush1.msra.mxu0 0.0
      %2774 = vmatprep.subr.mxu0 0.0
      %2775 = vmatpush1.msra.mxu0 0.0
      %2776 = vmatprep.subr.mxu0 0.0
      %2777 = vmatpush1.msra.mxu0 0.0
      %2778 = vmatprep.subr.mxu0 0.0
      %2779 = vmatpush1.msra.mxu0 0.0
      %2780 = vmatprep.subr.mxu0 0.0
      %2781 = vmatpush1.msra.mxu0 0.0
      %2782 = vmatprep.subr.mxu0 0.0
      %2783 = vmatpush1.msra.mxu0 0.0
      %2784 = vmatprep.subr.mxu0 0.0
      %2785 = vmatpush1.msra.mxu0 0.0
      %2786 = vmatprep.subr.mxu0 0.0
      %2787 = vmatpush1.msra.mxu0 0.0
      %2788 = vmatprep.subr.mxu0 0.0
      %2789 = vmatpush1.msra.mxu0 0.0
      %2790 = vmatprep.subr.mxu0 0.0
      %2791 = vmatpush1.msra.mxu0 0.0
      %2792 = vmatprep.subr.mxu0 0.0
      %2793 = vmatpush1.msra.mxu0 0.0
      %2794 = vmatprep.subr.mxu0 0.0
      %2795 = vmatpush1.msra.mxu0 0.0
      %2796 = vmatprep.subr.mxu0 0.0
      %2797 = vmatpush1.msra.mxu0 0.0
      %2798 = vmatprep.subr.mxu0 0.0
      %2799 = vmatpush1.msra.mxu0 0.0
      %2800 = vmatprep.mubr.f32.mxu0 0.0
      %2801 = vmatmul.mubr.f32.gmra.mrb[0].mxu0 %v2683
      %v2802 = vpop.f32.mrb[0].mxu0
      %v2803 = vadd.f32 0.0, %v2802
      %v2804 = vpop.f32.mrb[0].mxu0
      %2805 = vmatprep.mubr.f32.mxu0 0.0
      %2806 = vmatmul.mubr.f32.gmra.mrb[0].mxu0 %v2686
      %v2807 = vpop.f32.mrb[0].mxu0
      %v2808 = vadd.f32 0.0, %v2807
      %v2809 = vpop.f32.mrb[0].mxu0
      %2810 = vmatprep.mubr.f32.mxu0 0.0
      %2811 = vmatmul.mubr.f32.gmra.mrb[0].mxu0 %v2689
      %v2812 = vpop.f32.mrb[0].mxu0
      %v2813 = vadd.f32 0.0, %v2812
      %v2814 = vpop.f32.mrb[0].mxu0
      %2815 = vmatprep.mubr.f32.mxu0 0.0
      %2816 = vmatmul.mubr.f32.gmra.mrb[0].mxu0 %v2692
      %v2817 = vpop.f32.mrb[0].mxu0
      %v2818 = vadd.f32 0.0, %v2817
      %v2819 = vpop.f32.mrb[0].mxu0
      %2820 = vmatprep.mubr.f32.mxu0 0.0
      %2821 = vmatmul.mubr.f32.gmra.mrb[0].mxu0 %v2695
      %v2822 = vpop.f32.mrb[0].mxu0
      %v2823 = vadd.f32 0.0, %v2822
      %v2824 = vpop.f32.mrb[0].mxu0
      %2825 = vmatprep.mubr.f32.mxu0 0.0
      %2826 = vmatmul.mubr.f32.gmra.mrb[0].mxu0 %v2698
      %v2827 = vpop.f32.mrb[0].mxu0
      %v2828 = vadd.f32 0.0, %v2827
      %v2829 = vpop.f32.mrb[0].mxu0
      %2830 = vmatprep.mubr.f32.mxu0 0.0
      %2831 = vmatmul.mubr.f32.gmra.mrb[0].mxu0 %v2701
      %v2832 = vpop.f32.mrb[0].mxu0
      %v2833 = vadd.f32 0.0, %v2832
      %v2834 = vpop.f32.mrb[0].mxu0
      %2835 = vmatprep.mubr.f32.mxu0 0.0
      %2836 = vmatmul.mubr.f32.gmra.mrb[0].mxu0 %v2704
      %v2837 = vpop.f32.mrb[0].mxu0
      %v2838 = vadd.f32 0.0, %v2837
      %v2839 = vpop.f32.mrb[0].mxu0
      %2840 = vmatprep.mubr.f32.mxu0 0.0
      %2841 = vmatmul.mubr.f32.gmra.mrb[0].mxu0 %v2707
      %v2842 = vpop.f32.mrb[0].mxu0
      %v2843 = vadd.f32 0.0, %v2842
      %v2844 = vpop.f32.mrb[0].mxu0
      %2845 = vmatprep.mubr.f32.mxu0 0.0
      %2846 = vmatmul.mubr.f32.gmra.mrb[0].mxu0 %v2710
      %v2847 = vpop.f32.mrb[0].mxu0
      %v2848 = vadd.f32 0.0, %v2847
      %v2849 = vpop.f32.mrb[0].mxu0
      %2850 = vmatprep.mubr.f32.mxu0 0.0
      %2851 = vmatmul.mubr.f32.gmra.mrb[0].mxu0 %v2713
      %v2852 = vpop.f32.mrb[0].mxu0
      %v2853 = vadd.f32 0.0, %v2852
      %v2854 = vpop.f32.mrb[0].mxu0
      %2855 = vmatprep.mubr.f32.mxu0 0.0
      %2856 = vmatmul.mubr.f32.gmra.mrb[0].mxu0 %v2716
      %v2857 = vpop.f32.mrb[0].mxu0
      %v2858 = vadd.f32 0.0, %v2857
      %v2859 = vpop.f32.mrb[0].mxu0
      %2860 = vmatprep.mubr.f32.mxu0 0.0
      %2861 = vmatmul.mubr.f32.gmra.mrb[0].mxu0 %v2719
      %v2862 = vpop.f32.mrb[0].mxu0
      %v2863 = vadd.f32 0.0, %v2862
      %v2864 = vpop.f32.mrb[0].mxu0
      %2865 = vmatprep.mubr.f32.mxu0 0.0
      %2866 = vmatmul.mubr.f32.gmra.mrb[0].mxu0 %v2722
      %v2867 = vpop.f32.mrb[0].mxu0
      %v2868 = vadd.f32 0.0, %v2867
      %v2869 = vpop.f32.mrb[0].mxu0
      %2870 = vmatprep.mubr.f32.mxu0 0.0
      %2871 = vmatmul.mubr.f32.gmra.mrb[0].mxu0 %v2725
      %v2872 = vpop.f32.mrb[0].mxu0
      %v2873 = vadd.f32 0.0, %v2872
      %v2874 = vpop.f32.mrb[0].mxu0
      %2875 = vmatprep.mubr.f32.mxu0 0.0
      %2876 = vmatmul.mubr.f32.gmra.mrb[0].mxu0 %v2728
      %v2877 = vpop.f32.mrb[0].mxu0
      %v2878 = vadd.f32 0.0, %v2877
      %v2879 = vpop.f32.mrb[0].mxu0
      %2880 = vmatprep.mubr.f32.mxu0 0.0
      %2881 = vmatmul.mubr.f32.gmra.mrb[0].mxu0 %v2731
      %v2882 = vpop.f32.mrb[0].mxu0
      %v2883 = vadd.f32 0.0, %v2882
      %v2884 = vpop.f32.mrb[0].mxu0
      %2885 = vmatprep.mubr.f32.mxu0 0.0
      %2886 = vmatmul.mubr.f32.gmra.mrb[0].mxu0 %v2734
      %v2887 = vpop.f32.mrb[0].mxu0
      %v2888 = vadd.f32 0.0, %v2887
      %v2889 = vpop.f32.mrb[0].mxu0
      %2890 = vdwg.mxu0
      %v2891 = vadd.f32 %v2644, %v2803
      %v2892 = vadd.f32 %v2645, %v2808
      %v2893 = vadd.f32 %v2646, %v2813
      %v2894 = vadd.f32 %v2647, %v2818
      %v2895 = vadd.f32 %v2648, %v2823
      %v2896 = vadd.f32 %v2649, %v2828
      %v2897 = vadd.f32 %v2650, %v2833
      %v2898 = vadd.f32 %v2651, %v2838
      %v2899 = vadd.f32 %v2652, %v2843
      %v2900 = vadd.f32 %v2653, %v2848
      %v2901 = vadd.f32 %v2654, %v2853
      %v2902 = vadd.f32 %v2655, %v2858
      %v2903 = vadd.f32 %v2656, %v2863
      %v2904 = vadd.f32 %v2657, %v2868
      %v2905 = vadd.f32 %v2658, %v2873
      %v2906 = vadd.f32 %v2659, %v2878
      %v2907 = vadd.f32 %v2660, %v2883
      %v2908 = vadd.f32 %v2661, %v2888
      %v2909 = vld [vmem:[#allocation2 + $0x25] sm:$0xff]
      %v2910 = vld [vmem:[#allocation2 + $0x2d] sm:$0xff]
      %v2911 = vld [vmem:[#allocation2 + $0x35] sm:$0xff]
      %v2912 = vld [vmem:[#allocation2 + $0x3d] sm:$0xff]
      %v2913 = vld [vmem:[#allocation2 + $0x45] sm:$0xff]
      %v2914 = vld [vmem:[#allocation2 + $0x4d] sm:$0xff]
      %v2915 = vld [vmem:[#allocation2 + $0x55] sm:$0xff]
      %v2916 = vld [vmem:[#allocation2 + $0x5d] sm:$0xff]
      %v2917 = vld [vmem:[#allocation2 + $0x65] sm:$0xff]
      %v2918 = vld [vmem:[#allocation2 + $0x6d] sm:$0xff]
      %v2919 = vld [vmem:[#allocation2 + $0x75] sm:$0xff]
      %v2920 = vld [vmem:[#allocation2 + $0x7d] sm:$0xff]
      %v2921 = vld [vmem:[#allocation2 + $0x85] sm:$0xff]
      %v2922 = vld [vmem:[#allocation2 + $0x8d] sm:$0xff]
      %v2923 = vld [vmem:[#allocation2 + $0x95] sm:$0xff]
      %v2924 = vld [vmem:[#allocation2 + $0x9d] sm:$0xff]
      %v2925 = vld [vmem:[#allocation2 + $0xa5] sm:$0xff]
      %v2926 = vld [vmem:[#allocation2 + $0xad] sm:$0xff]
      %s2927 = scalar_lea.vmem %s3, 56
      %v2928 = vld [vmem:[%s2927] sm:$0xff]
      %v2930 = vsel %vm225, %v2909, 0
      %v2933 = vsel %vm225, %v2910, 0
      %v2936 = vsel %vm225, %v2911, 0
      %v2939 = vsel %vm225, %v2912, 0
      %v2942 = vsel %vm225, %v2913, 0
      %v2945 = vsel %vm225, %v2914, 0
      %v2948 = vsel %vm225, %v2915, 0
      %v2951 = vsel %vm225, %v2916, 0
      %v2954 = vsel %vm225, %v2917, 0
      %v2957 = vsel %vm225, %v2918, 0
      %v2960 = vsel %vm225, %v2919, 0
      %v2963 = vsel %vm225, %v2920, 0
      %v2966 = vsel %vm225, %v2921, 0
      %v2969 = vsel %vm225, %v2922, 0
      %v2972 = vsel %vm225, %v2923, 0
      %v2975 = vsel %vm225, %v2924, 0
      %v2978 = vsel %vm225, %v2925, 0
      %v2981 = vsel %vm225, %v2926, 0
      %2983 = vmatprep.subr.mxu0 0.0
      %2984 = vmatpush1.msra.mxu0 %v2928
      %2985 = vmatprep.subr.mxu0 0.0
      %2986 = vmatpush1.msra.mxu0 0.0
      %2987 = vmatprep.subr.mxu0 0.0
      %2988 = vmatpush1.msra.mxu0 0.0
      %2989 = vmatprep.subr.mxu0 0.0
      %2990 = vmatpush1.msra.mxu0 0.0
      %2991 = vmatprep.subr.mxu0 0.0
      %2992 = vmatpush1.msra.mxu0 0.0
      %2993 = vmatprep.subr.mxu0 0.0
      %2994 = vmatpush1.msra.mxu0 0.0
      %2995 = vmatprep.subr.mxu0 0.0
      %2996 = vmatpush1.msra.mxu0 0.0
      %2997 = vmatprep.subr.mxu0 0.0
      %2998 = vmatpush1.msra.mxu0 0.0
      %2999 = vmatprep.subr.mxu0 0.0
      %3000 = vmatpush1.msra.mxu0 0.0
      %3001 = vmatprep.subr.mxu0 0.0
      %3002 = vmatpush1.msra.mxu0 0.0
      %3003 = vmatprep.subr.mxu0 0.0
      %3004 = vmatpush1.msra.mxu0 0.0
      %3005 = vmatprep.subr.mxu0 0.0
      %3006 = vmatpush1.msra.mxu0 0.0
      %3007 = vmatprep.subr.mxu0 0.0
      %3008 = vmatpush1.msra.mxu0 0.0
      %3009 = vmatprep.subr.mxu0 0.0
      %3010 = vmatpush1.msra.mxu0 0.0
      %3011 = vmatprep.subr.mxu0 0.0
      %3012 = vmatpush1.msra.mxu0 0.0
      %3013 = vmatprep.subr.mxu0 0.0
      %3014 = vmatpush1.msra.mxu0 0.0
      %3015 = vmatprep.subr.mxu0 0.0
      %3016 = vmatpush1.msra.mxu0 0.0
      %3017 = vmatprep.subr.mxu0 0.0
      %3018 = vmatpush1.msra.mxu0 0.0
      %3019 = vmatprep.subr.mxu0 0.0
      %3020 = vmatpush1.msra.mxu0 0.0
      %3021 = vmatprep.subr.mxu0 0.0
      %3022 = vmatpush1.msra.mxu0 0.0
      %3023 = vmatprep.subr.mxu0 0.0
      %3024 = vmatpush1.msra.mxu0 0.0
      %3025 = vmatprep.subr.mxu0 0.0
      %3026 = vmatpush1.msra.mxu0 0.0
      %3027 = vmatprep.subr.mxu0 0.0
      %3028 = vmatpush1.msra.mxu0 0.0
      %3029 = vmatprep.subr.mxu0 0.0
      %3030 = vmatpush1.msra.mxu0 0.0
      %3031 = vmatprep.subr.mxu0 0.0
      %3032 = vmatpush1.msra.mxu0 0.0
      %3033 = vmatprep.subr.mxu0 0.0
      %3034 = vmatpush1.msra.mxu0 0.0
      %3035 = vmatprep.subr.mxu0 0.0
      %3036 = vmatpush1.msra.mxu0 0.0
      %3037 = vmatprep.subr.mxu0 0.0
      %3038 = vmatpush1.msra.mxu0 0.0
      %3039 = vmatprep.subr.mxu0 0.0
      %3040 = vmatpush1.msra.mxu0 0.0
      %3041 = vmatprep.subr.mxu0 0.0
      %3042 = vmatpush1.msra.mxu0 0.0
      %3043 = vmatprep.subr.mxu0 0.0
      %3044 = vmatpush1.msra.mxu0 0.0
      %3045 = vmatprep.subr.mxu0 0.0
      %3046 = vmatpush1.msra.mxu0 0.0
      %3047 = vmatprep.mubr.f32.mxu0 0.0
      %3048 = vmatmul.mubr.f32.gmra.mrb[0].mxu0 %v2930
      %v3049 = vpop.f32.mrb[0].mxu0
      %v3050 = vadd.f32 0.0, %v3049
      %v3051 = vpop.f32.mrb[0].mxu0
      %3052 = vmatprep.mubr.f32.mxu0 0.0
      %3053 = vmatmul.mubr.f32.gmra.mrb[0].mxu0 %v2933
      %v3054 = vpop.f32.mrb[0].mxu0
      %v3055 = vadd.f32 0.0, %v3054
      %v3056 = vpop.f32.mrb[0].mxu0
      %3057 = vmatprep.mubr.f32.mxu0 0.0
      %3058 = vmatmul.mubr.f32.gmra.mrb[0].mxu0 %v2936
      %v3059 = vpop.f32.mrb[0].mxu0
      %v3060 = vadd.f32 0.0, %v3059
      %v3061 = vpop.f32.mrb[0].mxu0
      %3062 = vmatprep.mubr.f32.mxu0 0.0
      %3063 = vmatmul.mubr.f32.gmra.mrb[0].mxu0 %v2939
      %v3064 = vpop.f32.mrb[0].mxu0
      %v3065 = vadd.f32 0.0, %v3064
      %v3066 = vpop.f32.mrb[0].mxu0
      %3067 = vmatprep.mubr.f32.mxu0 0.0
      %3068 = vmatmul.mubr.f32.gmra.mrb[0].mxu0 %v2942
      %v3069 = vpop.f32.mrb[0].mxu0
      %v3070 = vadd.f32 0.0, %v3069
      %v3071 = vpop.f32.mrb[0].mxu0
      %3072 = vmatprep.mubr.f32.mxu0 0.0
      %3073 = vmatmul.mubr.f32.gmra.mrb[0].mxu0 %v2945
      %v3074 = vpop.f32.mrb[0].mxu0
      %v3075 = vadd.f32 0.0, %v3074
      %v3076 = vpop.f32.mrb[0].mxu0
      %3077 = vmatprep.mubr.f32.mxu0 0.0
      %3078 = vmatmul.mubr.f32.gmra.mrb[0].mxu0 %v2948
      %v3079 = vpop.f32.mrb[0].mxu0
      %v3080 = vadd.f32 0.0, %v3079
      %v3081 = vpop.f32.mrb[0].mxu0
      %3082 = vmatprep.mubr.f32.mxu0 0.0
      %3083 = vmatmul.mubr.f32.gmra.mrb[0].mxu0 %v2951
      %v3084 = vpop.f32.mrb[0].mxu0
      %v3085 = vadd.f32 0.0, %v3084
      %v3086 = vpop.f32.mrb[0].mxu0
      %3087 = vmatprep.mubr.f32.mxu0 0.0
      %3088 = vmatmul.mubr.f32.gmra.mrb[0].mxu0 %v2954
      %v3089 = vpop.f32.mrb[0].mxu0
      %v3090 = vadd.f32 0.0, %v3089
      %v3091 = vpop.f32.mrb[0].mxu0
      %3092 = vmatprep.mubr.f32.mxu0 0.0
      %3093 = vmatmul.mubr.f32.gmra.mrb[0].mxu0 %v2957
      %v3094 = vpop.f32.mrb[0].mxu0
      %v3095 = vadd.f32 0.0, %v3094
      %v3096 = vpop.f32.mrb[0].mxu0
      %3097 = vmatprep.mubr.f32.mxu0 0.0
      %3098 = vmatmul.mubr.f32.gmra.mrb[0].mxu0 %v2960
      %v3099 = vpop.f32.mrb[0].mxu0
      %v3100 = vadd.f32 0.0, %v3099
      %v3101 = vpop.f32.mrb[0].mxu0
      %3102 = vmatprep.mubr.f32.mxu0 0.0
      %3103 = vmatmul.mubr.f32.gmra.mrb[0].mxu0 %v2963
      %v3104 = vpop.f32.mrb[0].mxu0
      %v3105 = vadd.f32 0.0, %v3104
      %v3106 = vpop.f32.mrb[0].mxu0
      %3107 = vmatprep.mubr.f32.mxu0 0.0
      %3108 = vmatmul.mubr.f32.gmra.mrb[0].mxu0 %v2966
      %v3109 = vpop.f32.mrb[0].mxu0
      %v3110 = vadd.f32 0.0, %v3109
      %v3111 = vpop.f32.mrb[0].mxu0
      %3112 = vmatprep.mubr.f32.mxu0 0.0
      %3113 = vmatmul.mubr.f32.gmra.mrb[0].mxu0 %v2969
      %v3114 = vpop.f32.mrb[0].mxu0
      %v3115 = vadd.f32 0.0, %v3114
      %v3116 = vpop.f32.mrb[0].mxu0
      %3117 = vmatprep.mubr.f32.mxu0 0.0
      %3118 = vmatmul.mubr.f32.gmra.mrb[0].mxu0 %v2972
      %v3119 = vpop.f32.mrb[0].mxu0
      %v3120 = vadd.f32 0.0, %v3119
      %v3121 = vpop.f32.mrb[0].mxu0
      %3122 = vmatprep.mubr.f32.mxu0 0.0
      %3123 = vmatmul.mubr.f32.gmra.mrb[0].mxu0 %v2975
      %v3124 = vpop.f32.mrb[0].mxu0
      %v3125 = vadd.f32 0.0, %v3124
      %v3126 = vpop.f32.mrb[0].mxu0
      %3127 = vmatprep.mubr.f32.mxu0 0.0
      %3128 = vmatmul.mubr.f32.gmra.mrb[0].mxu0 %v2978
      %v3129 = vpop.f32.mrb[0].mxu0
      %v3130 = vadd.f32 0.0, %v3129
      %v3131 = vpop.f32.mrb[0].mxu0
      %3132 = vmatprep.mubr.f32.mxu0 0.0
      %3133 = vmatmul.mubr.f32.gmra.mrb[0].mxu0 %v2981
      %v3134 = vpop.f32.mrb[0].mxu0
      %v3135 = vadd.f32 0.0, %v3134
      %v3136 = vpop.f32.mrb[0].mxu0
      %3137 = vdwg.mxu0
      %v3138 = vadd.f32 %v2891, %v3050
      %v3139 = vadd.f32 %v2892, %v3055
      %v3140 = vadd.f32 %v2893, %v3060
      %v3141 = vadd.f32 %v2894, %v3065
      %v3142 = vadd.f32 %v2895, %v3070
      %v3143 = vadd.f32 %v2896, %v3075
      %v3144 = vadd.f32 %v2897, %v3080
      %v3145 = vadd.f32 %v2898, %v3085
      %v3146 = vadd.f32 %v2899, %v3090
      %v3147 = vadd.f32 %v2900, %v3095
      %v3148 = vadd.f32 %v2901, %v3100
      %v3149 = vadd.f32 %v2902, %v3105
      %v3150 = vadd.f32 %v2903, %v3110
      %v3151 = vadd.f32 %v2904, %v3115
      %v3152 = vadd.f32 %v2905, %v3120
      %v3153 = vadd.f32 %v2906, %v3125
      %v3154 = vadd.f32 %v2907, %v3130
      %v3155 = vadd.f32 %v2908, %v3135
      %v3156 = vld [vmem:[#allocation2 + $0x26] sm:$0xff]
      %v3157 = vld [vmem:[#allocation2 + $0x2e] sm:$0xff]
      %v3158 = vld [vmem:[#allocation2 + $0x36] sm:$0xff]
      %v3159 = vld [vmem:[#allocation2 + $0x3e] sm:$0xff]
      %v3160 = vld [vmem:[#allocation2 + $0x46] sm:$0xff]
      %v3161 = vld [vmem:[#allocation2 + $0x4e] sm:$0xff]
      %v3162 = vld [vmem:[#allocation2 + $0x56] sm:$0xff]
      %v3163 = vld [vmem:[#allocation2 + $0x5e] sm:$0xff]
      %v3164 = vld [vmem:[#allocation2 + $0x66] sm:$0xff]
      %v3165 = vld [vmem:[#allocation2 + $0x6e] sm:$0xff]
      %v3166 = vld [vmem:[#allocation2 + $0x76] sm:$0xff]
      %v3167 = vld [vmem:[#allocation2 + $0x7e] sm:$0xff]
      %v3168 = vld [vmem:[#allocation2 + $0x86] sm:$0xff]
      %v3169 = vld [vmem:[#allocation2 + $0x8e] sm:$0xff]
      %v3170 = vld [vmem:[#allocation2 + $0x96] sm:$0xff]
      %v3171 = vld [vmem:[#allocation2 + $0x9e] sm:$0xff]
      %v3172 = vld [vmem:[#allocation2 + $0xa6] sm:$0xff]
      %v3173 = vld [vmem:[#allocation2 + $0xae] sm:$0xff]
      %s3174 = scalar_lea.vmem %s3, 64
      %v3175 = vld [vmem:[%s3174] sm:$0xff]
      %v3177 = vsel %vm225, %v3156, 0
      %v3180 = vsel %vm225, %v3157, 0
      %v3183 = vsel %vm225, %v3158, 0
      %v3186 = vsel %vm225, %v3159, 0
      %v3189 = vsel %vm225, %v3160, 0
      %v3192 = vsel %vm225, %v3161, 0
      %v3195 = vsel %vm225, %v3162, 0
      %v3198 = vsel %vm225, %v3163, 0
      %v3201 = vsel %vm225, %v3164, 0
      %v3204 = vsel %vm225, %v3165, 0
      %v3207 = vsel %vm225, %v3166, 0
      %v3210 = vsel %vm225, %v3167, 0
      %v3213 = vsel %vm225, %v3168, 0
      %v3216 = vsel %vm225, %v3169, 0
      %v3219 = vsel %vm225, %v3170, 0
      %v3222 = vsel %vm225, %v3171, 0
      %v3225 = vsel %vm225, %v3172, 0
      %v3228 = vsel %vm225, %v3173, 0
      %3230 = vmatprep.subr.mxu0 0.0
      %3231 = vmatpush1.msra.mxu0 %v3175
      %3232 = vmatprep.subr.mxu0 0.0
      %3233 = vmatpush1.msra.mxu0 0.0
      %3234 = vmatprep.subr.mxu0 0.0
      %3235 = vmatpush1.msra.mxu0 0.0
      %3236 = vmatprep.subr.mxu0 0.0
      %3237 = vmatpush1.msra.mxu0 0.0
      %3238 = vmatprep.subr.mxu0 0.0
      %3239 = vmatpush1.msra.mxu0 0.0
      %3240 = vmatprep.subr.mxu0 0.0
      %3241 = vmatpush1.msra.mxu0 0.0
      %3242 = vmatprep.subr.mxu0 0.0
      %3243 = vmatpush1.msra.mxu0 0.0
      %3244 = vmatprep.subr.mxu0 0.0
      %3245 = vmatpush1.msra.mxu0 0.0
      %3246 = vmatprep.subr.mxu0 0.0
      %3247 = vmatpush1.msra.mxu0 0.0
      %3248 = vmatprep.subr.mxu0 0.0
      %3249 = vmatpush1.msra.mxu0 0.0
      %3250 = vmatprep.subr.mxu0 0.0
      %3251 = vmatpush1.msra.mxu0 0.0
      %3252 = vmatprep.subr.mxu0 0.0
      %3253 = vmatpush1.msra.mxu0 0.0
      %3254 = vmatprep.subr.mxu0 0.0
      %3255 = vmatpush1.msra.mxu0 0.0
      %3256 = vmatprep.subr.mxu0 0.0
      %3257 = vmatpush1.msra.mxu0 0.0
      %3258 = vmatprep.subr.mxu0 0.0
      %3259 = vmatpush1.msra.mxu0 0.0
      %3260 = vmatprep.subr.mxu0 0.0
      %3261 = vmatpush1.msra.mxu0 0.0
      %3262 = vmatprep.subr.mxu0 0.0
      %3263 = vmatpush1.msra.mxu0 0.0
      %3264 = vmatprep.subr.mxu0 0.0
      %3265 = vmatpush1.msra.mxu0 0.0
      %3266 = vmatprep.subr.mxu0 0.0
      %3267 = vmatpush1.msra.mxu0 0.0
      %3268 = vmatprep.subr.mxu0 0.0
      %3269 = vmatpush1.msra.mxu0 0.0
      %3270 = vmatprep.subr.mxu0 0.0
      %3271 = vmatpush1.msra.mxu0 0.0
      %3272 = vmatprep.subr.mxu0 0.0
      %3273 = vmatpush1.msra.mxu0 0.0
      %3274 = vmatprep.subr.mxu0 0.0
      %3275 = vmatpush1.msra.mxu0 0.0
      %3276 = vmatprep.subr.mxu0 0.0
      %3277 = vmatpush1.msra.mxu0 0.0
      %3278 = vmatprep.subr.mxu0 0.0
      %3279 = vmatpush1.msra.mxu0 0.0
      %3280 = vmatprep.subr.mxu0 0.0
      %3281 = vmatpush1.msra.mxu0 0.0
      %3282 = vmatprep.subr.mxu0 0.0
      %3283 = vmatpush1.msra.mxu0 0.0
      %3284 = vmatprep.subr.mxu0 0.0
      %3285 = vmatpush1.msra.mxu0 0.0
      %3286 = vmatprep.subr.mxu0 0.0
      %3287 = vmatpush1.msra.mxu0 0.0
      %3288 = vmatprep.subr.mxu0 0.0
      %3289 = vmatpush1.msra.mxu0 0.0
      %3290 = vmatprep.subr.mxu0 0.0
      %3291 = vmatpush1.msra.mxu0 0.0
      %3292 = vmatprep.subr.mxu0 0.0
      %3293 = vmatpush1.msra.mxu0 0.0
      %3294 = vmatprep.mubr.f32.mxu0 0.0
      %3295 = vmatmul.mubr.f32.gmra.mrb[0].mxu0 %v3177
      %v3296 = vpop.f32.mrb[0].mxu0
      %v3297 = vadd.f32 0.0, %v3296
      %v3298 = vpop.f32.mrb[0].mxu0
      %3299 = vmatprep.mubr.f32.mxu0 0.0
      %3300 = vmatmul.mubr.f32.gmra.mrb[0].mxu0 %v3180
      %v3301 = vpop.f32.mrb[0].mxu0
      %v3302 = vadd.f32 0.0, %v3301
      %v3303 = vpop.f32.mrb[0].mxu0
      %3304 = vmatprep.mubr.f32.mxu0 0.0
      %3305 = vmatmul.mubr.f32.gmra.mrb[0].mxu0 %v3183
      %v3306 = vpop.f32.mrb[0].mxu0
      %v3307 = vadd.f32 0.0, %v3306
      %v3308 = vpop.f32.mrb[0].mxu0
      %3309 = vmatprep.mubr.f32.mxu0 0.0
      %3310 = vmatmul.mubr.f32.gmra.mrb[0].mxu0 %v3186
      %v3311 = vpop.f32.mrb[0].mxu0
      %v3312 = vadd.f32 0.0, %v3311
      %v3313 = vpop.f32.mrb[0].mxu0
      %3314 = vmatprep.mubr.f32.mxu0 0.0
      %3315 = vmatmul.mubr.f32.gmra.mrb[0].mxu0 %v3189
      %v3316 = vpop.f32.mrb[0].mxu0
      %v3317 = vadd.f32 0.0, %v3316
      %v3318 = vpop.f32.mrb[0].mxu0
      %3319 = vmatprep.mubr.f32.mxu0 0.0
      %3320 = vmatmul.mubr.f32.gmra.mrb[0].mxu0 %v3192
      %v3321 = vpop.f32.mrb[0].mxu0
      %v3322 = vadd.f32 0.0, %v3321
      %v3323 = vpop.f32.mrb[0].mxu0
      %3324 = vmatprep.mubr.f32.mxu0 0.0
      %3325 = vmatmul.mubr.f32.gmra.mrb[0].mxu0 %v3195
      %v3326 = vpop.f32.mrb[0].mxu0
      %v3327 = vadd.f32 0.0, %v3326
      %v3328 = vpop.f32.mrb[0].mxu0
      %3329 = vmatprep.mubr.f32.mxu0 0.0
      %3330 = vmatmul.mubr.f32.gmra.mrb[0].mxu0 %v3198
      %v3331 = vpop.f32.mrb[0].mxu0
      %v3332 = vadd.f32 0.0, %v3331
      %v3333 = vpop.f32.mrb[0].mxu0
      %3334 = vmatprep.mubr.f32.mxu0 0.0
      %3335 = vmatmul.mubr.f32.gmra.mrb[0].mxu0 %v3201
      %v3336 = vpop.f32.mrb[0].mxu0
      %v3337 = vadd.f32 0.0, %v3336
      %v3338 = vpop.f32.mrb[0].mxu0
      %3339 = vmatprep.mubr.f32.mxu0 0.0
      %3340 = vmatmul.mubr.f32.gmra.mrb[0].mxu0 %v3204
      %v3341 = vpop.f32.mrb[0].mxu0
      %v3342 = vadd.f32 0.0, %v3341
      %v3343 = vpop.f32.mrb[0].mxu0
      %3344 = vmatprep.mubr.f32.mxu0 0.0
      %3345 = vmatmul.mubr.f32.gmra.mrb[0].mxu0 %v3207
      %v3346 = vpop.f32.mrb[0].mxu0
      %v3347 = vadd.f32 0.0, %v3346
      %v3348 = vpop.f32.mrb[0].mxu0
      %3349 = vmatprep.mubr.f32.mxu0 0.0
      %3350 = vmatmul.mubr.f32.gmra.mrb[0].mxu0 %v3210
      %v3351 = vpop.f32.mrb[0].mxu0
      %v3352 = vadd.f32 0.0, %v3351
      %v3353 = vpop.f32.mrb[0].mxu0
      %3354 = vmatprep.mubr.f32.mxu0 0.0
      %3355 = vmatmul.mubr.f32.gmra.mrb[0].mxu0 %v3213
      %v3356 = vpop.f32.mrb[0].mxu0
      %v3357 = vadd.f32 0.0, %v3356
      %v3358 = vpop.f32.mrb[0].mxu0
      %3359 = vmatprep.mubr.f32.mxu0 0.0
      %3360 = vmatmul.mubr.f32.gmra.mrb[0].mxu0 %v3216
      %v3361 = vpop.f32.mrb[0].mxu0
      %v3362 = vadd.f32 0.0, %v3361
      %v3363 = vpop.f32.mrb[0].mxu0
      %3364 = vmatprep.mubr.f32.mxu0 0.0
      %3365 = vmatmul.mubr.f32.gmra.mrb[0].mxu0 %v3219
      %v3366 = vpop.f32.mrb[0].mxu0
      %v3367 = vadd.f32 0.0, %v3366
      %v3368 = vpop.f32.mrb[0].mxu0
      %3369 = vmatprep.mubr.f32.mxu0 0.0
      %3370 = vmatmul.mubr.f32.gmra.mrb[0].mxu0 %v3222
      %v3371 = vpop.f32.mrb[0].mxu0
      %v3372 = vadd.f32 0.0, %v3371
      %v3373 = vpop.f32.mrb[0].mxu0
      %3374 = vmatprep.mubr.f32.mxu0 0.0
      %3375 = vmatmul.mubr.f32.gmra.mrb[0].mxu0 %v3225
      %v3376 = vpop.f32.mrb[0].mxu0
      %v3377 = vadd.f32 0.0, %v3376
      %v3378 = vpop.f32.mrb[0].mxu0
      %3379 = vmatprep.mubr.f32.mxu0 0.0
      %3380 = vmatmul.mubr.f32.gmra.mrb[0].mxu0 %v3228
      %v3381 = vpop.f32.mrb[0].mxu0
      %v3382 = vadd.f32 0.0, %v3381
      %v3383 = vpop.f32.mrb[0].mxu0
      %3384 = vdwg.mxu0
      %v3385 = vadd.f32 %v3138, %v3297
      %v3386 = vadd.f32 %v3139, %v3302
      %v3387 = vadd.f32 %v3140, %v3307
      %v3388 = vadd.f32 %v3141, %v3312
      %v3389 = vadd.f32 %v3142, %v3317
      %v3390 = vadd.f32 %v3143, %v3322
      %v3391 = vadd.f32 %v3144, %v3327
      %v3392 = vadd.f32 %v3145, %v3332
      %v3393 = vadd.f32 %v3146, %v3337
      %v3394 = vadd.f32 %v3147, %v3342
      %v3395 = vadd.f32 %v3148, %v3347
      %v3396 = vadd.f32 %v3149, %v3352
      %v3397 = vadd.f32 %v3150, %v3357
      %v3398 = vadd.f32 %v3151, %v3362
      %v3399 = vadd.f32 %v3152, %v3367
      %v3400 = vadd.f32 %v3153, %v3372
      %v3401 = vadd.f32 %v3154, %v3377
      %v3402 = vadd.f32 %v3155, %v3382
      %3403 = vst.msk [vmem:[%s224] sm:$0xff] %vm225, %v3385
      %3404 = vst.msk [vmem:[%s224 + $0x8] sm:$0xff] %vm225, %v3386
      %3405 = vst.msk [vmem:[%s224 + $0x10] sm:$0xff] %vm225, %v3387
      %3406 = vst.msk [vmem:[%s224 + $0x18] sm:$0xff] %vm225, %v3388
      %3407 = vst.msk [vmem:[%s224 + $0x20] sm:$0xff] %vm225, %v3389
      %3408 = vst.msk [vmem:[%s224 + $0x28] sm:$0xff] %vm225, %v3390
      %3409 = vst.msk [vmem:[%s224 + $0x30] sm:$0xff] %vm225, %v3391
      %3410 = vst.msk [vmem:[%s224 + $0x38] sm:$0xff] %vm225, %v3392
      %3411 = vst.msk [vmem:[%s224 + $0x40] sm:$0xff] %vm225, %v3393
      %3412 = vst.msk [vmem:[%s224 + $0x48] sm:$0xff] %vm225, %v3394
      %3413 = vst.msk [vmem:[%s224 + $0x50] sm:$0xff] %vm225, %v3395
      %3414 = vst.msk [vmem:[%s224 + $0x58] sm:$0xff] %vm225, %v3396
      %3415 = vst.msk [vmem:[%s224 + $0x60] sm:$0xff] %vm225, %v3397
      %3416 = vst.msk [vmem:[%s224 + $0x68] sm:$0xff] %vm225, %v3398
      %3417 = vst.msk [vmem:[%s224 + $0x70] sm:$0xff] %vm225, %v3399
      %3418 = vst.msk [vmem:[%s224 + $0x78] sm:$0xff] %vm225, %v3400
      %3419 = vst.msk [vmem:[%s224 + $0x80] sm:$0xff] %vm225, %v3401
      %3420 = vst.msk [vmem:[%s224 + $0x88] sm:$0xff] %vm225, %v3402
      %v3421 = vld [vmem:[#allocation2 + $0x90] sm:$0xff]
      %v3422 = vld [vmem:[#allocation2 + $0x98] sm:$0xff]
      %v3423 = vld [vmem:[#allocation2 + $0xa0] sm:$0xff]
      %v3424 = vld [vmem:[#allocation2 + $0xa8] sm:$0xff]
      %v3425 = vld [vmem:[#allocation2 + $0xb0] sm:$0xff]
      %v3426 = vld [vmem:[#allocation2 + $0xb8] sm:$0xff]
      %v3427 = vld [vmem:[#allocation2 + $0xc0] sm:$0xff]
      %v3428 = vld [vmem:[#allocation2 + $0xc8] sm:$0xff]
      %v3429 = vld [vmem:[#allocation2 + $0xd0] sm:$0xff]
      %v3430 = vld [vmem:[#allocation2 + $0xd8] sm:$0xff]
      %v3431 = vld [vmem:[#allocation2 + $0xe0] sm:$0xff]
      %v3432 = vld [vmem:[#allocation2 + $0xe8] sm:$0xff]
      %v3433 = vld [vmem:[#allocation2 + $0xf0] sm:$0xff]
      %v3434 = vld [vmem:[#allocation2 + $0xf8] sm:$0xff]
      %v3435 = vld [vmem:[#allocation2 + $0x100] sm:$0xff]
      %v3436 = vld [vmem:[#allocation2 + $0x108] sm:$0xff]
      %v3437 = vld [vmem:[#allocation2 + $0x110] sm:$0xff]
      %v3438 = vld [vmem:[#allocation2 + $0x118] sm:$0xff]
      %v3439 = vld [vmem:[%s3] sm:$0xff]
      %v3441 = vsel %vm225, %v3421, 0
      %v3444 = vsel %vm225, %v3422, 0
      %v3447 = vsel %vm225, %v3423, 0
      %v3450 = vsel %vm225, %v3424, 0
      %v3453 = vsel %vm225, %v3425, 0
      %v3456 = vsel %vm225, %v3426, 0
      %v3459 = vsel %vm225, %v3427, 0
      %v3462 = vsel %vm225, %v3428, 0
      %v3465 = vsel %vm225, %v3429, 0
      %v3468 = vsel %vm225, %v3430, 0
      %v3471 = vsel %vm225, %v3431, 0
      %v3474 = vsel %vm225, %v3432, 0
      %v3477 = vsel %vm225, %v3433, 0
      %v3480 = vsel %vm225, %v3434, 0
      %v3483 = vsel %vm225, %v3435, 0
      %v3486 = vsel %vm225, %v3436, 0
      %v3489 = vsel %vm225, %v3437, 0
      %v3492 = vsel %vm225, %v3438, 0
      %3494 = vmatprep.subr.mxu0 0.0
      %3495 = vmatpush1.msra.mxu0 %v3439
      %3496 = vmatprep.subr.mxu0 0.0
      %3497 = vmatpush1.msra.mxu0 0.0
      %3498 = vmatprep.subr.mxu0 0.0
      %3499 = vmatpush1.msra.mxu0 0.0
      %3500 = vmatprep.subr.mxu0 0.0
      %3501 = vmatpush1.msra.mxu0 0.0
      %3502 = vmatprep.subr.mxu0 0.0
      %3503 = vmatpush1.msra.mxu0 0.0
      %3504 = vmatprep.subr.mxu0 0.0
      %3505 = vmatpush1.msra.mxu0 0.0
      %3506 = vmatprep.subr.mxu0 0.0
      %3507 = vmatpush1.msra.mxu0 0.0
      %3508 = vmatprep.subr.mxu0 0.0
      %3509 = vmatpush1.msra.mxu0 0.0
      %3510 = vmatprep.subr.mxu0 0.0
      %3511 = vmatpush1.msra.mxu0 0.0
      %3512 = vmatprep.subr.mxu0 0.0
      %3513 = vmatpush1.msra.mxu0 0.0
      %3514 = vmatprep.subr.mxu0 0.0
      %3515 = vmatpush1.msra.mxu0 0.0
      %3516 = vmatprep.subr.mxu0 0.0
      %3517 = vmatpush1.msra.mxu0 0.0
      %3518 = vmatprep.subr.mxu0 0.0
      %3519 = vmatpush1.msra.mxu0 0.0
      %3520 = vmatprep.subr.mxu0 0.0
      %3521 = vmatpush1.msra.mxu0 0.0
      %3522 = vmatprep.subr.mxu0 0.0
      %3523 = vmatpush1.msra.mxu0 0.0
      %3524 = vmatprep.subr.mxu0 0.0
      %3525 = vmatpush1.msra.mxu0 0.0
      %3526 = vmatprep.subr.mxu0 0.0
      %3527 = vmatpush1.msra.mxu0 0.0
      %3528 = vmatprep.subr.mxu0 0.0
      %3529 = vmatpush1.msra.mxu0 0.0
      %3530 = vmatprep.subr.mxu0 0.0
      %3531 = vmatpush1.msra.mxu0 0.0
      %3532 = vmatprep.subr.mxu0 0.0
      %3533 = vmatpush1.msra.mxu0 0.0
      %3534 = vmatprep.subr.mxu0 0.0
      %3535 = vmatpush1.msra.mxu0 0.0
      %3536 = vmatprep.subr.mxu0 0.0
      %3537 = vmatpush1.msra.mxu0 0.0
      %3538 = vmatprep.subr.mxu0 0.0
      %3539 = vmatpush1.msra.mxu0 0.0
      %3540 = vmatprep.subr.mxu0 0.0
      %3541 = vmatpush1.msra.mxu0 0.0
      %3542 = vmatprep.subr.mxu0 0.0
      %3543 = vmatpush1.msra.mxu0 0.0
      %3544 = vmatprep.subr.mxu0 0.0
      %3545 = vmatpush1.msra.mxu0 0.0
      %3546 = vmatprep.subr.mxu0 0.0
      %3547 = vmatpush1.msra.mxu0 0.0
      %3548 = vmatprep.subr.mxu0 0.0
      %3549 = vmatpush1.msra.mxu0 0.0
      %3550 = vmatprep.subr.mxu0 0.0
      %3551 = vmatpush1.msra.mxu0 0.0
      %3552 = vmatprep.subr.mxu0 0.0
      %3553 = vmatpush1.msra.mxu0 0.0
      %3554 = vmatprep.subr.mxu0 0.0
      %3555 = vmatpush1.msra.mxu0 0.0
      %3556 = vmatprep.subr.mxu0 0.0
      %3557 = vmatpush1.msra.mxu0 0.0
      %3558 = vmatprep.mubr.f32.mxu0 0.0
      %3559 = vmatmul.mubr.f32.gmra.mrb[0].mxu0 %v3441
      %v3560 = vpop.f32.mrb[0].mxu0
      %v3561 = vadd.f32 0.0, %v3560
      %v3562 = vpop.f32.mrb[0].mxu0
      %3563 = vmatprep.mubr.f32.mxu0 0.0
      %3564 = vmatmul.mubr.f32.gmra.mrb[0].mxu0 %v3444
      %v3565 = vpop.f32.mrb[0].mxu0
      %v3566 = vadd.f32 0.0, %v3565
      %v3567 = vpop.f32.mrb[0].mxu0
      %3568 = vmatprep.mubr.f32.mxu0 0.0
      %3569 = vmatmul.mubr.f32.gmra.mrb[0].mxu0 %v3447
      %v3570 = vpop.f32.mrb[0].mxu0
      %v3571 = vadd.f32 0.0, %v3570
      %v3572 = vpop.f32.mrb[0].mxu0
      %3573 = vmatprep.mubr.f32.mxu0 0.0
      %3574 = vmatmul.mubr.f32.gmra.mrb[0].mxu0 %v3450
      %v3575 = vpop.f32.mrb[0].mxu0
      %v3576 = vadd.f32 0.0, %v3575
      %v3577 = vpop.f32.mrb[0].mxu0
      %3578 = vmatprep.mubr.f32.mxu0 0.0
      %3579 = vmatmul.mubr.f32.gmra.mrb[0].mxu0 %v3453
      %v3580 = vpop.f32.mrb[0].mxu0
      %v3581 = vadd.f32 0.0, %v3580
      %v3582 = vpop.f32.mrb[0].mxu0
      %3583 = vmatprep.mubr.f32.mxu0 0.0
      %3584 = vmatmul.mubr.f32.gmra.mrb[0].mxu0 %v3456
      %v3585 = vpop.f32.mrb[0].mxu0
      %v3586 = vadd.f32 0.0, %v3585
      %v3587 = vpop.f32.mrb[0].mxu0
      %3588 = vmatprep.mubr.f32.mxu0 0.0
      %3589 = vmatmul.mubr.f32.gmra.mrb[0].mxu0 %v3459
      %v3590 = vpop.f32.mrb[0].mxu0
      %v3591 = vadd.f32 0.0, %v3590
      %v3592 = vpop.f32.mrb[0].mxu0
      %3593 = vmatprep.mubr.f32.mxu0 0.0
      %3594 = vmatmul.mubr.f32.gmra.mrb[0].mxu0 %v3462
      %v3595 = vpop.f32.mrb[0].mxu0
      %v3596 = vadd.f32 0.0, %v3595
      %v3597 = vpop.f32.mrb[0].mxu0
      %3598 = vmatprep.mubr.f32.mxu0 0.0
      %3599 = vmatmul.mubr.f32.gmra.mrb[0].mxu0 %v3465
      %v3600 = vpop.f32.mrb[0].mxu0
      %v3601 = vadd.f32 0.0, %v3600
      %v3602 = vpop.f32.mrb[0].mxu0
      %3603 = vmatprep.mubr.f32.mxu0 0.0
      %3604 = vmatmul.mubr.f32.gmra.mrb[0].mxu0 %v3468
      %v3605 = vpop.f32.mrb[0].mxu0
      %v3606 = vadd.f32 0.0, %v3605
      %v3607 = vpop.f32.mrb[0].mxu0
      %3608 = vmatprep.mubr.f32.mxu0 0.0
      %3609 = vmatmul.mubr.f32.gmra.mrb[0].mxu0 %v3471
      %v3610 = vpop.f32.mrb[0].mxu0
      %v3611 = vadd.f32 0.0, %v3610
      %v3612 = vpop.f32.mrb[0].mxu0
      %3613 = vmatprep.mubr.f32.mxu0 0.0
      %3614 = vmatmul.mubr.f32.gmra.mrb[0].mxu0 %v3474
      %v3615 = vpop.f32.mrb[0].mxu0
      %v3616 = vadd.f32 0.0, %v3615
      %v3617 = vpop.f32.mrb[0].mxu0
      %3618 = vmatprep.mubr.f32.mxu0 0.0
      %3619 = vmatmul.mubr.f32.gmra.mrb[0].mxu0 %v3477
      %v3620 = vpop.f32.mrb[0].mxu0
      %v3621 = vadd.f32 0.0, %v3620
      %v3622 = vpop.f32.mrb[0].mxu0
      %3623 = vmatprep.mubr.f32.mxu0 0.0
      %3624 = vmatmul.mubr.f32.gmra.mrb[0].mxu0 %v3480
      %v3625 = vpop.f32.mrb[0].mxu0
      %v3626 = vadd.f32 0.0, %v3625
      %v3627 = vpop.f32.mrb[0].mxu0
      %3628 = vmatprep.mubr.f32.mxu0 0.0
      %3629 = vmatmul.mubr.f32.gmra.mrb[0].mxu0 %v3483
      %v3630 = vpop.f32.mrb[0].mxu0
      %v3631 = vadd.f32 0.0, %v3630
      %v3632 = vpop.f32.mrb[0].mxu0
      %3633 = vmatprep.mubr.f32.mxu0 0.0
      %3634 = vmatmul.mubr.f32.gmra.mrb[0].mxu0 %v3486
      %v3635 = vpop.f32.mrb[0].mxu0
      %v3636 = vadd.f32 0.0, %v3635
      %v3637 = vpop.f32.mrb[0].mxu0
      %3638 = vmatprep.mubr.f32.mxu0 0.0
      %3639 = vmatmul.mubr.f32.gmra.mrb[0].mxu0 %v3489
      %v3640 = vpop.f32.mrb[0].mxu0
      %v3641 = vadd.f32 0.0, %v3640
      %v3642 = vpop.f32.mrb[0].mxu0
      %3643 = vmatprep.mubr.f32.mxu0 0.0
      %3644 = vmatmul.mubr.f32.gmra.mrb[0].mxu0 %v3492
      %v3645 = vpop.f32.mrb[0].mxu0
      %v3646 = vadd.f32 0.0, %v3645
      %v3647 = vpop.f32.mrb[0].mxu0
      %3648 = vdwg.mxu0
      %v3649 = vadd.f32 %v1179, %v3561
      %v3650 = vadd.f32 %v1179, %v3566
      %v3651 = vadd.f32 %v1179, %v3571
      %v3652 = vadd.f32 %v1179, %v3576
      %v3653 = vadd.f32 %v1179, %v3581
      %v3654 = vadd.f32 %v1179, %v3586
      %v3655 = vadd.f32 %v1179, %v3591
      %v3656 = vadd.f32 %v1179, %v3596
      %v3657 = vadd.f32 %v1179, %v3601
      %v3658 = vadd.f32 %v1179, %v3606
      %v3659 = vadd.f32 %v1179, %v3611
      %v3660 = vadd.f32 %v1179, %v3616
      %v3661 = vadd.f32 %v1179, %v3621
      %v3662 = vadd.f32 %v1179, %v3626
      %v3663 = vadd.f32 %v1179, %v3631
      %v3664 = vadd.f32 %v1179, %v3636
      %v3665 = vadd.f32 %v1179, %v3641
      %v3666 = vadd.f32 %v1179, %v3646
      %v3667 = vld [vmem:[#allocation2 + $0x91] sm:$0xff]
      %v3668 = vld [vmem:[#allocation2 + $0x99] sm:$0xff]
      %v3669 = vld [vmem:[#allocation2 + $0xa1] sm:$0xff]
      %v3670 = vld [vmem:[#allocation2 + $0xa9] sm:$0xff]
      %v3671 = vld [vmem:[#allocation2 + $0xb1] sm:$0xff]
      %v3672 = vld [vmem:[#allocation2 + $0xb9] sm:$0xff]
      %v3673 = vld [vmem:[#allocation2 + $0xc1] sm:$0xff]
      %v3674 = vld [vmem:[#allocation2 + $0xc9] sm:$0xff]
      %v3675 = vld [vmem:[#allocation2 + $0xd1] sm:$0xff]
      %v3676 = vld [vmem:[#allocation2 + $0xd9] sm:$0xff]
      %v3677 = vld [vmem:[#allocation2 + $0xe1] sm:$0xff]
      %v3678 = vld [vmem:[#allocation2 + $0xe9] sm:$0xff]
      %v3679 = vld [vmem:[#allocation2 + $0xf1] sm:$0xff]
      %v3680 = vld [vmem:[#allocation2 + $0xf9] sm:$0xff]
      %v3681 = vld [vmem:[#allocation2 + $0x101] sm:$0xff]
      %v3682 = vld [vmem:[#allocation2 + $0x109] sm:$0xff]
      %v3683 = vld [vmem:[#allocation2 + $0x111] sm:$0xff]
      %v3684 = vld [vmem:[#allocation2 + $0x119] sm:$0xff]
      %v3685 = vld [vmem:[%s1445] sm:$0xff]
      %v3687 = vsel %vm225, %v3667, 0
      %v3690 = vsel %vm225, %v3668, 0
      %v3693 = vsel %vm225, %v3669, 0
      %v3696 = vsel %vm225, %v3670, 0
      %v3699 = vsel %vm225, %v3671, 0
      %v3702 = vsel %vm225, %v3672, 0
      %v3705 = vsel %vm225, %v3673, 0
      %v3708 = vsel %vm225, %v3674, 0
      %v3711 = vsel %vm225, %v3675, 0
      %v3714 = vsel %vm225, %v3676, 0
      %v3717 = vsel %vm225, %v3677, 0
      %v3720 = vsel %vm225, %v3678, 0
      %v3723 = vsel %vm225, %v3679, 0
      %v3726 = vsel %vm225, %v3680, 0
      %v3729 = vsel %vm225, %v3681, 0
      %v3732 = vsel %vm225, %v3682, 0
      %v3735 = vsel %vm225, %v3683, 0
      %v3738 = vsel %vm225, %v3684, 0
      %3740 = vmatprep.subr.mxu0 0.0
      %3741 = vmatpush1.msra.mxu0 %v3685
      %3742 = vmatprep.subr.mxu0 0.0
      %3743 = vmatpush1.msra.mxu0 0.0
      %3744 = vmatprep.subr.mxu0 0.0
      %3745 = vmatpush1.msra.mxu0 0.0
      %3746 = vmatprep.subr.mxu0 0.0
      %3747 = vmatpush1.msra.mxu0 0.0
      %3748 = vmatprep.subr.mxu0 0.0
      %3749 = vmatpush1.msra.mxu0 0.0
      %3750 = vmatprep.subr.mxu0 0.0
      %3751 = vmatpush1.msra.mxu0 0.0
      %3752 = vmatprep.subr.mxu0 0.0
      %3753 = vmatpush1.msra.mxu0 0.0
      %3754 = vmatprep.subr.mxu0 0.0
      %3755 = vmatpush1.msra.mxu0 0.0
      %3756 = vmatprep.subr.mxu0 0.0
      %3757 = vmatpush1.msra.mxu0 0.0
      %3758 = vmatprep.subr.mxu0 0.0
      %3759 = vmatpush1.msra.mxu0 0.0
      %3760 = vmatprep.subr.mxu0 0.0
      %3761 = vmatpush1.msra.mxu0 0.0
      %3762 = vmatprep.subr.mxu0 0.0
      %3763 = vmatpush1.msra.mxu0 0.0
      %3764 = vmatprep.subr.mxu0 0.0
      %3765 = vmatpush1.msra.mxu0 0.0
      %3766 = vmatprep.subr.mxu0 0.0
      %3767 = vmatpush1.msra.mxu0 0.0
      %3768 = vmatprep.subr.mxu0 0.0
      %3769 = vmatpush1.msra.mxu0 0.0
      %3770 = vmatprep.subr.mxu0 0.0
      %3771 = vmatpush1.msra.mxu0 0.0
      %3772 = vmatprep.subr.mxu0 0.0
      %3773 = vmatpush1.msra.mxu0 0.0
      %3774 = vmatprep.subr.mxu0 0.0
      %3775 = vmatpush1.msra.mxu0 0.0
      %3776 = vmatprep.subr.mxu0 0.0
      %3777 = vmatpush1.msra.mxu0 0.0
      %3778 = vmatprep.subr.mxu0 0.0
      %3779 = vmatpush1.msra.mxu0 0.0
      %3780 = vmatprep.subr.mxu0 0.0
      %3781 = vmatpush1.msra.mxu0 0.0
      %3782 = vmatprep.subr.mxu0 0.0
      %3783 = vmatpush1.msra.mxu0 0.0
      %3784 = vmatprep.subr.mxu0 0.0
      %3785 = vmatpush1.msra.mxu0 0.0
      %3786 = vmatprep.subr.mxu0 0.0
      %3787 = vmatpush1.msra.mxu0 0.0
      %3788 = vmatprep.subr.mxu0 0.0
      %3789 = vmatpush1.msra.mxu0 0.0
      %3790 = vmatprep.subr.mxu0 0.0
      %3791 = vmatpush1.msra.mxu0 0.0
      %3792 = vmatprep.subr.mxu0 0.0
      %3793 = vmatpush1.msra.mxu0 0.0
      %3794 = vmatprep.subr.mxu0 0.0
      %3795 = vmatpush1.msra.mxu0 0.0
      %3796 = vmatprep.subr.mxu0 0.0
      %3797 = vmatpush1.msra.mxu0 0.0
      %3798 = vmatprep.subr.mxu0 0.0
      %3799 = vmatpush1.msra.mxu0 0.0
      %3800 = vmatprep.subr.mxu0 0.0
      %3801 = vmatpush1.msra.mxu0 0.0
      %3802 = vmatprep.subr.mxu0 0.0
      %3803 = vmatpush1.msra.mxu0 0.0
      %3804 = vmatprep.mubr.f32.mxu0 0.0
      %3805 = vmatmul.mubr.f32.gmra.mrb[0].mxu0 %v3687
      %v3806 = vpop.f32.mrb[0].mxu0
      %v3807 = vadd.f32 0.0, %v3806
      %v3808 = vpop.f32.mrb[0].mxu0
      %3809 = vmatprep.mubr.f32.mxu0 0.0
      %3810 = vmatmul.mubr.f32.gmra.mrb[0].mxu0 %v3690
      %v3811 = vpop.f32.mrb[0].mxu0
      %v3812 = vadd.f32 0.0, %v3811
      %v3813 = vpop.f32.mrb[0].mxu0
      %3814 = vmatprep.mubr.f32.mxu0 0.0
      %3815 = vmatmul.mubr.f32.gmra.mrb[0].mxu0 %v3693
      %v3816 = vpop.f32.mrb[0].mxu0
      %v3817 = vadd.f32 0.0, %v3816
      %v3818 = vpop.f32.mrb[0].mxu0
      %3819 = vmatprep.mubr.f32.mxu0 0.0
      %3820 = vmatmul.mubr.f32.gmra.mrb[0].mxu0 %v3696
      %v3821 = vpop.f32.mrb[0].mxu0
      %v3822 = vadd.f32 0.0, %v3821
      %v3823 = vpop.f32.mrb[0].mxu0
      %3824 = vmatprep.mubr.f32.mxu0 0.0
      %3825 = vmatmul.mubr.f32.gmra.mrb[0].mxu0 %v3699
      %v3826 = vpop.f32.mrb[0].mxu0
      %v3827 = vadd.f32 0.0, %v3826
      %v3828 = vpop.f32.mrb[0].mxu0
      %3829 = vmatprep.mubr.f32.mxu0 0.0
      %3830 = vmatmul.mubr.f32.gmra.mrb[0].mxu0 %v3702
      %v3831 = vpop.f32.mrb[0].mxu0
      %v3832 = vadd.f32 0.0, %v3831
      %v3833 = vpop.f32.mrb[0].mxu0
      %3834 = vmatprep.mubr.f32.mxu0 0.0
      %3835 = vmatmul.mubr.f32.gmra.mrb[0].mxu0 %v3705
      %v3836 = vpop.f32.mrb[0].mxu0
      %v3837 = vadd.f32 0.0, %v3836
      %v3838 = vpop.f32.mrb[0].mxu0
      %3839 = vmatprep.mubr.f32.mxu0 0.0
      %3840 = vmatmul.mubr.f32.gmra.mrb[0].mxu0 %v3708
      %v3841 = vpop.f32.mrb[0].mxu0
      %v3842 = vadd.f32 0.0, %v3841
      %v3843 = vpop.f32.mrb[0].mxu0
      %3844 = vmatprep.mubr.f32.mxu0 0.0
      %3845 = vmatmul.mubr.f32.gmra.mrb[0].mxu0 %v3711
      %v3846 = vpop.f32.mrb[0].mxu0
      %v3847 = vadd.f32 0.0, %v3846
      %v3848 = vpop.f32.mrb[0].mxu0
      %3849 = vmatprep.mubr.f32.mxu0 0.0
      %3850 = vmatmul.mubr.f32.gmra.mrb[0].mxu0 %v3714
      %v3851 = vpop.f32.mrb[0].mxu0
      %v3852 = vadd.f32 0.0, %v3851
      %v3853 = vpop.f32.mrb[0].mxu0
      %3854 = vmatprep.mubr.f32.mxu0 0.0
      %3855 = vmatmul.mubr.f32.gmra.mrb[0].mxu0 %v3717
      %v3856 = vpop.f32.mrb[0].mxu0
      %v3857 = vadd.f32 0.0, %v3856
      %v3858 = vpop.f32.mrb[0].mxu0
      %3859 = vmatprep.mubr.f32.mxu0 0.0
      %3860 = vmatmul.mubr.f32.gmra.mrb[0].mxu0 %v3720
      %v3861 = vpop.f32.mrb[0].mxu0
      %v3862 = vadd.f32 0.0, %v3861
      %v3863 = vpop.f32.mrb[0].mxu0
      %3864 = vmatprep.mubr.f32.mxu0 0.0
      %3865 = vmatmul.mubr.f32.gmra.mrb[0].mxu0 %v3723
      %v3866 = vpop.f32.mrb[0].mxu0
      %v3867 = vadd.f32 0.0, %v3866
      %v3868 = vpop.f32.mrb[0].mxu0
      %3869 = vmatprep.mubr.f32.mxu0 0.0
      %3870 = vmatmul.mubr.f32.gmra.mrb[0].mxu0 %v3726
      %v3871 = vpop.f32.mrb[0].mxu0
      %v3872 = vadd.f32 0.0, %v3871
      %v3873 = vpop.f32.mrb[0].mxu0
      %3874 = vmatprep.mubr.f32.mxu0 0.0
      %3875 = vmatmul.mubr.f32.gmra.mrb[0].mxu0 %v3729
      %v3876 = vpop.f32.mrb[0].mxu0
      %v3877 = vadd.f32 0.0, %v3876
      %v3878 = vpop.f32.mrb[0].mxu0
      %3879 = vmatprep.mubr.f32.mxu0 0.0
      %3880 = vmatmul.mubr.f32.gmra.mrb[0].mxu0 %v3732
      %v3881 = vpop.f32.mrb[0].mxu0
      %v3882 = vadd.f32 0.0, %v3881
      %v3883 = vpop.f32.mrb[0].mxu0
      %3884 = vmatprep.mubr.f32.mxu0 0.0
      %3885 = vmatmul.mubr.f32.gmra.mrb[0].mxu0 %v3735
      %v3886 = vpop.f32.mrb[0].mxu0
      %v3887 = vadd.f32 0.0, %v3886
      %v3888 = vpop.f32.mrb[0].mxu0
      %3889 = vmatprep.mubr.f32.mxu0 0.0
      %3890 = vmatmul.mubr.f32.gmra.mrb[0].mxu0 %v3738
      %v3891 = vpop.f32.mrb[0].mxu0
      %v3892 = vadd.f32 0.0, %v3891
      %v3893 = vpop.f32.mrb[0].mxu0
      %3894 = vdwg.mxu0
      %v3895 = vadd.f32 %v3649, %v3807
      %v3896 = vadd.f32 %v3650, %v3812
      %v3897 = vadd.f32 %v3651, %v3817
      %v3898 = vadd.f32 %v3652, %v3822
      %v3899 = vadd.f32 %v3653, %v3827
      %v3900 = vadd.f32 %v3654, %v3832
      %v3901 = vadd.f32 %v3655, %v3837
      %v3902 = vadd.f32 %v3656, %v3842
      %v3903 = vadd.f32 %v3657, %v3847
      %v3904 = vadd.f32 %v3658, %v3852
      %v3905 = vadd.f32 %v3659, %v3857
      %v3906 = vadd.f32 %v3660, %v3862
      %v3907 = vadd.f32 %v3661, %v3867
      %v3908 = vadd.f32 %v3662, %v3872
      %v3909 = vadd.f32 %v3663, %v3877
      %v3910 = vadd.f32 %v3664, %v3882
      %v3911 = vadd.f32 %v3665, %v3887
      %v3912 = vadd.f32 %v3666, %v3892
      %v3913 = vld [vmem:[#allocation2 + $0x92] sm:$0xff]
      %v3914 = vld [vmem:[#allocation2 + $0x9a] sm:$0xff]
      %v3915 = vld [vmem:[#allocation2 + $0xa2] sm:$0xff]
      %v3916 = vld [vmem:[#allocation2 + $0xaa] sm:$0xff]
      %v3917 = vld [vmem:[#allocation2 + $0xb2] sm:$0xff]
      %v3918 = vld [vmem:[#allocation2 + $0xba] sm:$0xff]
      %v3919 = vld [vmem:[#allocation2 + $0xc2] sm:$0xff]
      %v3920 = vld [vmem:[#allocation2 + $0xca] sm:$0xff]
      %v3921 = vld [vmem:[#allocation2 + $0xd2] sm:$0xff]
      %v3922 = vld [vmem:[#allocation2 + $0xda] sm:$0xff]
      %v3923 = vld [vmem:[#allocation2 + $0xe2] sm:$0xff]
      %v3924 = vld [vmem:[#allocation2 + $0xea] sm:$0xff]
      %v3925 = vld [vmem:[#allocation2 + $0xf2] sm:$0xff]
      %v3926 = vld [vmem:[#allocation2 + $0xfa] sm:$0xff]
      %v3927 = vld [vmem:[#allocation2 + $0x102] sm:$0xff]
      %v3928 = vld [vmem:[#allocation2 + $0x10a] sm:$0xff]
      %v3929 = vld [vmem:[#allocation2 + $0x112] sm:$0xff]
      %v3930 = vld [vmem:[#allocation2 + $0x11a] sm:$0xff]
      %v3931 = vld [vmem:[%s1692] sm:$0xff]
      %v3933 = vsel %vm225, %v3913, 0
      %v3936 = vsel %vm225, %v3914, 0
      %v3939 = vsel %vm225, %v3915, 0
      %v3942 = vsel %vm225, %v3916, 0
      %v3945 = vsel %vm225, %v3917, 0
      %v3948 = vsel %vm225, %v3918, 0
      %v3951 = vsel %vm225, %v3919, 0
      %v3954 = vsel %vm225, %v3920, 0
      %v3957 = vsel %vm225, %v3921, 0
      %v3960 = vsel %vm225, %v3922, 0
      %v3963 = vsel %vm225, %v3923, 0
      %v3966 = vsel %vm225, %v3924, 0
      %v3969 = vsel %vm225, %v3925, 0
      %v3972 = vsel %vm225, %v3926, 0
      %v3975 = vsel %vm225, %v3927, 0
      %v3978 = vsel %vm225, %v3928, 0
      %v3981 = vsel %vm225, %v3929, 0
      %v3984 = vsel %vm225, %v3930, 0
      %3986 = vmatprep.subr.mxu0 0.0
      %3987 = vmatpush1.msra.mxu0 %v3931
      %3988 = vmatprep.subr.mxu0 0.0
      %3989 = vmatpush1.msra.mxu0 0.0
      %3990 = vmatprep.subr.mxu0 0.0
      %3991 = vmatpush1.msra.mxu0 0.0
      %3992 = vmatprep.subr.mxu0 0.0
      %3993 = vmatpush1.msra.mxu0 0.0
      %3994 = vmatprep.subr.mxu0 0.0
      %3995 = vmatpush1.msra.mxu0 0.0
      %3996 = vmatprep.subr.mxu0 0.0
      %3997 = vmatpush1.msra.mxu0 0.0
      %3998 = vmatprep.subr.mxu0 0.0
      %3999 = vmatpush1.msra.mxu0 0.0
      %4000 = vmatprep.subr.mxu0 0.0
      %4001 = vmatpush1.msra.mxu0 0.0
      %4002 = vmatprep.subr.mxu0 0.0
      %4003 = vmatpush1.msra.mxu0 0.0
      %4004 = vmatprep.subr.mxu0 0.0
      %4005 = vmatpush1.msra.mxu0 0.0
      %4006 = vmatprep.subr.mxu0 0.0
      %4007 = vmatpush1.msra.mxu0 0.0
      %4008 = vmatprep.subr.mxu0 0.0
      %4009 = vmatpush1.msra.mxu0 0.0
      %4010 = vmatprep.subr.mxu0 0.0
      %4011 = vmatpush1.msra.mxu0 0.0
      %4012 = vmatprep.subr.mxu0 0.0
      %4013 = vmatpush1.msra.mxu0 0.0
      %4014 = vmatprep.subr.mxu0 0.0
      %4015 = vmatpush1.msra.mxu0 0.0
      %4016 = vmatprep.subr.mxu0 0.0
      %4017 = vmatpush1.msra.mxu0 0.0
      %4018 = vmatprep.subr.mxu0 0.0
      %4019 = vmatpush1.msra.mxu0 0.0
      %4020 = vmatprep.subr.mxu0 0.0
      %4021 = vmatpush1.msra.mxu0 0.0
      %4022 = vmatprep.subr.mxu0 0.0
      %4023 = vmatpush1.msra.mxu0 0.0
      %4024 = vmatprep.subr.mxu0 0.0
      %4025 = vmatpush1.msra.mxu0 0.0
      %4026 = vmatprep.subr.mxu0 0.0
      %4027 = vmatpush1.msra.mxu0 0.0
      %4028 = vmatprep.subr.mxu0 0.0
      %4029 = vmatpush1.msra.mxu0 0.0
      %4030 = vmatprep.subr.mxu0 0.0
      %4031 = vmatpush1.msra.mxu0 0.0
      %4032 = vmatprep.subr.mxu0 0.0
      %4033 = vmatpush1.msra.mxu0 0.0
      %4034 = vmatprep.subr.mxu0 0.0
      %4035 = vmatpush1.msra.mxu0 0.0
      %4036 = vmatprep.subr.mxu0 0.0
      %4037 = vmatpush1.msra.mxu0 0.0
      %4038 = vmatprep.subr.mxu0 0.0
      %4039 = vmatpush1.msra.mxu0 0.0
      %4040 = vmatprep.subr.mxu0 0.0
      %4041 = vmatpush1.msra.mxu0 0.0
      %4042 = vmatprep.subr.mxu0 0.0
      %4043 = vmatpush1.msra.mxu0 0.0
      %4044 = vmatprep.subr.mxu0 0.0
      %4045 = vmatpush1.msra.mxu0 0.0
      %4046 = vmatprep.subr.mxu0 0.0
      %4047 = vmatpush1.msra.mxu0 0.0
      %4048 = vmatprep.subr.mxu0 0.0
      %4049 = vmatpush1.msra.mxu0 0.0
      %4050 = vmatprep.mubr.f32.mxu0 0.0
      %4051 = vmatmul.mubr.f32.gmra.mrb[0].mxu0 %v3933
      %v4052 = vpop.f32.mrb[0].mxu0
      %v4053 = vadd.f32 0.0, %v4052
      %v4054 = vpop.f32.mrb[0].mxu0
      %4055 = vmatprep.mubr.f32.mxu0 0.0
      %4056 = vmatmul.mubr.f32.gmra.mrb[0].mxu0 %v3936
      %v4057 = vpop.f32.mrb[0].mxu0
      %v4058 = vadd.f32 0.0, %v4057
      %v4059 = vpop.f32.mrb[0].mxu0
      %4060 = vmatprep.mubr.f32.mxu0 0.0
      %4061 = vmatmul.mubr.f32.gmra.mrb[0].mxu0 %v3939
      %v4062 = vpop.f32.mrb[0].mxu0
      %v4063 = vadd.f32 0.0, %v4062
      %v4064 = vpop.f32.mrb[0].mxu0
      %4065 = vmatprep.mubr.f32.mxu0 0.0
      %4066 = vmatmul.mubr.f32.gmra.mrb[0].mxu0 %v3942
      %v4067 = vpop.f32.mrb[0].mxu0
      %v4068 = vadd.f32 0.0, %v4067
      %v4069 = vpop.f32.mrb[0].mxu0
      %4070 = vmatprep.mubr.f32.mxu0 0.0
      %4071 = vmatmul.mubr.f32.gmra.mrb[0].mxu0 %v3945
      %v4072 = vpop.f32.mrb[0].mxu0
      %v4073 = vadd.f32 0.0, %v4072
      %v4074 = vpop.f32.mrb[0].mxu0
      %4075 = vmatprep.mubr.f32.mxu0 0.0
      %4076 = vmatmul.mubr.f32.gmra.mrb[0].mxu0 %v3948
      %v4077 = vpop.f32.mrb[0].mxu0
      %v4078 = vadd.f32 0.0, %v4077
      %v4079 = vpop.f32.mrb[0].mxu0
      %4080 = vmatprep.mubr.f32.mxu0 0.0
      %4081 = vmatmul.mubr.f32.gmra.mrb[0].mxu0 %v3951
      %v4082 = vpop.f32.mrb[0].mxu0
      %v4083 = vadd.f32 0.0, %v4082
      %v4084 = vpop.f32.mrb[0].mxu0
      %4085 = vmatprep.mubr.f32.mxu0 0.0
      %4086 = vmatmul.mubr.f32.gmra.mrb[0].mxu0 %v3954
      %v4087 = vpop.f32.mrb[0].mxu0
      %v4088 = vadd.f32 0.0, %v4087
      %v4089 = vpop.f32.mrb[0].mxu0
      %4090 = vmatprep.mubr.f32.mxu0 0.0
      %4091 = vmatmul.mubr.f32.gmra.mrb[0].mxu0 %v3957
      %v4092 = vpop.f32.mrb[0].mxu0
      %v4093 = vadd.f32 0.0, %v4092
      %v4094 = vpop.f32.mrb[0].mxu0
      %4095 = vmatprep.mubr.f32.mxu0 0.0
      %4096 = vmatmul.mubr.f32.gmra.mrb[0].mxu0 %v3960
      %v4097 = vpop.f32.mrb[0].mxu0
      %v4098 = vadd.f32 0.0, %v4097
      %v4099 = vpop.f32.mrb[0].mxu0
      %4100 = vmatprep.mubr.f32.mxu0 0.0
      %4101 = vmatmul.mubr.f32.gmra.mrb[0].mxu0 %v3963
      %v4102 = vpop.f32.mrb[0].mxu0
      %v4103 = vadd.f32 0.0, %v4102
      %v4104 = vpop.f32.mrb[0].mxu0
      %4105 = vmatprep.mubr.f32.mxu0 0.0
      %4106 = vmatmul.mubr.f32.gmra.mrb[0].mxu0 %v3966
      %v4107 = vpop.f32.mrb[0].mxu0
      %v4108 = vadd.f32 0.0, %v4107
      %v4109 = vpop.f32.mrb[0].mxu0
      %4110 = vmatprep.mubr.f32.mxu0 0.0
      %4111 = vmatmul.mubr.f32.gmra.mrb[0].mxu0 %v3969
      %v4112 = vpop.f32.mrb[0].mxu0
      %v4113 = vadd.f32 0.0, %v4112
      %v4114 = vpop.f32.mrb[0].mxu0
      %4115 = vmatprep.mubr.f32.mxu0 0.0
      %4116 = vmatmul.mubr.f32.gmra.mrb[0].mxu0 %v3972
      %v4117 = vpop.f32.mrb[0].mxu0
      %v4118 = vadd.f32 0.0, %v4117
      %v4119 = vpop.f32.mrb[0].mxu0
      %4120 = vmatprep.mubr.f32.mxu0 0.0
      %4121 = vmatmul.mubr.f32.gmra.mrb[0].mxu0 %v3975
      %v4122 = vpop.f32.mrb[0].mxu0
      %v4123 = vadd.f32 0.0, %v4122
      %v4124 = vpop.f32.mrb[0].mxu0
      %4125 = vmatprep.mubr.f32.mxu0 0.0
      %4126 = vmatmul.mubr.f32.gmra.mrb[0].mxu0 %v3978
      %v4127 = vpop.f32.mrb[0].mxu0
      %v4128 = vadd.f32 0.0, %v4127
      %v4129 = vpop.f32.mrb[0].mxu0
      %4130 = vmatprep.mubr.f32.mxu0 0.0
      %4131 = vmatmul.mubr.f32.gmra.mrb[0].mxu0 %v3981
      %v4132 = vpop.f32.mrb[0].mxu0
      %v4133 = vadd.f32 0.0, %v4132
      %v4134 = vpop.f32.mrb[0].mxu0
      %4135 = vmatprep.mubr.f32.mxu0 0.0
      %4136 = vmatmul.mubr.f32.gmra.mrb[0].mxu0 %v3984
      %v4137 = vpop.f32.mrb[0].mxu0
      %v4138 = vadd.f32 0.0, %v4137
      %v4139 = vpop.f32.mrb[0].mxu0
      %4140 = vdwg.mxu0
      %v4141 = vadd.f32 %v3895, %v4053
      %v4142 = vadd.f32 %v3896, %v4058
      %v4143 = vadd.f32 %v3897, %v4063
      %v4144 = vadd.f32 %v3898, %v4068
      %v4145 = vadd.f32 %v3899, %v4073
      %v4146 = vadd.f32 %v3900, %v4078
      %v4147 = vadd.f32 %v3901, %v4083
      %v4148 = vadd.f32 %v3902, %v4088
      %v4149 = vadd.f32 %v3903, %v4093
      %v4150 = vadd.f32 %v3904, %v4098
      %v4151 = vadd.f32 %v3905, %v4103
      %v4152 = vadd.f32 %v3906, %v4108
      %v4153 = vadd.f32 %v3907, %v4113
      %v4154 = vadd.f32 %v3908, %v4118
      %v4155 = vadd.f32 %v3909, %v4123
      %v4156 = vadd.f32 %v3910, %v4128
      %v4157 = vadd.f32 %v3911, %v4133
      %v4158 = vadd.f32 %v3912, %v4138
      %v4159 = vld [vmem:[#allocation2 + $0xa2] sm:$0xff]
      %v4160 = vld [vmem:[#allocation2 + $0xaa] sm:$0xff]
      %v4161 = vld [vmem:[#allocation2 + $0xb2] sm:$0xff]
      %v4162 = vld [vmem:[#allocation2 + $0xba] sm:$0xff]
      %v4163 = vld [vmem:[#allocation2 + $0xc2] sm:$0xff]
      %v4164 = vld [vmem:[#allocation2 + $0xca] sm:$0xff]
      %v4165 = vld [vmem:[#allocation2 + $0xd2] sm:$0xff]
      %v4166 = vld [vmem:[#allocation2 + $0xda] sm:$0xff]
      %v4167 = vld [vmem:[#allocation2 + $0xe2] sm:$0xff]
      %v4168 = vld [vmem:[#allocation2 + $0xea] sm:$0xff]
      %v4169 = vld [vmem:[#allocation2 + $0xf2] sm:$0xff]
      %v4170 = vld [vmem:[#allocation2 + $0xfa] sm:$0xff]
      %v4171 = vld [vmem:[#allocation2 + $0x102] sm:$0xff]
      %v4172 = vld [vmem:[#allocation2 + $0x10a] sm:$0xff]
      %v4173 = vld [vmem:[#allocation2 + $0x112] sm:$0xff]
      %v4174 = vld [vmem:[#allocation2 + $0x11a] sm:$0xff]
      %v4175 = vld [vmem:[#allocation2 + $0x122] sm:$0xff]
      %v4176 = vld [vmem:[#allocation2 + $0x12a] sm:$0xff]
      %v4177 = vld [vmem:[%s1939] sm:$0xff]
      %v4179 = vsel %vm225, %v4159, 0
      %v4182 = vsel %vm225, %v4160, 0
      %v4185 = vsel %vm225, %v4161, 0
      %v4188 = vsel %vm225, %v4162, 0
      %v4191 = vsel %vm225, %v4163, 0
      %v4194 = vsel %vm225, %v4164, 0
      %v4197 = vsel %vm225, %v4165, 0
      %v4200 = vsel %vm225, %v4166, 0
      %v4203 = vsel %vm225, %v4167, 0
      %v4206 = vsel %vm225, %v4168, 0
      %v4209 = vsel %vm225, %v4169, 0
      %v4212 = vsel %vm225, %v4170, 0
      %v4215 = vsel %vm225, %v4171, 0
      %v4218 = vsel %vm225, %v4172, 0
      %v4221 = vsel %vm225, %v4173, 0
      %v4224 = vsel %vm225, %v4174, 0
      %v4227 = vsel %vm225, %v4175, 0
      %v4230 = vsel %vm225, %v4176, 0
      %4232 = vmatprep.subr.mxu0 0.0
      %4233 = vmatpush1.msra.mxu0 %v4177
      %4234 = vmatprep.subr.mxu0 0.0
      %4235 = vmatpush1.msra.mxu0 0.0
      %4236 = vmatprep.subr.mxu0 0.0
      %4237 = vmatpush1.msra.mxu0 0.0
      %4238 = vmatprep.subr.mxu0 0.0
      %4239 = vmatpush1.msra.mxu0 0.0
      %4240 = vmatprep.subr.mxu0 0.0
      %4241 = vmatpush1.msra.mxu0 0.0
      %4242 = vmatprep.subr.mxu0 0.0
      %4243 = vmatpush1.msra.mxu0 0.0
      %4244 = vmatprep.subr.mxu0 0.0
      %4245 = vmatpush1.msra.mxu0 0.0
      %4246 = vmatprep.subr.mxu0 0.0
      %4247 = vmatpush1.msra.mxu0 0.0
      %4248 = vmatprep.subr.mxu0 0.0
      %4249 = vmatpush1.msra.mxu0 0.0
      %4250 = vmatprep.subr.mxu0 0.0
      %4251 = vmatpush1.msra.mxu0 0.0
      %4252 = vmatprep.subr.mxu0 0.0
      %4253 = vmatpush1.msra.mxu0 0.0
      %4254 = vmatprep.subr.mxu0 0.0
      %4255 = vmatpush1.msra.mxu0 0.0
      %4256 = vmatprep.subr.mxu0 0.0
      %4257 = vmatpush1.msra.mxu0 0.0
      %4258 = vmatprep.subr.mxu0 0.0
      %4259 = vmatpush1.msra.mxu0 0.0
      %4260 = vmatprep.subr.mxu0 0.0
      %4261 = vmatpush1.msra.mxu0 0.0
      %4262 = vmatprep.subr.mxu0 0.0
      %4263 = vmatpush1.msra.mxu0 0.0
      %4264 = vmatprep.subr.mxu0 0.0
      %4265 = vmatpush1.msra.mxu0 0.0
      %4266 = vmatprep.subr.mxu0 0.0
      %4267 = vmatpush1.msra.mxu0 0.0
      %4268 = vmatprep.subr.mxu0 0.0
      %4269 = vmatpush1.msra.mxu0 0.0
      %4270 = vmatprep.subr.mxu0 0.0
      %4271 = vmatpush1.msra.mxu0 0.0
      %4272 = vmatprep.subr.mxu0 0.0
      %4273 = vmatpush1.msra.mxu0 0.0
      %4274 = vmatprep.subr.mxu0 0.0
      %4275 = vmatpush1.msra.mxu0 0.0
      %4276 = vmatprep.subr.mxu0 0.0
      %4277 = vmatpush1.msra.mxu0 0.0
      %4278 = vmatprep.subr.mxu0 0.0
      %4279 = vmatpush1.msra.mxu0 0.0
      %4280 = vmatprep.subr.mxu0 0.0
      %4281 = vmatpush1.msra.mxu0 0.0
      %4282 = vmatprep.subr.mxu0 0.0
      %4283 = vmatpush1.msra.mxu0 0.0
      %4284 = vmatprep.subr.mxu0 0.0
      %4285 = vmatpush1.msra.mxu0 0.0
      %4286 = vmatprep.subr.mxu0 0.0
      %4287 = vmatpush1.msra.mxu0 0.0
      %4288 = vmatprep.subr.mxu0 0.0
      %4289 = vmatpush1.msra.mxu0 0.0
      %4290 = vmatprep.subr.mxu0 0.0
      %4291 = vmatpush1.msra.mxu0 0.0
      %4292 = vmatprep.subr.mxu0 0.0
      %4293 = vmatpush1.msra.mxu0 0.0
      %4294 = vmatprep.subr.mxu0 0.0
      %4295 = vmatpush1.msra.mxu0 0.0
      %4296 = vmatprep.mubr.f32.mxu0 0.0
      %4297 = vmatmul.mubr.f32.gmra.mrb[0].mxu0 %v4179
      %v4298 = vpop.f32.mrb[0].mxu0
      %v4299 = vadd.f32 0.0, %v4298
      %v4300 = vpop.f32.mrb[0].mxu0
      %4301 = vmatprep.mubr.f32.mxu0 0.0
      %4302 = vmatmul.mubr.f32.gmra.mrb[0].mxu0 %v4182
      %v4303 = vpop.f32.mrb[0].mxu0
      %v4304 = vadd.f32 0.0, %v4303
      %v4305 = vpop.f32.mrb[0].mxu0
      %4306 = vmatprep.mubr.f32.mxu0 0.0
      %4307 = vmatmul.mubr.f32.gmra.mrb[0].mxu0 %v4185
      %v4308 = vpop.f32.mrb[0].mxu0
      %v4309 = vadd.f32 0.0, %v4308
      %v4310 = vpop.f32.mrb[0].mxu0
      %4311 = vmatprep.mubr.f32.mxu0 0.0
      %4312 = vmatmul.mubr.f32.gmra.mrb[0].mxu0 %v4188
      %v4313 = vpop.f32.mrb[0].mxu0
      %v4314 = vadd.f32 0.0, %v4313
      %v4315 = vpop.f32.mrb[0].mxu0
      %4316 = vmatprep.mubr.f32.mxu0 0.0
      %4317 = vmatmul.mubr.f32.gmra.mrb[0].mxu0 %v4191
      %v4318 = vpop.f32.mrb[0].mxu0
      %v4319 = vadd.f32 0.0, %v4318
      %v4320 = vpop.f32.mrb[0].mxu0
      %4321 = vmatprep.mubr.f32.mxu0 0.0
      %4322 = vmatmul.mubr.f32.gmra.mrb[0].mxu0 %v4194
      %v4323 = vpop.f32.mrb[0].mxu0
      %v4324 = vadd.f32 0.0, %v4323
      %v4325 = vpop.f32.mrb[0].mxu0
      %4326 = vmatprep.mubr.f32.mxu0 0.0
      %4327 = vmatmul.mubr.f32.gmra.mrb[0].mxu0 %v4197
      %v4328 = vpop.f32.mrb[0].mxu0
      %v4329 = vadd.f32 0.0, %v4328
      %v4330 = vpop.f32.mrb[0].mxu0
      %4331 = vmatprep.mubr.f32.mxu0 0.0
      %4332 = vmatmul.mubr.f32.gmra.mrb[0].mxu0 %v4200
      %v4333 = vpop.f32.mrb[0].mxu0
      %v4334 = vadd.f32 0.0, %v4333
      %v4335 = vpop.f32.mrb[0].mxu0
      %4336 = vmatprep.mubr.f32.mxu0 0.0
      %4337 = vmatmul.mubr.f32.gmra.mrb[0].mxu0 %v4203
      %v4338 = vpop.f32.mrb[0].mxu0
      %v4339 = vadd.f32 0.0, %v4338
      %v4340 = vpop.f32.mrb[0].mxu0
      %4341 = vmatprep.mubr.f32.mxu0 0.0
      %4342 = vmatmul.mubr.f32.gmra.mrb[0].mxu0 %v4206
      %v4343 = vpop.f32.mrb[0].mxu0
      %v4344 = vadd.f32 0.0, %v4343
      %v4345 = vpop.f32.mrb[0].mxu0
      %4346 = vmatprep.mubr.f32.mxu0 0.0
      %4347 = vmatmul.mubr.f32.gmra.mrb[0].mxu0 %v4209
      %v4348 = vpop.f32.mrb[0].mxu0
      %v4349 = vadd.f32 0.0, %v4348
      %v4350 = vpop.f32.mrb[0].mxu0
      %4351 = vmatprep.mubr.f32.mxu0 0.0
      %4352 = vmatmul.mubr.f32.gmra.mrb[0].mxu0 %v4212
      %v4353 = vpop.f32.mrb[0].mxu0
      %v4354 = vadd.f32 0.0, %v4353
      %v4355 = vpop.f32.mrb[0].mxu0
      %4356 = vmatprep.mubr.f32.mxu0 0.0
      %4357 = vmatmul.mubr.f32.gmra.mrb[0].mxu0 %v4215
      %v4358 = vpop.f32.mrb[0].mxu0
      %v4359 = vadd.f32 0.0, %v4358
      %v4360 = vpop.f32.mrb[0].mxu0
      %4361 = vmatprep.mubr.f32.mxu0 0.0
      %4362 = vmatmul.mubr.f32.gmra.mrb[0].mxu0 %v4218
      %v4363 = vpop.f32.mrb[0].mxu0
      %v4364 = vadd.f32 0.0, %v4363
      %v4365 = vpop.f32.mrb[0].mxu0
      %4366 = vmatprep.mubr.f32.mxu0 0.0
      %4367 = vmatmul.mubr.f32.gmra.mrb[0].mxu0 %v4221
      %v4368 = vpop.f32.mrb[0].mxu0
      %v4369 = vadd.f32 0.0, %v4368
      %v4370 = vpop.f32.mrb[0].mxu0
      %4371 = vmatprep.mubr.f32.mxu0 0.0
      %4372 = vmatmul.mubr.f32.gmra.mrb[0].mxu0 %v4224
      %v4373 = vpop.f32.mrb[0].mxu0
      %v4374 = vadd.f32 0.0, %v4373
      %v4375 = vpop.f32.mrb[0].mxu0
      %4376 = vmatprep.mubr.f32.mxu0 0.0
      %4377 = vmatmul.mubr.f32.gmra.mrb[0].mxu0 %v4227
      %v4378 = vpop.f32.mrb[0].mxu0
      %v4379 = vadd.f32 0.0, %v4378
      %v4380 = vpop.f32.mrb[0].mxu0
      %4381 = vmatprep.mubr.f32.mxu0 0.0
      %4382 = vmatmul.mubr.f32.gmra.mrb[0].mxu0 %v4230
      %v4383 = vpop.f32.mrb[0].mxu0
      %v4384 = vadd.f32 0.0, %v4383
      %v4385 = vpop.f32.mrb[0].mxu0
      %4386 = vdwg.mxu0
      %v4387 = vadd.f32 %v4141, %v4299
      %v4388 = vadd.f32 %v4142, %v4304
      %v4389 = vadd.f32 %v4143, %v4309
      %v4390 = vadd.f32 %v4144, %v4314
      %v4391 = vadd.f32 %v4145, %v4319
      %v4392 = vadd.f32 %v4146, %v4324
      %v4393 = vadd.f32 %v4147, %v4329
      %v4394 = vadd.f32 %v4148, %v4334
      %v4395 = vadd.f32 %v4149, %v4339
      %v4396 = vadd.f32 %v4150, %v4344
      %v4397 = vadd.f32 %v4151, %v4349
      %v4398 = vadd.f32 %v4152, %v4354
      %v4399 = vadd.f32 %v4153, %v4359
      %v4400 = vadd.f32 %v4154, %v4364
      %v4401 = vadd.f32 %v4155, %v4369
      %v4402 = vadd.f32 %v4156, %v4374
      %v4403 = vadd.f32 %v4157, %v4379
      %v4404 = vadd.f32 %v4158, %v4384
      %v4405 = vld [vmem:[#allocation2 + $0xa3] sm:$0xff]
      %v4406 = vld [vmem:[#allocation2 + $0xab] sm:$0xff]
      %v4407 = vld [vmem:[#allocation2 + $0xb3] sm:$0xff]
      %v4408 = vld [vmem:[#allocation2 + $0xbb] sm:$0xff]
      %v4409 = vld [vmem:[#allocation2 + $0xc3] sm:$0xff]
      %v4410 = vld [vmem:[#allocation2 + $0xcb] sm:$0xff]
      %v4411 = vld [vmem:[#allocation2 + $0xd3] sm:$0xff]
      %v4412 = vld [vmem:[#allocation2 + $0xdb] sm:$0xff]
      %v4413 = vld [vmem:[#allocation2 + $0xe3] sm:$0xff]
      %v4414 = vld [vmem:[#allocation2 + $0xeb] sm:$0xff]
      %v4415 = vld [vmem:[#allocation2 + $0xf3] sm:$0xff]
      %v4416 = vld [vmem:[#allocation2 + $0xfb] sm:$0xff]
      %v4417 = vld [vmem:[#allocation2 + $0x103] sm:$0xff]
      %v4418 = vld [vmem:[#allocation2 + $0x10b] sm:$0xff]
      %v4419 = vld [vmem:[#allocation2 + $0x113] sm:$0xff]
      %v4420 = vld [vmem:[#allocation2 + $0x11b] sm:$0xff]
      %v4421 = vld [vmem:[#allocation2 + $0x123] sm:$0xff]
      %v4422 = vld [vmem:[#allocation2 + $0x12b] sm:$0xff]
      %v4423 = vld [vmem:[%s2186] sm:$0xff]
      %v4425 = vsel %vm225, %v4405, 0
      %v4428 = vsel %vm225, %v4406, 0
      %v4431 = vsel %vm225, %v4407, 0
      %v4434 = vsel %vm225, %v4408, 0
      %v4437 = vsel %vm225, %v4409, 0
      %v4440 = vsel %vm225, %v4410, 0
      %v4443 = vsel %vm225, %v4411, 0
      %v4446 = vsel %vm225, %v4412, 0
      %v4449 = vsel %vm225, %v4413, 0
      %v4452 = vsel %vm225, %v4414, 0
      %v4455 = vsel %vm225, %v4415, 0
      %v4458 = vsel %vm225, %v4416, 0
      %v4461 = vsel %vm225, %v4417, 0
      %v4464 = vsel %vm225, %v4418, 0
      %v4467 = vsel %vm225, %v4419, 0
      %v4470 = vsel %vm225, %v4420, 0
      %v4473 = vsel %vm225, %v4421, 0
      %v4476 = vsel %vm225, %v4422, 0
      %4478 = vmatprep.subr.mxu0 0.0
      %4479 = vmatpush1.msra.mxu0 %v4423
      %4480 = vmatprep.subr.mxu0 0.0
      %4481 = vmatpush1.msra.mxu0 0.0
      %4482 = vmatprep.subr.mxu0 0.0
      %4483 = vmatpush1.msra.mxu0 0.0
      %4484 = vmatprep.subr.mxu0 0.0
      %4485 = vmatpush1.msra.mxu0 0.0
      %4486 = vmatprep.subr.mxu0 0.0
      %4487 = vmatpush1.msra.mxu0 0.0
      %4488 = vmatprep.subr.mxu0 0.0
      %4489 = vmatpush1.msra.mxu0 0.0
      %4490 = vmatprep.subr.mxu0 0.0
      %4491 = vmatpush1.msra.mxu0 0.0
      %4492 = vmatprep.subr.mxu0 0.0
      %4493 = vmatpush1.msra.mxu0 0.0
      %4494 = vmatprep.subr.mxu0 0.0
      %4495 = vmatpush1.msra.mxu0 0.0
      %4496 = vmatprep.subr.mxu0 0.0
      %4497 = vmatpush1.msra.mxu0 0.0
      %4498 = vmatprep.subr.mxu0 0.0
      %4499 = vmatpush1.msra.mxu0 0.0
      %4500 = vmatprep.subr.mxu0 0.0
      %4501 = vmatpush1.msra.mxu0 0.0
      %4502 = vmatprep.subr.mxu0 0.0
      %4503 = vmatpush1.msra.mxu0 0.0
      %4504 = vmatprep.subr.mxu0 0.0
      %4505 = vmatpush1.msra.mxu0 0.0
      %4506 = vmatprep.subr.mxu0 0.0
      %4507 = vmatpush1.msra.mxu0 0.0
      %4508 = vmatprep.subr.mxu0 0.0
      %4509 = vmatpush1.msra.mxu0 0.0
      %4510 = vmatprep.subr.mxu0 0.0
      %4511 = vmatpush1.msra.mxu0 0.0
      %4512 = vmatprep.subr.mxu0 0.0
      %4513 = vmatpush1.msra.mxu0 0.0
      %4514 = vmatprep.subr.mxu0 0.0
      %4515 = vmatpush1.msra.mxu0 0.0
      %4516 = vmatprep.subr.mxu0 0.0
      %4517 = vmatpush1.msra.mxu0 0.0
      %4518 = vmatprep.subr.mxu0 0.0
      %4519 = vmatpush1.msra.mxu0 0.0
      %4520 = vmatprep.subr.mxu0 0.0
      %4521 = vmatpush1.msra.mxu0 0.0
      %4522 = vmatprep.subr.mxu0 0.0
      %4523 = vmatpush1.msra.mxu0 0.0
      %4524 = vmatprep.subr.mxu0 0.0
      %4525 = vmatpush1.msra.mxu0 0.0
      %4526 = vmatprep.subr.mxu0 0.0
      %4527 = vmatpush1.msra.mxu0 0.0
      %4528 = vmatprep.subr.mxu0 0.0
      %4529 = vmatpush1.msra.mxu0 0.0
      %4530 = vmatprep.subr.mxu0 0.0
      %4531 = vmatpush1.msra.mxu0 0.0
      %4532 = vmatprep.subr.mxu0 0.0
      %4533 = vmatpush1.msra.mxu0 0.0
      %4534 = vmatprep.subr.mxu0 0.0
      %4535 = vmatpush1.msra.mxu0 0.0
      %4536 = vmatprep.subr.mxu0 0.0
      %4537 = vmatpush1.msra.mxu0 0.0
      %4538 = vmatprep.subr.mxu0 0.0
      %4539 = vmatpush1.msra.mxu0 0.0
      %4540 = vmatprep.subr.mxu0 0.0
      %4541 = vmatpush1.msra.mxu0 0.0
      %4542 = vmatprep.mubr.f32.mxu0 0.0
      %4543 = vmatmul.mubr.f32.gmra.mrb[0].mxu0 %v4425
      %v4544 = vpop.f32.mrb[0].mxu0
      %v4545 = vadd.f32 0.0, %v4544
      %v4546 = vpop.f32.mrb[0].mxu0
      %4547 = vmatprep.mubr.f32.mxu0 0.0
      %4548 = vmatmul.mubr.f32.gmra.mrb[0].mxu0 %v4428
      %v4549 = vpop.f32.mrb[0].mxu0
      %v4550 = vadd.f32 0.0, %v4549
      %v4551 = vpop.f32.mrb[0].mxu0
      %4552 = vmatprep.mubr.f32.mxu0 0.0
      %4553 = vmatmul.mubr.f32.gmra.mrb[0].mxu0 %v4431
      %v4554 = vpop.f32.mrb[0].mxu0
      %v4555 = vadd.f32 0.0, %v4554
      %v4556 = vpop.f32.mrb[0].mxu0
      %4557 = vmatprep.mubr.f32.mxu0 0.0
      %4558 = vmatmul.mubr.f32.gmra.mrb[0].mxu0 %v4434
      %v4559 = vpop.f32.mrb[0].mxu0
      %v4560 = vadd.f32 0.0, %v4559
      %v4561 = vpop.f32.mrb[0].mxu0
      %4562 = vmatprep.mubr.f32.mxu0 0.0
      %4563 = vmatmul.mubr.f32.gmra.mrb[0].mxu0 %v4437
      %v4564 = vpop.f32.mrb[0].mxu0
      %v4565 = vadd.f32 0.0, %v4564
      %v4566 = vpop.f32.mrb[0].mxu0
      %4567 = vmatprep.mubr.f32.mxu0 0.0
      %4568 = vmatmul.mubr.f32.gmra.mrb[0].mxu0 %v4440
      %v4569 = vpop.f32.mrb[0].mxu0
      %v4570 = vadd.f32 0.0, %v4569
      %v4571 = vpop.f32.mrb[0].mxu0
      %4572 = vmatprep.mubr.f32.mxu0 0.0
      %4573 = vmatmul.mubr.f32.gmra.mrb[0].mxu0 %v4443
      %v4574 = vpop.f32.mrb[0].mxu0
      %v4575 = vadd.f32 0.0, %v4574
      %v4576 = vpop.f32.mrb[0].mxu0
      %4577 = vmatprep.mubr.f32.mxu0 0.0
      %4578 = vmatmul.mubr.f32.gmra.mrb[0].mxu0 %v4446
      %v4579 = vpop.f32.mrb[0].mxu0
      %v4580 = vadd.f32 0.0, %v4579
      %v4581 = vpop.f32.mrb[0].mxu0
      %4582 = vmatprep.mubr.f32.mxu0 0.0
      %4583 = vmatmul.mubr.f32.gmra.mrb[0].mxu0 %v4449
      %v4584 = vpop.f32.mrb[0].mxu0
      %v4585 = vadd.f32 0.0, %v4584
      %v4586 = vpop.f32.mrb[0].mxu0
      %4587 = vmatprep.mubr.f32.mxu0 0.0
      %4588 = vmatmul.mubr.f32.gmra.mrb[0].mxu0 %v4452
      %v4589 = vpop.f32.mrb[0].mxu0
      %v4590 = vadd.f32 0.0, %v4589
      %v4591 = vpop.f32.mrb[0].mxu0
      %4592 = vmatprep.mubr.f32.mxu0 0.0
      %4593 = vmatmul.mubr.f32.gmra.mrb[0].mxu0 %v4455
      %v4594 = vpop.f32.mrb[0].mxu0
      %v4595 = vadd.f32 0.0, %v4594
      %v4596 = vpop.f32.mrb[0].mxu0
      %4597 = vmatprep.mubr.f32.mxu0 0.0
      %4598 = vmatmul.mubr.f32.gmra.mrb[0].mxu0 %v4458
      %v4599 = vpop.f32.mrb[0].mxu0
      %v4600 = vadd.f32 0.0, %v4599
      %v4601 = vpop.f32.mrb[0].mxu0
      %4602 = vmatprep.mubr.f32.mxu0 0.0
      %4603 = vmatmul.mubr.f32.gmra.mrb[0].mxu0 %v4461
      %v4604 = vpop.f32.mrb[0].mxu0
      %v4605 = vadd.f32 0.0, %v4604
      %v4606 = vpop.f32.mrb[0].mxu0
      %4607 = vmatprep.mubr.f32.mxu0 0.0
      %4608 = vmatmul.mubr.f32.gmra.mrb[0].mxu0 %v4464
      %v4609 = vpop.f32.mrb[0].mxu0
      %v4610 = vadd.f32 0.0, %v4609
      %v4611 = vpop.f32.mrb[0].mxu0
      %4612 = vmatprep.mubr.f32.mxu0 0.0
      %4613 = vmatmul.mubr.f32.gmra.mrb[0].mxu0 %v4467
      %v4614 = vpop.f32.mrb[0].mxu0
      %v4615 = vadd.f32 0.0, %v4614
      %v4616 = vpop.f32.mrb[0].mxu0
      %4617 = vmatprep.mubr.f32.mxu0 0.0
      %4618 = vmatmul.mubr.f32.gmra.mrb[0].mxu0 %v4470
      %v4619 = vpop.f32.mrb[0].mxu0
      %v4620 = vadd.f32 0.0, %v4619
      %v4621 = vpop.f32.mrb[0].mxu0
      %4622 = vmatprep.mubr.f32.mxu0 0.0
      %4623 = vmatmul.mubr.f32.gmra.mrb[0].mxu0 %v4473
      %v4624 = vpop.f32.mrb[0].mxu0
      %v4625 = vadd.f32 0.0, %v4624
      %v4626 = vpop.f32.mrb[0].mxu0
      %4627 = vmatprep.mubr.f32.mxu0 0.0
      %4628 = vmatmul.mubr.f32.gmra.mrb[0].mxu0 %v4476
      %v4629 = vpop.f32.mrb[0].mxu0
      %v4630 = vadd.f32 0.0, %v4629
      %v4631 = vpop.f32.mrb[0].mxu0
      %4632 = vdwg.mxu0
      %v4633 = vadd.f32 %v4387, %v4545
      %v4634 = vadd.f32 %v4388, %v4550
      %v4635 = vadd.f32 %v4389, %v4555
      %v4636 = vadd.f32 %v4390, %v4560
      %v4637 = vadd.f32 %v4391, %v4565
      %v4638 = vadd.f32 %v4392, %v4570
      %v4639 = vadd.f32 %v4393, %v4575
      %v4640 = vadd.f32 %v4394, %v4580
      %v4641 = vadd.f32 %v4395, %v4585
      %v4642 = vadd.f32 %v4396, %v4590
      %v4643 = vadd.f32 %v4397, %v4595
      %v4644 = vadd.f32 %v4398, %v4600
      %v4645 = vadd.f32 %v4399, %v4605
      %v4646 = vadd.f32 %v4400, %v4610
      %v4647 = vadd.f32 %v4401, %v4615
      %v4648 = vadd.f32 %v4402, %v4620
      %v4649 = vadd.f32 %v4403, %v4625
      %v4650 = vadd.f32 %v4404, %v4630
      %v4651 = vld [vmem:[#allocation2 + $0xa4] sm:$0xff]
      %v4652 = vld [vmem:[#allocation2 + $0xac] sm:$0xff]
      %v4653 = vld [vmem:[#allocation2 + $0xb4] sm:$0xff]
      %v4654 = vld [vmem:[#allocation2 + $0xbc] sm:$0xff]
      %v4655 = vld [vmem:[#allocation2 + $0xc4] sm:$0xff]
      %v4656 = vld [vmem:[#allocation2 + $0xcc] sm:$0xff]
      %v4657 = vld [vmem:[#allocation2 + $0xd4] sm:$0xff]
      %v4658 = vld [vmem:[#allocation2 + $0xdc] sm:$0xff]
      %v4659 = vld [vmem:[#allocation2 + $0xe4] sm:$0xff]
      %v4660 = vld [vmem:[#allocation2 + $0xec] sm:$0xff]
      %v4661 = vld [vmem:[#allocation2 + $0xf4] sm:$0xff]
      %v4662 = vld [vmem:[#allocation2 + $0xfc] sm:$0xff]
      %v4663 = vld [vmem:[#allocation2 + $0x104] sm:$0xff]
      %v4664 = vld [vmem:[#allocation2 + $0x10c] sm:$0xff]
      %v4665 = vld [vmem:[#allocation2 + $0x114] sm:$0xff]
      %v4666 = vld [vmem:[#allocation2 + $0x11c] sm:$0xff]
      %v4667 = vld [vmem:[#allocation2 + $0x124] sm:$0xff]
      %v4668 = vld [vmem:[#allocation2 + $0x12c] sm:$0xff]
      %v4669 = vld [vmem:[%s2433] sm:$0xff]
      %v4671 = vsel %vm225, %v4651, 0
      %v4674 = vsel %vm225, %v4652, 0
      %v4677 = vsel %vm225, %v4653, 0
      %v4680 = vsel %vm225, %v4654, 0
      %v4683 = vsel %vm225, %v4655, 0
      %v4686 = vsel %vm225, %v4656, 0
      %v4689 = vsel %vm225, %v4657, 0
      %v4692 = vsel %vm225, %v4658, 0
      %v4695 = vsel %vm225, %v4659, 0
      %v4698 = vsel %vm225, %v4660, 0
      %v4701 = vsel %vm225, %v4661, 0
      %v4704 = vsel %vm225, %v4662, 0
      %v4707 = vsel %vm225, %v4663, 0
      %v4710 = vsel %vm225, %v4664, 0
      %v4713 = vsel %vm225, %v4665, 0
      %v4716 = vsel %vm225, %v4666, 0
      %v4719 = vsel %vm225, %v4667, 0
      %v4722 = vsel %vm225, %v4668, 0
      %4724 = vmatprep.subr.mxu0 0.0
      %4725 = vmatpush1.msra.mxu0 %v4669
      %4726 = vmatprep.subr.mxu0 0.0
      %4727 = vmatpush1.msra.mxu0 0.0
      %4728 = vmatprep.subr.mxu0 0.0
      %4729 = vmatpush1.msra.mxu0 0.0
      %4730 = vmatprep.subr.mxu0 0.0
      %4731 = vmatpush1.msra.mxu0 0.0
      %4732 = vmatprep.subr.mxu0 0.0
      %4733 = vmatpush1.msra.mxu0 0.0
      %4734 = vmatprep.subr.mxu0 0.0
      %4735 = vmatpush1.msra.mxu0 0.0
      %4736 = vmatprep.subr.mxu0 0.0
      %4737 = vmatpush1.msra.mxu0 0.0
      %4738 = vmatprep.subr.mxu0 0.0
      %4739 = vmatpush1.msra.mxu0 0.0
      %4740 = vmatprep.subr.mxu0 0.0
      %4741 = vmatpush1.msra.mxu0 0.0
      %4742 = vmatprep.subr.mxu0 0.0
      %4743 = vmatpush1.msra.mxu0 0.0
      %4744 = vmatprep.subr.mxu0 0.0
      %4745 = vmatpush1.msra.mxu0 0.0
      %4746 = vmatprep.subr.mxu0 0.0
      %4747 = vmatpush1.msra.mxu0 0.0
      %4748 = vmatprep.subr.mxu0 0.0
      %4749 = vmatpush1.msra.mxu0 0.0
      %4750 = vmatprep.subr.mxu0 0.0
      %4751 = vmatpush1.msra.mxu0 0.0
      %4752 = vmatprep.subr.mxu0 0.0
      %4753 = vmatpush1.msra.mxu0 0.0
      %4754 = vmatprep.subr.mxu0 0.0
      %4755 = vmatpush1.msra.mxu0 0.0
      %4756 = vmatprep.subr.mxu0 0.0
      %4757 = vmatpush1.msra.mxu0 0.0
      %4758 = vmatprep.subr.mxu0 0.0
      %4759 = vmatpush1.msra.mxu0 0.0
      %4760 = vmatprep.subr.mxu0 0.0
      %4761 = vmatpush1.msra.mxu0 0.0
      %4762 = vmatprep.subr.mxu0 0.0
      %4763 = vmatpush1.msra.mxu0 0.0
      %4764 = vmatprep.subr.mxu0 0.0
      %4765 = vmatpush1.msra.mxu0 0.0
      %4766 = vmatprep.subr.mxu0 0.0
      %4767 = vmatpush1.msra.mxu0 0.0
      %4768 = vmatprep.subr.mxu0 0.0
      %4769 = vmatpush1.msra.mxu0 0.0
      %4770 = vmatprep.subr.mxu0 0.0
      %4771 = vmatpush1.msra.mxu0 0.0
      %4772 = vmatprep.subr.mxu0 0.0
      %4773 = vmatpush1.msra.mxu0 0.0
      %4774 = vmatprep.subr.mxu0 0.0
      %4775 = vmatpush1.msra.mxu0 0.0
      %4776 = vmatprep.subr.mxu0 0.0
      %4777 = vmatpush1.msra.mxu0 0.0
      %4778 = vmatprep.subr.mxu0 0.0
      %4779 = vmatpush1.msra.mxu0 0.0
      %4780 = vmatprep.subr.mxu0 0.0
      %4781 = vmatpush1.msra.mxu0 0.0
      %4782 = vmatprep.subr.mxu0 0.0
      %4783 = vmatpush1.msra.mxu0 0.0
      %4784 = vmatprep.subr.mxu0 0.0
      %4785 = vmatpush1.msra.mxu0 0.0
      %4786 = vmatprep.subr.mxu0 0.0
      %4787 = vmatpush1.msra.mxu0 0.0
      %4788 = vmatprep.mubr.f32.mxu0 0.0
      %4789 = vmatmul.mubr.f32.gmra.mrb[0].mxu0 %v4671
      %v4790 = vpop.f32.mrb[0].mxu0
      %v4791 = vadd.f32 0.0, %v4790
      %v4792 = vpop.f32.mrb[0].mxu0
      %4793 = vmatprep.mubr.f32.mxu0 0.0
      %4794 = vmatmul.mubr.f32.gmra.mrb[0].mxu0 %v4674
      %v4795 = vpop.f32.mrb[0].mxu0
      %v4796 = vadd.f32 0.0, %v4795
      %v4797 = vpop.f32.mrb[0].mxu0
      %4798 = vmatprep.mubr.f32.mxu0 0.0
      %4799 = vmatmul.mubr.f32.gmra.mrb[0].mxu0 %v4677
      %v4800 = vpop.f32.mrb[0].mxu0
      %v4801 = vadd.f32 0.0, %v4800
      %v4802 = vpop.f32.mrb[0].mxu0
      %4803 = vmatprep.mubr.f32.mxu0 0.0
      %4804 = vmatmul.mubr.f32.gmra.mrb[0].mxu0 %v4680
      %v4805 = vpop.f32.mrb[0].mxu0
      %v4806 = vadd.f32 0.0, %v4805
      %v4807 = vpop.f32.mrb[0].mxu0
      %4808 = vmatprep.mubr.f32.mxu0 0.0
      %4809 = vmatmul.mubr.f32.gmra.mrb[0].mxu0 %v4683
      %v4810 = vpop.f32.mrb[0].mxu0
      %v4811 = vadd.f32 0.0, %v4810
      %v4812 = vpop.f32.mrb[0].mxu0
      %4813 = vmatprep.mubr.f32.mxu0 0.0
      %4814 = vmatmul.mubr.f32.gmra.mrb[0].mxu0 %v4686
      %v4815 = vpop.f32.mrb[0].mxu0
      %v4816 = vadd.f32 0.0, %v4815
      %v4817 = vpop.f32.mrb[0].mxu0
      %4818 = vmatprep.mubr.f32.mxu0 0.0
      %4819 = vmatmul.mubr.f32.gmra.mrb[0].mxu0 %v4689
      %v4820 = vpop.f32.mrb[0].mxu0
      %v4821 = vadd.f32 0.0, %v4820
      %v4822 = vpop.f32.mrb[0].mxu0
      %4823 = vmatprep.mubr.f32.mxu0 0.0
      %4824 = vmatmul.mubr.f32.gmra.mrb[0].mxu0 %v4692
      %v4825 = vpop.f32.mrb[0].mxu0
      %v4826 = vadd.f32 0.0, %v4825
      %v4827 = vpop.f32.mrb[0].mxu0
      %4828 = vmatprep.mubr.f32.mxu0 0.0
      %4829 = vmatmul.mubr.f32.gmra.mrb[0].mxu0 %v4695
      %v4830 = vpop.f32.mrb[0].mxu0
      %v4831 = vadd.f32 0.0, %v4830
      %v4832 = vpop.f32.mrb[0].mxu0
      %4833 = vmatprep.mubr.f32.mxu0 0.0
      %4834 = vmatmul.mubr.f32.gmra.mrb[0].mxu0 %v4698
      %v4835 = vpop.f32.mrb[0].mxu0
      %v4836 = vadd.f32 0.0, %v4835
      %v4837 = vpop.f32.mrb[0].mxu0
      %4838 = vmatprep.mubr.f32.mxu0 0.0
      %4839 = vmatmul.mubr.f32.gmra.mrb[0].mxu0 %v4701
      %v4840 = vpop.f32.mrb[0].mxu0
      %v4841 = vadd.f32 0.0, %v4840
      %v4842 = vpop.f32.mrb[0].mxu0
      %4843 = vmatprep.mubr.f32.mxu0 0.0
      %4844 = vmatmul.mubr.f32.gmra.mrb[0].mxu0 %v4704
      %v4845 = vpop.f32.mrb[0].mxu0
      %v4846 = vadd.f32 0.0, %v4845
      %v4847 = vpop.f32.mrb[0].mxu0
      %4848 = vmatprep.mubr.f32.mxu0 0.0
      %4849 = vmatmul.mubr.f32.gmra.mrb[0].mxu0 %v4707
      %v4850 = vpop.f32.mrb[0].mxu0
      %v4851 = vadd.f32 0.0, %v4850
      %v4852 = vpop.f32.mrb[0].mxu0
      %4853 = vmatprep.mubr.f32.mxu0 0.0
      %4854 = vmatmul.mubr.f32.gmra.mrb[0].mxu0 %v4710
      %v4855 = vpop.f32.mrb[0].mxu0
      %v4856 = vadd.f32 0.0, %v4855
      %v4857 = vpop.f32.mrb[0].mxu0
      %4858 = vmatprep.mubr.f32.mxu0 0.0
      %4859 = vmatmul.mubr.f32.gmra.mrb[0].mxu0 %v4713
      %v4860 = vpop.f32.mrb[0].mxu0
      %v4861 = vadd.f32 0.0, %v4860
      %v4862 = vpop.f32.mrb[0].mxu0
      %4863 = vmatprep.mubr.f32.mxu0 0.0
      %4864 = vmatmul.mubr.f32.gmra.mrb[0].mxu0 %v4716
      %v4865 = vpop.f32.mrb[0].mxu0
      %v4866 = vadd.f32 0.0, %v4865
      %v4867 = vpop.f32.mrb[0].mxu0
      %4868 = vmatprep.mubr.f32.mxu0 0.0
      %4869 = vmatmul.mubr.f32.gmra.mrb[0].mxu0 %v4719
      %v4870 = vpop.f32.mrb[0].mxu0
      %v4871 = vadd.f32 0.0, %v4870
      %v4872 = vpop.f32.mrb[0].mxu0
      %4873 = vmatprep.mubr.f32.mxu0 0.0
      %4874 = vmatmul.mubr.f32.gmra.mrb[0].mxu0 %v4722
      %v4875 = vpop.f32.mrb[0].mxu0
      %v4876 = vadd.f32 0.0, %v4875
      %v4877 = vpop.f32.mrb[0].mxu0
      %4878 = vdwg.mxu0
      %v4879 = vadd.f32 %v4633, %v4791
      %v4880 = vadd.f32 %v4634, %v4796
      %v4881 = vadd.f32 %v4635, %v4801
      %v4882 = vadd.f32 %v4636, %v4806
      %v4883 = vadd.f32 %v4637, %v4811
      %v4884 = vadd.f32 %v4638, %v4816
      %v4885 = vadd.f32 %v4639, %v4821
      %v4886 = vadd.f32 %v4640, %v4826
      %v4887 = vadd.f32 %v4641, %v4831
      %v4888 = vadd.f32 %v4642, %v4836
      %v4889 = vadd.f32 %v4643, %v4841
      %v4890 = vadd.f32 %v4644, %v4846
      %v4891 = vadd.f32 %v4645, %v4851
      %v4892 = vadd.f32 %v4646, %v4856
      %v4893 = vadd.f32 %v4647, %v4861
      %v4894 = vadd.f32 %v4648, %v4866
      %v4895 = vadd.f32 %v4649, %v4871
      %v4896 = vadd.f32 %v4650, %v4876
      %v4897 = vld [vmem:[#allocation2 + $0xb4] sm:$0xff]
      %v4898 = vld [vmem:[#allocation2 + $0xbc] sm:$0xff]
      %v4899 = vld [vmem:[#allocation2 + $0xc4] sm:$0xff]
      %v4900 = vld [vmem:[#allocation2 + $0xcc] sm:$0xff]
      %v4901 = vld [vmem:[#allocation2 + $0xd4] sm:$0xff]
      %v4902 = vld [vmem:[#allocation2 + $0xdc] sm:$0xff]
      %v4903 = vld [vmem:[#allocation2 + $0xe4] sm:$0xff]
      %v4904 = vld [vmem:[#allocation2 + $0xec] sm:$0xff]
      %v4905 = vld [vmem:[#allocation2 + $0xf4] sm:$0xff]
      %v4906 = vld [vmem:[#allocation2 + $0xfc] sm:$0xff]
      %v4907 = vld [vmem:[#allocation2 + $0x104] sm:$0xff]
      %v4908 = vld [vmem:[#allocation2 + $0x10c] sm:$0xff]
      %v4909 = vld [vmem:[#allocation2 + $0x114] sm:$0xff]
      %v4910 = vld [vmem:[#allocation2 + $0x11c] sm:$0xff]
      %v4911 = vld [vmem:[#allocation2 + $0x124] sm:$0xff]
      %v4912 = vld [vmem:[#allocation2 + $0x12c] sm:$0xff]
      %v4913 = vld [vmem:[#allocation2 + $0x134] sm:$0xff]
      %v4914 = vld [vmem:[#allocation2 + $0x13c] sm:$0xff]
      %v4915 = vld [vmem:[%s2680] sm:$0xff]
      %v4917 = vsel %vm225, %v4897, 0
      %v4920 = vsel %vm225, %v4898, 0
      %v4923 = vsel %vm225, %v4899, 0
      %v4926 = vsel %vm225, %v4900, 0
      %v4929 = vsel %vm225, %v4901, 0
      %v4932 = vsel %vm225, %v4902, 0
      %v4935 = vsel %vm225, %v4903, 0
      %v4938 = vsel %vm225, %v4904, 0
      %v4941 = vsel %vm225, %v4905, 0
      %v4944 = vsel %vm225, %v4906, 0
      %v4947 = vsel %vm225, %v4907, 0
      %v4950 = vsel %vm225, %v4908, 0
      %v4953 = vsel %vm225, %v4909, 0
      %v4956 = vsel %vm225, %v4910, 0
      %v4959 = vsel %vm225, %v4911, 0
      %v4962 = vsel %vm225, %v4912, 0
      %v4965 = vsel %vm225, %v4913, 0
      %v4968 = vsel %vm225, %v4914, 0
      %4970 = vmatprep.subr.mxu0 0.0
      %4971 = vmatpush1.msra.mxu0 %v4915
      %4972 = vmatprep.subr.mxu0 0.0
      %4973 = vmatpush1.msra.mxu0 0.0
      %4974 = vmatprep.subr.mxu0 0.0
      %4975 = vmatpush1.msra.mxu0 0.0
      %4976 = vmatprep.subr.mxu0 0.0
      %4977 = vmatpush1.msra.mxu0 0.0
      %4978 = vmatprep.subr.mxu0 0.0
      %4979 = vmatpush1.msra.mxu0 0.0
      %4980 = vmatprep.subr.mxu0 0.0
      %4981 = vmatpush1.msra.mxu0 0.0
      %4982 = vmatprep.subr.mxu0 0.0
      %4983 = vmatpush1.msra.mxu0 0.0
      %4984 = vmatprep.subr.mxu0 0.0
      %4985 = vmatpush1.msra.mxu0 0.0
      %4986 = vmatprep.subr.mxu0 0.0
      %4987 = vmatpush1.msra.mxu0 0.0
      %4988 = vmatprep.subr.mxu0 0.0
      %4989 = vmatpush1.msra.mxu0 0.0
      %4990 = vmatprep.subr.mxu0 0.0
      %4991 = vmatpush1.msra.mxu0 0.0
      %4992 = vmatprep.subr.mxu0 0.0
      %4993 = vmatpush1.msra.mxu0 0.0
      %4994 = vmatprep.subr.mxu0 0.0
      %4995 = vmatpush1.msra.mxu0 0.0
      %4996 = vmatprep.subr.mxu0 0.0
      %4997 = vmatpush1.msra.mxu0 0.0
      %4998 = vmatprep.subr.mxu0 0.0
      %4999 = vmatpush1.msra.mxu0 0.0
      %5000 = vmatprep.subr.mxu0 0.0
      %5001 = vmatpush1.msra.mxu0 0.0
      %5002 = vmatprep.subr.mxu0 0.0
      %5003 = vmatpush1.msra.mxu0 0.0
      %5004 = vmatprep.subr.mxu0 0.0
      %5005 = vmatpush1.msra.mxu0 0.0
      %5006 = vmatprep.subr.mxu0 0.0
      %5007 = vmatpush1.msra.mxu0 0.0
      %5008 = vmatprep.subr.mxu0 0.0
      %5009 = vmatpush1.msra.mxu0 0.0
      %5010 = vmatprep.subr.mxu0 0.0
      %5011 = vmatpush1.msra.mxu0 0.0
      %5012 = vmatprep.subr.mxu0 0.0
      %5013 = vmatpush1.msra.mxu0 0.0
      %5014 = vmatprep.subr.mxu0 0.0
      %5015 = vmatpush1.msra.mxu0 0.0
      %5016 = vmatprep.subr.mxu0 0.0
      %5017 = vmatpush1.msra.mxu0 0.0
      %5018 = vmatprep.subr.mxu0 0.0
      %5019 = vmatpush1.msra.mxu0 0.0
      %5020 = vmatprep.subr.mxu0 0.0
      %5021 = vmatpush1.msra.mxu0 0.0
      %5022 = vmatprep.subr.mxu0 0.0
      %5023 = vmatpush1.msra.mxu0 0.0
      %5024 = vmatprep.subr.mxu0 0.0
      %5025 = vmatpush1.msra.mxu0 0.0
      %5026 = vmatprep.subr.mxu0 0.0
      %5027 = vmatpush1.msra.mxu0 0.0
      %5028 = vmatprep.subr.mxu0 0.0
      %5029 = vmatpush1.msra.mxu0 0.0
      %5030 = vmatprep.subr.mxu0 0.0
      %5031 = vmatpush1.msra.mxu0 0.0
      %5032 = vmatprep.subr.mxu0 0.0
      %5033 = vmatpush1.msra.mxu0 0.0
      %5034 = vmatprep.mubr.f32.mxu0 0.0
      %5035 = vmatmul.mubr.f32.gmra.mrb[0].mxu0 %v4917
      %v5036 = vpop.f32.mrb[0].mxu0
      %v5037 = vadd.f32 0.0, %v5036
      %v5038 = vpop.f32.mrb[0].mxu0
      %5039 = vmatprep.mubr.f32.mxu0 0.0
      %5040 = vmatmul.mubr.f32.gmra.mrb[0].mxu0 %v4920
      %v5041 = vpop.f32.mrb[0].mxu0
      %v5042 = vadd.f32 0.0, %v5041
      %v5043 = vpop.f32.mrb[0].mxu0
      %5044 = vmatprep.mubr.f32.mxu0 0.0
      %5045 = vmatmul.mubr.f32.gmra.mrb[0].mxu0 %v4923
      %v5046 = vpop.f32.mrb[0].mxu0
      %v5047 = vadd.f32 0.0, %v5046
      %v5048 = vpop.f32.mrb[0].mxu0
      %5049 = vmatprep.mubr.f32.mxu0 0.0
      %5050 = vmatmul.mubr.f32.gmra.mrb[0].mxu0 %v4926
      %v5051 = vpop.f32.mrb[0].mxu0
      %v5052 = vadd.f32 0.0, %v5051
      %v5053 = vpop.f32.mrb[0].mxu0
      %5054 = vmatprep.mubr.f32.mxu0 0.0
      %5055 = vmatmul.mubr.f32.gmra.mrb[0].mxu0 %v4929
      %v5056 = vpop.f32.mrb[0].mxu0
      %v5057 = vadd.f32 0.0, %v5056
      %v5058 = vpop.f32.mrb[0].mxu0
      %5059 = vmatprep.mubr.f32.mxu0 0.0
      %5060 = vmatmul.mubr.f32.gmra.mrb[0].mxu0 %v4932
      %v5061 = vpop.f32.mrb[0].mxu0
      %v5062 = vadd.f32 0.0, %v5061
      %v5063 = vpop.f32.mrb[0].mxu0
      %5064 = vmatprep.mubr.f32.mxu0 0.0
      %5065 = vmatmul.mubr.f32.gmra.mrb[0].mxu0 %v4935
      %v5066 = vpop.f32.mrb[0].mxu0
      %v5067 = vadd.f32 0.0, %v5066
      %v5068 = vpop.f32.mrb[0].mxu0
      %5069 = vmatprep.mubr.f32.mxu0 0.0
      %5070 = vmatmul.mubr.f32.gmra.mrb[0].mxu0 %v4938
      %v5071 = vpop.f32.mrb[0].mxu0
      %v5072 = vadd.f32 0.0, %v5071
      %v5073 = vpop.f32.mrb[0].mxu0
      %5074 = vmatprep.mubr.f32.mxu0 0.0
      %5075 = vmatmul.mubr.f32.gmra.mrb[0].mxu0 %v4941
      %v5076 = vpop.f32.mrb[0].mxu0
      %v5077 = vadd.f32 0.0, %v5076
      %v5078 = vpop.f32.mrb[0].mxu0
      %5079 = vmatprep.mubr.f32.mxu0 0.0
      %5080 = vmatmul.mubr.f32.gmra.mrb[0].mxu0 %v4944
      %v5081 = vpop.f32.mrb[0].mxu0
      %v5082 = vadd.f32 0.0, %v5081
      %v5083 = vpop.f32.mrb[0].mxu0
      %5084 = vmatprep.mubr.f32.mxu0 0.0
      %5085 = vmatmul.mubr.f32.gmra.mrb[0].mxu0 %v4947
      %v5086 = vpop.f32.mrb[0].mxu0
      %v5087 = vadd.f32 0.0, %v5086
      %v5088 = vpop.f32.mrb[0].mxu0
      %5089 = vmatprep.mubr.f32.mxu0 0.0
      %5090 = vmatmul.mubr.f32.gmra.mrb[0].mxu0 %v4950
      %v5091 = vpop.f32.mrb[0].mxu0
      %v5092 = vadd.f32 0.0, %v5091
      %v5093 = vpop.f32.mrb[0].mxu0
      %5094 = vmatprep.mubr.f32.mxu0 0.0
      %5095 = vmatmul.mubr.f32.gmra.mrb[0].mxu0 %v4953
      %v5096 = vpop.f32.mrb[0].mxu0
      %v5097 = vadd.f32 0.0, %v5096
      %v5098 = vpop.f32.mrb[0].mxu0
      %5099 = vmatprep.mubr.f32.mxu0 0.0
      %5100 = vmatmul.mubr.f32.gmra.mrb[0].mxu0 %v4956
      %v5101 = vpop.f32.mrb[0].mxu0
      %v5102 = vadd.f32 0.0, %v5101
      %v5103 = vpop.f32.mrb[0].mxu0
      %5104 = vmatprep.mubr.f32.mxu0 0.0
      %5105 = vmatmul.mubr.f32.gmra.mrb[0].mxu0 %v4959
      %v5106 = vpop.f32.mrb[0].mxu0
      %v5107 = vadd.f32 0.0, %v5106
      %v5108 = vpop.f32.mrb[0].mxu0
      %5109 = vmatprep.mubr.f32.mxu0 0.0
      %5110 = vmatmul.mubr.f32.gmra.mrb[0].mxu0 %v4962
      %v5111 = vpop.f32.mrb[0].mxu0
      %v5112 = vadd.f32 0.0, %v5111
      %v5113 = vpop.f32.mrb[0].mxu0
      %5114 = vmatprep.mubr.f32.mxu0 0.0
      %5115 = vmatmul.mubr.f32.gmra.mrb[0].mxu0 %v4965
      %v5116 = vpop.f32.mrb[0].mxu0
      %v5117 = vadd.f32 0.0, %v5116
      %v5118 = vpop.f32.mrb[0].mxu0
      %5119 = vmatprep.mubr.f32.mxu0 0.0
      %5120 = vmatmul.mubr.f32.gmra.mrb[0].mxu0 %v4968
      %v5121 = vpop.f32.mrb[0].mxu0
      %v5122 = vadd.f32 0.0, %v5121
      %v5123 = vpop.f32.mrb[0].mxu0
      %5124 = vdwg.mxu0
      %v5125 = vadd.f32 %v4879, %v5037
      %v5126 = vadd.f32 %v4880, %v5042
      %v5127 = vadd.f32 %v4881, %v5047
      %v5128 = vadd.f32 %v4882, %v5052
      %v5129 = vadd.f32 %v4883, %v5057
      %v5130 = vadd.f32 %v4884, %v5062
      %v5131 = vadd.f32 %v4885, %v5067
      %v5132 = vadd.f32 %v4886, %v5072
      %v5133 = vadd.f32 %v4887, %v5077
      %v5134 = vadd.f32 %v4888, %v5082
      %v5135 = vadd.f32 %v4889, %v5087
      %v5136 = vadd.f32 %v4890, %v5092
      %v5137 = vadd.f32 %v4891, %v5097
      %v5138 = vadd.f32 %v4892, %v5102
      %v5139 = vadd.f32 %v4893, %v5107
      %v5140 = vadd.f32 %v4894, %v5112
      %v5141 = vadd.f32 %v4895, %v5117
      %v5142 = vadd.f32 %v4896, %v5122
      %v5143 = vld [vmem:[#allocation2 + $0xb5] sm:$0xff]
      %v5144 = vld [vmem:[#allocation2 + $0xbd] sm:$0xff]
      %v5145 = vld [vmem:[#allocation2 + $0xc5] sm:$0xff]
      %v5146 = vld [vmem:[#allocation2 + $0xcd] sm:$0xff]
      %v5147 = vld [vmem:[#allocation2 + $0xd5] sm:$0xff]
      %v5148 = vld [vmem:[#allocation2 + $0xdd] sm:$0xff]
      %v5149 = vld [vmem:[#allocation2 + $0xe5] sm:$0xff]
      %v5150 = vld [vmem:[#allocation2 + $0xed] sm:$0xff]
      %v5151 = vld [vmem:[#allocation2 + $0xf5] sm:$0xff]
      %v5152 = vld [vmem:[#allocation2 + $0xfd] sm:$0xff]
      %v5153 = vld [vmem:[#allocation2 + $0x105] sm:$0xff]
      %v5154 = vld [vmem:[#allocation2 + $0x10d] sm:$0xff]
      %v5155 = vld [vmem:[#allocation2 + $0x115] sm:$0xff]
      %v5156 = vld [vmem:[#allocation2 + $0x11d] sm:$0xff]
      %v5157 = vld [vmem:[#allocation2 + $0x125] sm:$0xff]
      %v5158 = vld [vmem:[#allocation2 + $0x12d] sm:$0xff]
      %v5159 = vld [vmem:[#allocation2 + $0x135] sm:$0xff]
      %v5160 = vld [vmem:[#allocation2 + $0x13d] sm:$0xff]
      %v5161 = vld [vmem:[%s2927] sm:$0xff]
      %v5163 = vsel %vm225, %v5143, 0
      %v5166 = vsel %vm225, %v5144, 0
      %v5169 = vsel %vm225, %v5145, 0
      %v5172 = vsel %vm225, %v5146, 0
      %v5175 = vsel %vm225, %v5147, 0
      %v5178 = vsel %vm225, %v5148, 0
      %v5181 = vsel %vm225, %v5149, 0
      %v5184 = vsel %vm225, %v5150, 0
      %v5187 = vsel %vm225, %v5151, 0
      %v5190 = vsel %vm225, %v5152, 0
      %v5193 = vsel %vm225, %v5153, 0
      %v5196 = vsel %vm225, %v5154, 0
      %v5199 = vsel %vm225, %v5155, 0
      %v5202 = vsel %vm225, %v5156, 0
      %v5205 = vsel %vm225, %v5157, 0
      %v5208 = vsel %vm225, %v5158, 0
      %v5211 = vsel %vm225, %v5159, 0
      %v5214 = vsel %vm225, %v5160, 0
      %5216 = vmatprep.subr.mxu0 0.0
      %5217 = vmatpush1.msra.mxu0 %v5161
      %5218 = vmatprep.subr.mxu0 0.0
      %5219 = vmatpush1.msra.mxu0 0.0
      %5220 = vmatprep.subr.mxu0 0.0
      %5221 = vmatpush1.msra.mxu0 0.0
      %5222 = vmatprep.subr.mxu0 0.0
      %5223 = vmatpush1.msra.mxu0 0.0
      %5224 = vmatprep.subr.mxu0 0.0
      %5225 = vmatpush1.msra.mxu0 0.0
      %5226 = vmatprep.subr.mxu0 0.0
      %5227 = vmatpush1.msra.mxu0 0.0
      %5228 = vmatprep.subr.mxu0 0.0
      %5229 = vmatpush1.msra.mxu0 0.0
      %5230 = vmatprep.subr.mxu0 0.0
      %5231 = vmatpush1.msra.mxu0 0.0
      %5232 = vmatprep.subr.mxu0 0.0
      %5233 = vmatpush1.msra.mxu0 0.0
      %5234 = vmatprep.subr.mxu0 0.0
      %5235 = vmatpush1.msra.mxu0 0.0
      %5236 = vmatprep.subr.mxu0 0.0
      %5237 = vmatpush1.msra.mxu0 0.0
      %5238 = vmatprep.subr.mxu0 0.0
      %5239 = vmatpush1.msra.mxu0 0.0
      %5240 = vmatprep.subr.mxu0 0.0
      %5241 = vmatpush1.msra.mxu0 0.0
      %5242 = vmatprep.subr.mxu0 0.0
      %5243 = vmatpush1.msra.mxu0 0.0
      %5244 = vmatprep.subr.mxu0 0.0
      %5245 = vmatpush1.msra.mxu0 0.0
      %5246 = vmatprep.subr.mxu0 0.0
      %5247 = vmatpush1.msra.mxu0 0.0
      %5248 = vmatprep.subr.mxu0 0.0
      %5249 = vmatpush1.msra.mxu0 0.0
      %5250 = vmatprep.subr.mxu0 0.0
      %5251 = vmatpush1.msra.mxu0 0.0
      %5252 = vmatprep.subr.mxu0 0.0
      %5253 = vmatpush1.msra.mxu0 0.0
      %5254 = vmatprep.subr.mxu0 0.0
      %5255 = vmatpush1.msra.mxu0 0.0
      %5256 = vmatprep.subr.mxu0 0.0
      %5257 = vmatpush1.msra.mxu0 0.0
      %5258 = vmatprep.subr.mxu0 0.0
      %5259 = vmatpush1.msra.mxu0 0.0
      %5260 = vmatprep.subr.mxu0 0.0
      %5261 = vmatpush1.msra.mxu0 0.0
      %5262 = vmatprep.subr.mxu0 0.0
      %5263 = vmatpush1.msra.mxu0 0.0
      %5264 = vmatprep.subr.mxu0 0.0
      %5265 = vmatpush1.msra.mxu0 0.0
      %5266 = vmatprep.subr.mxu0 0.0
      %5267 = vmatpush1.msra.mxu0 0.0
      %5268 = vmatprep.subr.mxu0 0.0
      %5269 = vmatpush1.msra.mxu0 0.0
      %5270 = vmatprep.subr.mxu0 0.0
      %5271 = vmatpush1.msra.mxu0 0.0
      %5272 = vmatprep.subr.mxu0 0.0
      %5273 = vmatpush1.msra.mxu0 0.0
      %5274 = vmatprep.subr.mxu0 0.0
      %5275 = vmatpush1.msra.mxu0 0.0
      %5276 = vmatprep.subr.mxu0 0.0
      %5277 = vmatpush1.msra.mxu0 0.0
      %5278 = vmatprep.subr.mxu0 0.0
      %5279 = vmatpush1.msra.mxu0 0.0
      %5280 = vmatprep.mubr.f32.mxu0 0.0
      %5281 = vmatmul.mubr.f32.gmra.mrb[0].mxu0 %v5163
      %v5282 = vpop.f32.mrb[0].mxu0
      %v5283 = vadd.f32 0.0, %v5282
      %v5284 = vpop.f32.mrb[0].mxu0
      %5285 = vmatprep.mubr.f32.mxu0 0.0
      %5286 = vmatmul.mubr.f32.gmra.mrb[0].mxu0 %v5166
      %v5287 = vpop.f32.mrb[0].mxu0
      %v5288 = vadd.f32 0.0, %v5287
      %v5289 = vpop.f32.mrb[0].mxu0
      %5290 = vmatprep.mubr.f32.mxu0 0.0
      %5291 = vmatmul.mubr.f32.gmra.mrb[0].mxu0 %v5169
      %v5292 = vpop.f32.mrb[0].mxu0
      %v5293 = vadd.f32 0.0, %v5292
      %v5294 = vpop.f32.mrb[0].mxu0
      %5295 = vmatprep.mubr.f32.mxu0 0.0
      %5296 = vmatmul.mubr.f32.gmra.mrb[0].mxu0 %v5172
      %v5297 = vpop.f32.mrb[0].mxu0
      %v5298 = vadd.f32 0.0, %v5297
      %v5299 = vpop.f32.mrb[0].mxu0
      %5300 = vmatprep.mubr.f32.mxu0 0.0
      %5301 = vmatmul.mubr.f32.gmra.mrb[0].mxu0 %v5175
      %v5302 = vpop.f32.mrb[0].mxu0
      %v5303 = vadd.f32 0.0, %v5302
      %v5304 = vpop.f32.mrb[0].mxu0
      %5305 = vmatprep.mubr.f32.mxu0 0.0
      %5306 = vmatmul.mubr.f32.gmra.mrb[0].mxu0 %v5178
      %v5307 = vpop.f32.mrb[0].mxu0
      %v5308 = vadd.f32 0.0, %v5307
      %v5309 = vpop.f32.mrb[0].mxu0
      %5310 = vmatprep.mubr.f32.mxu0 0.0
      %5311 = vmatmul.mubr.f32.gmra.mrb[0].mxu0 %v5181
      %v5312 = vpop.f32.mrb[0].mxu0
      %v5313 = vadd.f32 0.0, %v5312
      %v5314 = vpop.f32.mrb[0].mxu0
      %5315 = vmatprep.mubr.f32.mxu0 0.0
      %5316 = vmatmul.mubr.f32.gmra.mrb[0].mxu0 %v5184
      %v5317 = vpop.f32.mrb[0].mxu0
      %v5318 = vadd.f32 0.0, %v5317
      %v5319 = vpop.f32.mrb[0].mxu0
      %5320 = vmatprep.mubr.f32.mxu0 0.0
      %5321 = vmatmul.mubr.f32.gmra.mrb[0].mxu0 %v5187
      %v5322 = vpop.f32.mrb[0].mxu0
      %v5323 = vadd.f32 0.0, %v5322
      %v5324 = vpop.f32.mrb[0].mxu0
      %5325 = vmatprep.mubr.f32.mxu0 0.0
      %5326 = vmatmul.mubr.f32.gmra.mrb[0].mxu0 %v5190
      %v5327 = vpop.f32.mrb[0].mxu0
      %v5328 = vadd.f32 0.0, %v5327
      %v5329 = vpop.f32.mrb[0].mxu0
      %5330 = vmatprep.mubr.f32.mxu0 0.0
      %5331 = vmatmul.mubr.f32.gmra.mrb[0].mxu0 %v5193
      %v5332 = vpop.f32.mrb[0].mxu0
      %v5333 = vadd.f32 0.0, %v5332
      %v5334 = vpop.f32.mrb[0].mxu0
      %5335 = vmatprep.mubr.f32.mxu0 0.0
      %5336 = vmatmul.mubr.f32.gmra.mrb[0].mxu0 %v5196
      %v5337 = vpop.f32.mrb[0].mxu0
      %v5338 = vadd.f32 0.0, %v5337
      %v5339 = vpop.f32.mrb[0].mxu0
      %5340 = vmatprep.mubr.f32.mxu0 0.0
      %5341 = vmatmul.mubr.f32.gmra.mrb[0].mxu0 %v5199
      %v5342 = vpop.f32.mrb[0].mxu0
      %v5343 = vadd.f32 0.0, %v5342
      %v5344 = vpop.f32.mrb[0].mxu0
      %5345 = vmatprep.mubr.f32.mxu0 0.0
      %5346 = vmatmul.mubr.f32.gmra.mrb[0].mxu0 %v5202
      %v5347 = vpop.f32.mrb[0].mxu0
      %v5348 = vadd.f32 0.0, %v5347
      %v5349 = vpop.f32.mrb[0].mxu0
      %5350 = vmatprep.mubr.f32.mxu0 0.0
      %5351 = vmatmul.mubr.f32.gmra.mrb[0].mxu0 %v5205
      %v5352 = vpop.f32.mrb[0].mxu0
      %v5353 = vadd.f32 0.0, %v5352
      %v5354 = vpop.f32.mrb[0].mxu0
      %5355 = vmatprep.mubr.f32.mxu0 0.0
      %5356 = vmatmul.mubr.f32.gmra.mrb[0].mxu0 %v5208
      %v5357 = vpop.f32.mrb[0].mxu0
      %v5358 = vadd.f32 0.0, %v5357
      %v5359 = vpop.f32.mrb[0].mxu0
      %5360 = vmatprep.mubr.f32.mxu0 0.0
      %5361 = vmatmul.mubr.f32.gmra.mrb[0].mxu0 %v5211
      %v5362 = vpop.f32.mrb[0].mxu0
      %v5363 = vadd.f32 0.0, %v5362
      %v5364 = vpop.f32.mrb[0].mxu0
      %5365 = vmatprep.mubr.f32.mxu0 0.0
      %5366 = vmatmul.mubr.f32.gmra.mrb[0].mxu0 %v5214
      %v5367 = vpop.f32.mrb[0].mxu0
      %v5368 = vadd.f32 0.0, %v5367
      %v5369 = vpop.f32.mrb[0].mxu0
      %5370 = vdwg.mxu0
      %v5371 = vadd.f32 %v5125, %v5283
      %v5372 = vadd.f32 %v5126, %v5288
      %v5373 = vadd.f32 %v5127, %v5293
      %v5374 = vadd.f32 %v5128, %v5298
      %v5375 = vadd.f32 %v5129, %v5303
      %v5376 = vadd.f32 %v5130, %v5308
      %v5377 = vadd.f32 %v5131, %v5313
      %v5378 = vadd.f32 %v5132, %v5318
      %v5379 = vadd.f32 %v5133, %v5323
      %v5380 = vadd.f32 %v5134, %v5328
      %v5381 = vadd.f32 %v5135, %v5333
      %v5382 = vadd.f32 %v5136, %v5338
      %v5383 = vadd.f32 %v5137, %v5343
      %v5384 = vadd.f32 %v5138, %v5348
      %v5385 = vadd.f32 %v5139, %v5353
      %v5386 = vadd.f32 %v5140, %v5358
      %v5387 = vadd.f32 %v5141, %v5363
      %v5388 = vadd.f32 %v5142, %v5368
      %v5389 = vld [vmem:[#allocation2 + $0xb6] sm:$0xff]
      %v5390 = vld [vmem:[#allocation2 + $0xbe] sm:$0xff]
      %v5391 = vld [vmem:[#allocation2 + $0xc6] sm:$0xff]
      %v5392 = vld [vmem:[#allocation2 + $0xce] sm:$0xff]
      %v5393 = vld [vmem:[#allocation2 + $0xd6] sm:$0xff]
      %v5394 = vld [vmem:[#allocation2 + $0xde] sm:$0xff]
      %v5395 = vld [vmem:[#allocation2 + $0xe6] sm:$0xff]
      %v5396 = vld [vmem:[#allocation2 + $0xee] sm:$0xff]
      %v5397 = vld [vmem:[#allocation2 + $0xf6] sm:$0xff]
      %v5398 = vld [vmem:[#allocation2 + $0xfe] sm:$0xff]
      %v5399 = vld [vmem:[#allocation2 + $0x106] sm:$0xff]
      %v5400 = vld [vmem:[#allocation2 + $0x10e] sm:$0xff]
      %v5401 = vld [vmem:[#allocation2 + $0x116] sm:$0xff]
      %v5402 = vld [vmem:[#allocation2 + $0x11e] sm:$0xff]
      %v5403 = vld [vmem:[#allocation2 + $0x126] sm:$0xff]
      %v5404 = vld [vmem:[#allocation2 + $0x12e] sm:$0xff]
      %v5405 = vld [vmem:[#allocation2 + $0x136] sm:$0xff]
      %v5406 = vld [vmem:[#allocation2 + $0x13e] sm:$0xff]
      %v5407 = vld [vmem:[%s3174] sm:$0xff]
      %v5409 = vsel %vm225, %v5389, 0
      %v5412 = vsel %vm225, %v5390, 0
      %v5415 = vsel %vm225, %v5391, 0
      %v5418 = vsel %vm225, %v5392, 0
      %v5421 = vsel %vm225, %v5393, 0
      %v5424 = vsel %vm225, %v5394, 0
      %v5427 = vsel %vm225, %v5395, 0
      %v5430 = vsel %vm225, %v5396, 0
      %v5433 = vsel %vm225, %v5397, 0
      %v5436 = vsel %vm225, %v5398, 0
      %v5439 = vsel %vm225, %v5399, 0
      %v5442 = vsel %vm225, %v5400, 0
      %v5445 = vsel %vm225, %v5401, 0
      %v5448 = vsel %vm225, %v5402, 0
      %v5451 = vsel %vm225, %v5403, 0
      %v5454 = vsel %vm225, %v5404, 0
      %v5457 = vsel %vm225, %v5405, 0
      %v5460 = vsel %vm225, %v5406, 0
      %5462 = vmatprep.subr.mxu0 0.0
      %5463 = vmatpush1.msra.mxu0 %v5407
      %5464 = vmatprep.subr.mxu0 0.0
      %5465 = vmatpush1.msra.mxu0 0.0
      %5466 = vmatprep.subr.mxu0 0.0
      %5467 = vmatpush1.msra.mxu0 0.0
      %5468 = vmatprep.subr.mxu0 0.0
      %5469 = vmatpush1.msra.mxu0 0.0
      %5470 = vmatprep.subr.mxu0 0.0
      %5471 = vmatpush1.msra.mxu0 0.0
      %5472 = vmatprep.subr.mxu0 0.0
      %5473 = vmatpush1.msra.mxu0 0.0
      %5474 = vmatprep.subr.mxu0 0.0
      %5475 = vmatpush1.msra.mxu0 0.0
      %5476 = vmatprep.subr.mxu0 0.0
      %5477 = vmatpush1.msra.mxu0 0.0
      %5478 = vmatprep.subr.mxu0 0.0
      %5479 = vmatpush1.msra.mxu0 0.0
      %5480 = vmatprep.subr.mxu0 0.0
      %5481 = vmatpush1.msra.mxu0 0.0
      %5482 = vmatprep.subr.mxu0 0.0
      %5483 = vmatpush1.msra.mxu0 0.0
      %5484 = vmatprep.subr.mxu0 0.0
      %5485 = vmatpush1.msra.mxu0 0.0
      %5486 = vmatprep.subr.mxu0 0.0
      %5487 = vmatpush1.msra.mxu0 0.0
      %5488 = vmatprep.subr.mxu0 0.0
      %5489 = vmatpush1.msra.mxu0 0.0
      %5490 = vmatprep.subr.mxu0 0.0
      %5491 = vmatpush1.msra.mxu0 0.0
      %5492 = vmatprep.subr.mxu0 0.0
      %5493 = vmatpush1.msra.mxu0 0.0
      %5494 = vmatprep.subr.mxu0 0.0
      %5495 = vmatpush1.msra.mxu0 0.0
      %5496 = vmatprep.subr.mxu0 0.0
      %5497 = vmatpush1.msra.mxu0 0.0
      %5498 = vmatprep.subr.mxu0 0.0
      %5499 = vmatpush1.msra.mxu0 0.0
      %5500 = vmatprep.subr.mxu0 0.0
      %5501 = vmatpush1.msra.mxu0 0.0
      %5502 = vmatprep.subr.mxu0 0.0
      %5503 = vmatpush1.msra.mxu0 0.0
      %5504 = vmatprep.subr.mxu0 0.0
      %5505 = vmatpush1.msra.mxu0 0.0
      %5506 = vmatprep.subr.mxu0 0.0
      %5507 = vmatpush1.msra.mxu0 0.0
      %5508 = vmatprep.subr.mxu0 0.0
      %5509 = vmatpush1.msra.mxu0 0.0
      %5510 = vmatprep.subr.mxu0 0.0
      %5511 = vmatpush1.msra.mxu0 0.0
      %5512 = vmatprep.subr.mxu0 0.0
      %5513 = vmatpush1.msra.mxu0 0.0
      %5514 = vmatprep.subr.mxu0 0.0
      %5515 = vmatpush1.msra.mxu0 0.0
      %5516 = vmatprep.subr.mxu0 0.0
      %5517 = vmatpush1.msra.mxu0 0.0
      %5518 = vmatprep.subr.mxu0 0.0
      %5519 = vmatpush1.msra.mxu0 0.0
      %5520 = vmatprep.subr.mxu0 0.0
      %5521 = vmatpush1.msra.mxu0 0.0
      %5522 = vmatprep.subr.mxu0 0.0
      %5523 = vmatpush1.msra.mxu0 0.0
      %5524 = vmatprep.subr.mxu0 0.0
      %5525 = vmatpush1.msra.mxu0 0.0
      %5526 = vmatprep.mubr.f32.mxu0 0.0
      %5527 = vmatmul.mubr.f32.gmra.mrb[0].mxu0 %v5409
      %v5528 = vpop.f32.mrb[0].mxu0
      %v5529 = vadd.f32 0.0, %v5528
      %v5530 = vpop.f32.mrb[0].mxu0
      %5531 = vmatprep.mubr.f32.mxu0 0.0
      %5532 = vmatmul.mubr.f32.gmra.mrb[0].mxu0 %v5412
      %v5533 = vpop.f32.mrb[0].mxu0
      %v5534 = vadd.f32 0.0, %v5533
      %v5535 = vpop.f32.mrb[0].mxu0
      %5536 = vmatprep.mubr.f32.mxu0 0.0
      %5537 = vmatmul.mubr.f32.gmra.mrb[0].mxu0 %v5415
      %v5538 = vpop.f32.mrb[0].mxu0
      %v5539 = vadd.f32 0.0, %v5538
      %v5540 = vpop.f32.mrb[0].mxu0
      %5541 = vmatprep.mubr.f32.mxu0 0.0
      %5542 = vmatmul.mubr.f32.gmra.mrb[0].mxu0 %v5418
      %v5543 = vpop.f32.mrb[0].mxu0
      %v5544 = vadd.f32 0.0, %v5543
      %v5545 = vpop.f32.mrb[0].mxu0
      %5546 = vmatprep.mubr.f32.mxu0 0.0
      %5547 = vmatmul.mubr.f32.gmra.mrb[0].mxu0 %v5421
      %v5548 = vpop.f32.mrb[0].mxu0
      %v5549 = vadd.f32 0.0, %v5548
      %v5550 = vpop.f32.mrb[0].mxu0
      %5551 = vmatprep.mubr.f32.mxu0 0.0
      %5552 = vmatmul.mubr.f32.gmra.mrb[0].mxu0 %v5424
      %v5553 = vpop.f32.mrb[0].mxu0
      %v5554 = vadd.f32 0.0, %v5553
      %v5555 = vpop.f32.mrb[0].mxu0
      %5556 = vmatprep.mubr.f32.mxu0 0.0
      %5557 = vmatmul.mubr.f32.gmra.mrb[0].mxu0 %v5427
      %v5558 = vpop.f32.mrb[0].mxu0
      %v5559 = vadd.f32 0.0, %v5558
      %v5560 = vpop.f32.mrb[0].mxu0
      %5561 = vmatprep.mubr.f32.mxu0 0.0
      %5562 = vmatmul.mubr.f32.gmra.mrb[0].mxu0 %v5430
      %v5563 = vpop.f32.mrb[0].mxu0
      %v5564 = vadd.f32 0.0, %v5563
      %v5565 = vpop.f32.mrb[0].mxu0
      %5566 = vmatprep.mubr.f32.mxu0 0.0
      %5567 = vmatmul.mubr.f32.gmra.mrb[0].mxu0 %v5433
      %v5568 = vpop.f32.mrb[0].mxu0
      %v5569 = vadd.f32 0.0, %v5568
      %v5570 = vpop.f32.mrb[0].mxu0
      %5571 = vmatprep.mubr.f32.mxu0 0.0
      %5572 = vmatmul.mubr.f32.gmra.mrb[0].mxu0 %v5436
      %v5573 = vpop.f32.mrb[0].mxu0
      %v5574 = vadd.f32 0.0, %v5573
      %v5575 = vpop.f32.mrb[0].mxu0
      %5576 = vmatprep.mubr.f32.mxu0 0.0
      %5577 = vmatmul.mubr.f32.gmra.mrb[0].mxu0 %v5439
      %v5578 = vpop.f32.mrb[0].mxu0
      %v5579 = vadd.f32 0.0, %v5578
      %v5580 = vpop.f32.mrb[0].mxu0
      %5581 = vmatprep.mubr.f32.mxu0 0.0
      %5582 = vmatmul.mubr.f32.gmra.mrb[0].mxu0 %v5442
      %v5583 = vpop.f32.mrb[0].mxu0
      %v5584 = vadd.f32 0.0, %v5583
      %v5585 = vpop.f32.mrb[0].mxu0
      %5586 = vmatprep.mubr.f32.mxu0 0.0
      %5587 = vmatmul.mubr.f32.gmra.mrb[0].mxu0 %v5445
      %v5588 = vpop.f32.mrb[0].mxu0
      %v5589 = vadd.f32 0.0, %v5588
      %v5590 = vpop.f32.mrb[0].mxu0
      %5591 = vmatprep.mubr.f32.mxu0 0.0
      %5592 = vmatmul.mubr.f32.gmra.mrb[0].mxu0 %v5448
      %v5593 = vpop.f32.mrb[0].mxu0
      %v5594 = vadd.f32 0.0, %v5593
      %v5595 = vpop.f32.mrb[0].mxu0
      %5596 = vmatprep.mubr.f32.mxu0 0.0
      %5597 = vmatmul.mubr.f32.gmra.mrb[0].mxu0 %v5451
      %v5598 = vpop.f32.mrb[0].mxu0
      %v5599 = vadd.f32 0.0, %v5598
      %v5600 = vpop.f32.mrb[0].mxu0
      %5601 = vmatprep.mubr.f32.mxu0 0.0
      %5602 = vmatmul.mubr.f32.gmra.mrb[0].mxu0 %v5454
      %v5603 = vpop.f32.mrb[0].mxu0
      %v5604 = vadd.f32 0.0, %v5603
      %v5605 = vpop.f32.mrb[0].mxu0
      %5606 = vmatprep.mubr.f32.mxu0 0.0
      %5607 = vmatmul.mubr.f32.gmra.mrb[0].mxu0 %v5457
      %v5608 = vpop.f32.mrb[0].mxu0
      %v5609 = vadd.f32 0.0, %v5608
      %v5610 = vpop.f32.mrb[0].mxu0
      %5611 = vmatprep.mubr.f32.mxu0 0.0
      %5612 = vmatmul.mubr.f32.gmra.mrb[0].mxu0 %v5460
      %v5613 = vpop.f32.mrb[0].mxu0
      %v5614 = vadd.f32 0.0, %v5613
      %v5615 = vpop.f32.mrb[0].mxu0
      %5616 = vdwg.mxu0
      %v5617 = vadd.f32 %v5371, %v5529
      %v5618 = vadd.f32 %v5372, %v5534
      %v5619 = vadd.f32 %v5373, %v5539
      %v5620 = vadd.f32 %v5374, %v5544
      %v5621 = vadd.f32 %v5375, %v5549
      %v5622 = vadd.f32 %v5376, %v5554
      %v5623 = vadd.f32 %v5377, %v5559
      %v5624 = vadd.f32 %v5378, %v5564
      %v5625 = vadd.f32 %v5379, %v5569
      %v5626 = vadd.f32 %v5380, %v5574
      %v5627 = vadd.f32 %v5381, %v5579
      %v5628 = vadd.f32 %v5382, %v5584
      %v5629 = vadd.f32 %v5383, %v5589
      %v5630 = vadd.f32 %v5384, %v5594
      %v5631 = vadd.f32 %v5385, %v5599
      %v5632 = vadd.f32 %v5386, %v5604
      %v5633 = vadd.f32 %v5387, %v5609
      %v5634 = vadd.f32 %v5388, %v5614
      %5635 = vst.msk [vmem:[%s224 + $0x90] sm:$0xff] %vm225, %v5617
      %5636 = vst.msk [vmem:[%s224 + $0x98] sm:$0xff] %vm225, %v5618
      %5637 = vst.msk [vmem:[%s224 + $0xa0] sm:$0xff] %vm225, %v5619
      %5638 = vst.msk [vmem:[%s224 + $0xa8] sm:$0xff] %vm225, %v5620
      %5639 = vst.msk [vmem:[%s224 + $0xb0] sm:$0xff] %vm225, %v5621
      %5640 = vst.msk [vmem:[%s224 + $0xb8] sm:$0xff] %vm225, %v5622
      %5641 = vst.msk [vmem:[%s224 + $0xc0] sm:$0xff] %vm225, %v5623
      %5642 = vst.msk [vmem:[%s224 + $0xc8] sm:$0xff] %vm225, %v5624
      %5643 = vst.msk [vmem:[%s224 + $0xd0] sm:$0xff] %vm225, %v5625
      %5644 = vst.msk [vmem:[%s224 + $0xd8] sm:$0xff] %vm225, %v5626
      %5645 = vst.msk [vmem:[%s224 + $0xe0] sm:$0xff] %vm225, %v5627
      %5646 = vst.msk [vmem:[%s224 + $0xe8] sm:$0xff] %vm225, %v5628
      %5647 = vst.msk [vmem:[%s224 + $0xf0] sm:$0xff] %vm225, %v5629
      %5648 = vst.msk [vmem:[%s224 + $0xf8] sm:$0xff] %vm225, %v5630
      %5649 = vst.msk [vmem:[%s224 + $0x100] sm:$0xff] %vm225, %v5631
      %5650 = vst.msk [vmem:[%s224 + $0x108] sm:$0xff] %vm225, %v5632
      %5651 = vst.msk [vmem:[%s224 + $0x110] sm:$0xff] %vm225, %v5633
      %5652 = vst.msk [vmem:[%s224 + $0x118] sm:$0xff] %vm225, %v5634
      %p5653 = scmp.lt.s32.totalorder %s16, 1
      %s5654 = scalar_select %p5653, %s16, 1
      %s5655 = smul.addr %s5654, 36
      %s5656 = smul.addr %s5655, 8
      %s5657 = scalar_lea.vmem %s5, %s5656
      // Predicated region
      $region41: #{tpu_custom_call.1} parent=39 // pred_check
        %p5658 = pneg %p144
      $region42: #{tpu_custom_call.1} parent=39 // pred_check_branch
        %5660 = sbr.rel (%p5658) target = $region44
      $region43: #{tpu_custom_call.1} parent=39 // pred_region
        _
      $region44: #{tpu_custom_call.1} parent=39 // pred_fallthru
        _
    $region40: #{tpu_custom_call.1} parent=5 // pred_fallthru
      _
    %p5661 = scmp.le.s32.totalorder 2, %s11
    // Predicated region
    $region45: #{tpu_custom_call.1} parent=5 // pred_check
      %p5662 = pneg %p5661
    $region46: #{tpu_custom_call.1} parent=5 // pred_check_branch
      %5664 = sbr.rel (%p5662) target = $region48
    $region47: #{tpu_custom_call.1} parent=5 // pred_region
      %s5665 = ssub.s32 %s11, 2
      // Predicated region
      $region49: #{tpu_custom_call.1} parent=47 // pred_check
        %p5666 = pneg %p150
      $region50: #{tpu_custom_call.1} parent=47 // pred_check_branch
        %5668 = sbr.rel (%p5666) target = $region52
      $region51: #{tpu_custom_call.1} parent=47 // pred_region
        %p5669 = scmp.lt.s32.totalorder %s17, 1
        %s5670 = scalar_select %p5669, %s17, 1
        %s5671 = smul.addr %s5670, 36
        %s5672 = smul.addr %s5671, 8
        %s5673 = scalar_lea.vmem %s5, %s5672
      $region52: #{tpu_custom_call.1} parent=47 // pred_fallthru
        _
    $region48: #{tpu_custom_call.1} parent=5 // pred_fallthru
      _
  $region6: #{tpu_custom_call.1} parent=0 // loop_footer
    %s15 = sadd.s32 1, %s11
  $region7: #{tpu_custom_call.1} parent=0 // loop_footer_branch
    %10 = sbr.rel target = $region3
  $region8: #{tpu_custom_call.1} parent=0 // loop_exit
    _

</llo_original>
